<compile_context>
chip_gen: v7x
topology: tpu7x:2x2x1
jax: 0.10.0
libtpu: 0.0.40
codegen_flags: <defaults>
</compile_context>

<pallas_src>
import math
from functools import partial

import jax
import jax.numpy as jnp
from jax.experimental import pallas as pl
from jax.experimental.pallas import tpu as pltpu


def _layernorm(x, gamma, beta, eps=1e-5):
    # PyTorch nn.LayerNorm: biased variance, eps=1e-5.  f32 throughout.
    mu = jnp.mean(x, axis=-1, keepdims=True)
    var = jnp.mean((x - mu) ** 2, axis=-1, keepdims=True)
    return (x - mu) * jax.lax.rsqrt(var + eps) * gamma + beta


def _gelu_tanh(u):
    # TODO(synk): PyTorch nn.GELU() is the exact erf-based GELU; the tanh
    # approximation is used since erf has no guaranteed Mosaic lowering.
    return 0.5 * u * (1.0 + jnp.tanh(0.7978845608028654 *
                                     (u + 0.044715 * u * u * u)))


def _self_attention_kernel(num_heads, bf16_transcend,
                           x_ref,        # (bb, S, C) f32
                           wqkv_ref,     # (C, 3C)   bf16  (scale folded into Q cols)
                           wmisc_ref,    # (3, C, C) bf16  [Wo^T, Wff1^T, Wff2^T]
                           bqkv_ref,     # (1, 3C)   f32   (scale folded into Q part)
                           bc_ref,       # (7, C)    f32   [ln_g, ln_b, bo, ln2_g, ln2_b, b1, b2]
                           out_ref):     # (bb, S, C) f32
    bb, S, C = x_ref.shape
    D = C // num_heads
    N = bb * S
    f32, bf16 = jnp.float32, jnp.bfloat16

    x = x_ref[...].reshape(N, C)                     # merge batch rows (layout no-op)

    # --- self.ln(x) ---
    x_ln = _layernorm(x, bc_ref[0:1], bc_ref[1:2])

    # --- fused QKV projection: one lane-dense (N, C) x (C, 3C) matmul ---
    qkv = jnp.dot(x_ln.astype(bf16), wqkv_ref[...],
                  preferred_element_type=f32) + bqkv_ref[...]        # (N, 3C)
    qkv = qkv.reshape(bb, S, 3 * C)

    # --- per-head attention (heads sliced from activations, batched einsums) ---
    heads = []
    for h in range(num_heads):                       # static unroll
        q = qkv[:, :, h * D:(h + 1) * D].astype(bf16)                # (bb, S, D)
        k = qkv[:, :, C + h * D:C + (h + 1) * D].astype(bf16)
        v = qkv[:, :, 2 * C + h * D:2 * C + (h + 1) * D].astype(bf16)

        s = jnp.einsum("bqd,bkd->bqk", q, k,
                       preferred_element_type=f32)                   # (bb, S, S)
        s = s - jnp.max(s, axis=-1, keepdims=True)
        if bf16_transcend:                           # v6e / v7x: native bf16 EUP
            p = jnp.exp(s.astype(bf16))
            denom = jnp.sum(p.astype(f32), axis=-1, keepdims=True)
        else:                                        # v5e: keep transcendentals in f32
            p_f32 = jnp.exp(s)
            denom = jnp.sum(p_f32, axis=-1, keepdims=True)
            p = p_f32.astype(bf16)
        pv = jnp.einsum("bqk,bkd->bqd", p, v,
                        preferred_element_type=f32)                  # (bb, S, D)
        # Normalize after P@V (S*D elems, not S*S); approx recip -> EUP slot.
        heads.append(pv * pl.reciprocal(denom, approx=True))

    o_all = jnp.concatenate(heads, axis=-1).reshape(N, C)            # (N, C) f32

    # --- out projection: single (N, C) x (C, C) matmul ---
    mha = jnp.dot(o_all.astype(bf16), wmisc_ref[0],
                  preferred_element_type=f32) + bc_ref[2:3]

    # --- residual 1 ---
    res1 = mha + x

    # --- ff_self: LayerNorm -> Linear -> GELU -> Linear, + residual ---
    h_ln = _layernorm(res1, bc_ref[3:4], bc_ref[4:5])
    h1 = jnp.dot(h_ln.astype(bf16), wmisc_ref[1],
                 preferred_element_type=f32) + bc_ref[5:6]
    g = _gelu_tanh(h1.astype(bf16) if bf16_transcend else h1)
    h2 = jnp.dot(g.astype(bf16), wmisc_ref[2],
                 preferred_element_type=f32) + bc_ref[6:7]

    out_ref[...] = (h2 + res1).astype(out_ref.dtype).reshape(bb, S, C)


def _device_kind():
    try:
        return jax.devices()[0].device_kind.lower()
    except Exception:
        return ""


def _tensorcores_per_chip(kind):
    """Best-effort: v7x exposes 2 TensorCores per chip, earlier generations 1."""
    return 2 if ("v7" in kind) else 1


def _has_bf16_vector_units(kind):
    """v6e / v7x have bf16 VPU+EUP; v5e and earlier do not."""
    return ("v6" in kind) or ("v7" in kind)


def init_params(key, channels):
    """Deterministic synthetic parameters (shapes match the PyTorch module)."""
    ks = jax.random.split(key, 6)
    s = 0.05
    return {
        # self.ln
        "ln_g": jnp.ones((channels,), jnp.float32),
        "ln_b": jnp.zeros((channels,), jnp.float32),
        # self.mha
        "in_proj_w": s * jax.random.normal(ks[0], (3 * channels, channels), jnp.float32),
        "in_proj_b": s * jax.random.normal(ks[1], (3 * channels,), jnp.float32),
        "out_proj_w": s * jax.random.normal(ks[2], (channels, channels), jnp.float32),
        "out_proj_b": jnp.zeros((channels,), jnp.float32),
        # self.ff_self
        "ln2_g": jnp.ones((channels,), jnp.float32),
        "ln2_b": jnp.zeros((channels,), jnp.float32),
        "ff1_w": s * jax.random.normal(ks[3], (channels, channels), jnp.float32),
        "ff1_b": s * jax.random.normal(ks[4], (channels,), jnp.float32),
        "ff2_w": s * jax.random.normal(ks[5], (channels, channels), jnp.float32),
        "ff2_b": jnp.zeros((channels,), jnp.float32),
    }


def self_attention_forward(x, params, num_heads=4):
    """x: (B, C, H, W) float32 -> (B, C, H, W) float32."""
    B, C, H, W = x.shape
    S = H * W
    D = C // num_heads
    scale = 1.0 / math.sqrt(D)

    x_seq = jnp.transpose(x.reshape(B, C, S), (0, 2, 1))             # (B, S, C)

    kind = _device_kind()
    n_tc = _tensorcores_per_chip(kind)
    bf16_transcend = _has_bf16_vector_units(kind)

    # Batch blocking: fuse the whole batch into one grid step on single-TC
    # chips (grid steps are pure overhead at this size); on multi-TC chips keep
    # a parallel batch grid so both TensorCores get work (fall back to bb=1 for
    # odd batches instead of going single-step).
    if n_tc > 1 and B > 1:
        bb = B // n_tc if B % n_tc == 0 else 1
    else:
        bb = B
    grid = (B // bb,)

    # ---- parameter packing (plain JAX, outside the kernel) ----
    # QKV: qkv = x_ln @ in_proj_w.T + in_proj_b; fold 1/sqrt(D) into Q columns.
    scale_vec = jnp.concatenate(
        [jnp.full((C,), scale, jnp.float32), jnp.ones((2 * C,), jnp.float32)])
    w_qkv = (params["in_proj_w"].T * scale_vec[None, :]).astype(jnp.bfloat16)   # (C, 3C)
    b_qkv = (params["in_proj_b"] * scale_vec).reshape(1, 3 * C).astype(jnp.float32)

    # Misc weights packed into one (3, C, C) bf16 slab: [Wo^T, Wff1^T, Wff2^T].
    w_misc = jnp.stack([params["out_proj_w"].T,
                        params["ff1_w"].T,
                        params["ff2_w"].T]).astype(jnp.bfloat16)                 # (3, C, C)

    # All C-wide scale/bias vectors packed into one (7, C) f32 slab.
    bias_c = jnp.stack([params["ln_g"], params["ln_b"], params["out_proj_b"],
                        params["ln2_g"], params["ln2_b"],
                        params["ff1_b"], params["ff2_b"]]).astype(jnp.float32)   # (7, C)

    args = (x_seq, w_qkv, w_misc, b_qkv, bias_c)

    in_specs = [
        pl.BlockSpec((bb, S, C), lambda i: (i, 0, 0)),
        pl.BlockSpec(w_qkv.shape, lambda i: (0, 0)),          # grid-invariant
        pl.BlockSpec(w_misc.shape, lambda i: (0, 0, 0)),      # grid-invariant
        pl.BlockSpec(b_qkv.shape, lambda i: (0, 0)),          # grid-invariant
        pl.BlockSpec(bias_c.shape, lambda i: (0, 0)),         # grid-invariant
    ]

    # TODO(synk): at real UNet resolutions (S up to 1024-4096) the full (S, S)
    # score matrices must become flash-style KV tiling (and on v7x the VMEM
    # budget must be derived from 64 MiB, not 128 MiB); fine at this S.
    out_seq = pl.pallas_call(
        partial(_self_attention_kernel, num_heads, bf16_transcend),
        out_shape=jax.ShapeDtypeStruct((B, S, C), jnp.float32),
        grid=grid,
        in_specs=in_specs,
        out_specs=pl.BlockSpec((bb, S, C), lambda i: (i, 0, 0)),
        compiler_params=pltpu.CompilerParams(
            dimension_semantics=("parallel",)),
    )(*args)

    return jnp.transpose(out_seq, (0, 2, 1)).reshape(B, C, H, W)


def _reference_forward(x, params, num_heads=4):
    """Pure-JAX f32 reference mirroring the module semantics (sanity check)."""
    B, C, H, W = x.shape
    S = H * W
    xs = jnp.transpose(x.reshape(B, C, S), (0, 2, 1))

    def ln(v, g, b):
        mu = jnp.mean(v, -1, keepdims=True)
        var = jnp.mean((v - mu) ** 2, -1, keepdims=True)
        return (v - mu) * jax.lax.rsqrt(var + 1e-5) * g + b

    x_ln = ln(xs, params["ln_g"], params["ln_b"])
    qkv = x_ln @ params["in_proj_w"].T + params["in_proj_b"]
    q, k, v = jnp.split(qkv, 3, axis=-1)
    D = C // num_heads

    def split_heads(t):
        return t.reshape(B, S, num_heads, D).transpose(0, 2, 1, 3)

    qh, kh, vh = split_heads(q), split_heads(k), split_heads(v)
    scores = jnp.einsum("bhqd,bhkd->bhqk", qh, kh) / math.sqrt(D)
    p = jax.nn.softmax(scores, axis=-1)
    oh = jnp.einsum("bhqk,bhkd->bhqd", p, vh)
    heads = oh.transpose(0, 2, 1, 3).reshape(B, S, C)
    mha_out = heads @ params["out_proj_w"].T + params["out_proj_b"]
    res1 = mha_out + xs
    h_ln = ln(res1, params["ln2_g"], params["ln2_b"])
    h1 = h_ln @ params["ff1_w"].T + params["ff1_b"]
    h1 = 0.5 * h1 * (1.0 + jnp.tanh(0.7978845608028654 *
                                    (h1 + 0.044715 * h1 ** 3)))
    h2 = h1 @ params["ff2_w"].T + params["ff2_b"]
    out = h2 + res1
    return jnp.transpose(out, (0, 2, 1)).reshape(B, C, H, W)


if __name__ == "__main__":
    B, C, H, W = 2, 32, 8, 8          # channels divisible by num_heads=4
    key = jax.random.PRNGKey(0)
    kx, kp = jax.random.split(key)
    x = jax.random.normal(kx, (B, C, H, W), jnp.float32)
    params = init_params(kp, C)

    out = jax.block_until_ready(self_attention_forward(x, params))
    ref = jax.block_until_ready(_reference_forward(x, params))

    assert out.shape == (B, C, H, W)
    assert bool(jnp.all(jnp.isfinite(out)))
    max_err = float(jnp.max(jnp.abs(out - ref)))
    # Tolerance accounts for bf16 matmul inputs (f32 accumulation), bf16
    # exp/tanh on v6e/v7x, and the approx reciprocal in the softmax normalizer.
    assert bool(jnp.allclose(out, ref, atol=2e-2, rtol=2e-2)), f"max abs err {max_err}"
    print("KERNEL_OK")
</pallas_src>

<mosaic_0001>
module attributes {stable_mosaic.version = 11 : i64} {
  func.func @_self_attention_kernel(%arg0: i32, %arg1: memref<2x64x32xf32, #tpu.memory_space<vmem>>, %arg2: memref<32x96xbf16, #tpu.memory_space<vmem>>, %arg3: memref<3x32x32xbf16, #tpu.memory_space<vmem>>, %arg4: memref<1x96xf32, #tpu.memory_space<vmem>>, %arg5: memref<7x32xf32, #tpu.memory_space<vmem>>, %arg6: memref<2x64x32xf32, #tpu.memory_space<vmem>>) attributes {dimension_semantics = [#tpu.dimension_semantics<parallel>], iteration_bounds = array<i64: 1>, scalar_prefetch = 0 : i64, scratch_operands = 0 : i64, tpu.core_type = #tpu.core_type<tc>, window_params = [{transform_indices = @transform_0, window_bounds = array<i64: 2, 64, 32>}, {pipeline_mode = #tpu.pipeline_mode<synchronous>, transform_indices = @transform_1, window_bounds = array<i64: 32, 96>}, {pipeline_mode = #tpu.pipeline_mode<synchronous>, transform_indices = @transform_2, window_bounds = array<i64: 3, 32, 32>}, {pipeline_mode = #tpu.pipeline_mode<synchronous>, transform_indices = @transform_3, window_bounds = array<i64: 1, 96>}, {pipeline_mode = #tpu.pipeline_mode<synchronous>, transform_indices = @transform_4, window_bounds = array<i64: 7, 32>}, {transform_indices = @transform_5, window_bounds = array<i64: 2, 64, 32>}]} {
    %c0 = arith.constant 0 : index
    %c0_0 = arith.constant 0 : index
    %c0_1 = arith.constant 0 : index
    %0 = vector.load %arg1[%c0, %c0_0, %c0_1] : memref<2x64x32xf32, #tpu.memory_space<vmem>>, vector<2x64x32xf32>
    %1 = vector.shape_cast %0 : vector<2x64x32xf32> to vector<128x32xf32>
    %c0_2 = arith.constant 0 : index
    %c0_3 = arith.constant 0 : index
    %2 = vector.load %arg5[%c0_2, %c0_3] : memref<7x32xf32, #tpu.memory_space<vmem>>, vector<1x32xf32>
    %c1 = arith.constant 1 : index
    %c0_4 = arith.constant 0 : index
    %3 = vector.load %arg5[%c1, %c0_4] : memref<7x32xf32, #tpu.memory_space<vmem>>, vector<1x32xf32>
    %cst = arith.constant dense<0.000000e+00> : vector<128xf32>
    %4 = vector.multi_reduction <add>, %1, %cst [1] : vector<128x32xf32> to vector<128xf32>
    %5 = vector.shape_cast %4 : vector<128xf32> to vector<128x1xf32>
    %cst_5 = arith.constant 3.200000e+01 : f32
    %6 = vector.broadcast %cst_5 : f32 to vector<128x1xf32>
    %7 = arith.divf %5, %6 : vector<128x1xf32>
    %8 = vector.broadcast %7 : vector<128x1xf32> to vector<128x32xf32>
    %9 = arith.subf %1, %8 : vector<128x32xf32>
    %10 = arith.mulf %9, %9 : vector<128x32xf32>
    %cst_6 = arith.constant dense<0.000000e+00> : vector<128xf32>
    %11 = vector.multi_reduction <add>, %10, %cst_6 [1] : vector<128x32xf32> to vector<128xf32>
    %12 = vector.shape_cast %11 : vector<128xf32> to vector<128x1xf32>
    %cst_7 = arith.constant 3.200000e+01 : f32
    %13 = vector.broadcast %cst_7 : f32 to vector<128x1xf32>
    %14 = arith.divf %12, %13 : vector<128x1xf32>
    %15 = vector.broadcast %7 : vector<128x1xf32> to vector<128x32xf32>
    %16 = arith.subf %1, %15 : vector<128x32xf32>
    %cst_8 = arith.constant 9.99999974E-6 : f32
    %17 = vector.broadcast %cst_8 : f32 to vector<128x1xf32>
    %18 = arith.addf %14, %17 : vector<128x1xf32>
    %19 = math.rsqrt %18 : vector<128x1xf32>
    %20 = vector.broadcast %19 : vector<128x1xf32> to vector<128x32xf32>
    %21 = arith.mulf %16, %20 : vector<128x32xf32>
    %22 = vector.broadcast %2 : vector<1x32xf32> to vector<128x32xf32>
    %23 = arith.mulf %21, %22 : vector<128x32xf32>
    %24 = vector.broadcast %3 : vector<1x32xf32> to vector<128x32xf32>
    %25 = arith.addf %23, %24 : vector<128x32xf32>
    %26 = arith.truncf %25 : vector<128x32xf32> to vector<128x32xbf16>
    %c0_9 = arith.constant 0 : index
    %c0_10 = arith.constant 0 : index
    %27 = vector.load %arg2[%c0_9, %c0_10] : memref<32x96xbf16, #tpu.memory_space<vmem>>, vector<32x96xbf16>
    %cst_11 = arith.constant dense<0.000000e+00> : vector<128x96xf32>
    %28 = tpu.matmul %26, %27, %cst_11 {dimension_numbers = #tpu.dot_dimension_numbers<[1], [0], [0], [1], [0, 0, 1, 1], [], []>} : vector<128x32xbf16>, vector<32x96xbf16>, vector<128x96xf32> -> vector<128x96xf32>
    %c0_12 = arith.constant 0 : index
    %c0_13 = arith.constant 0 : index
    %29 = vector.load %arg4[%c0_12, %c0_13] : memref<1x96xf32, #tpu.memory_space<vmem>>, vector<1x96xf32>
    %30 = vector.broadcast %29 : vector<1x96xf32> to vector<128x96xf32>
    %31 = arith.addf %28, %30 : vector<128x96xf32>
    %32 = vector.shape_cast %31 : vector<128x96xf32> to vector<2x64x96xf32>
    %33 = vector.extract_strided_slice %32 {offsets = [0, 0, 0], sizes = [2, 64, 8], strides = [1, 1, 1]} : vector<2x64x96xf32> to vector<2x64x8xf32>
    %34 = arith.truncf %33 : vector<2x64x8xf32> to vector<2x64x8xbf16>
    %35 = vector.extract_strided_slice %32 {offsets = [0, 0, 32], sizes = [2, 64, 8], strides = [1, 1, 1]} : vector<2x64x96xf32> to vector<2x64x8xf32>
    %36 = arith.truncf %35 : vector<2x64x8xf32> to vector<2x64x8xbf16>
    %37 = vector.extract_strided_slice %32 {offsets = [0, 0, 64], sizes = [2, 64, 8], strides = [1, 1, 1]} : vector<2x64x96xf32> to vector<2x64x8xf32>
    %38 = arith.truncf %37 : vector<2x64x8xf32> to vector<2x64x8xbf16>
    "tpu.trace_start"() <{level = 10 : i32, message = "bqd,bkd->bqk"}> : () -> ()
    %cst_14 = arith.constant dense<0.000000e+00> : vector<2x64x64xf32>
    %39 = tpu.matmul %34, %36, %cst_14 {dimension_numbers = #tpu.dot_dimension_numbers<[2], [2], [1], [1], [0, 0, 0, 1, 1, 1], [0], [0]>} : vector<2x64x8xbf16>, vector<2x64x8xbf16>, vector<2x64x64xf32> -> vector<2x64x64xf32>
    "tpu.trace_stop"() : () -> ()
    %cst_15 = arith.constant dense<0xFF800000> : vector<2x64xf32>
    %40 = vector.multi_reduction <maximumf>, %39, %cst_15 [2] : vector<2x64x64xf32> to vector<2x64xf32>
    %41 = vector.shape_cast %40 : vector<2x64xf32> to vector<2x64x1xf32>
    %42 = vector.broadcast %41 : vector<2x64x1xf32> to vector<2x64x64xf32>
    %43 = arith.subf %39, %42 : vector<2x64x64xf32>
    %44 = math.exp %43 : vector<2x64x64xf32>
    %cst_16 = arith.constant dense<0.000000e+00> : vector<2x64xf32>
    %45 = vector.multi_reduction <add>, %44, %cst_16 [2] : vector<2x64x64xf32> to vector<2x64xf32>
    %46 = vector.shape_cast %45 : vector<2x64xf32> to vector<2x64x1xf32>
    %47 = arith.truncf %44 : vector<2x64x64xf32> to vector<2x64x64xbf16>
    "tpu.trace_start"() <{level = 10 : i32, message = "bqk,bkd->bqd"}> : () -> ()
    %cst_17 = arith.constant dense<0.000000e+00> : vector<2x64x8xf32>
    %48 = tpu.matmul %47, %38, %cst_17 {dimension_numbers = #tpu.dot_dimension_numbers<[2], [1], [1], [2], [0, 0, 0, 1, 1, 2], [0], [0]>} : vector<2x64x64xbf16>, vector<2x64x8xbf16>, vector<2x64x8xf32> -> vector<2x64x8xf32>
    "tpu.trace_stop"() : () -> ()
    %49 = tpu.reciprocal %46 {approx = true} : vector<2x64x1xf32> -> vector<2x64x1xf32>
    %50 = vector.broadcast %49 : vector<2x64x1xf32> to vector<2x64x8xf32>
    %51 = arith.mulf %48, %50 : vector<2x64x8xf32>
    %52 = vector.extract_strided_slice %32 {offsets = [0, 0, 8], sizes = [2, 64, 8], strides = [1, 1, 1]} : vector<2x64x96xf32> to vector<2x64x8xf32>
    %53 = arith.truncf %52 : vector<2x64x8xf32> to vector<2x64x8xbf16>
    %54 = vector.extract_strided_slice %32 {offsets = [0, 0, 40], sizes = [2, 64, 8], strides = [1, 1, 1]} : vector<2x64x96xf32> to vector<2x64x8xf32>
    %55 = arith.truncf %54 : vector<2x64x8xf32> to vector<2x64x8xbf16>
    %56 = vector.extract_strided_slice %32 {offsets = [0, 0, 72], sizes = [2, 64, 8], strides = [1, 1, 1]} : vector<2x64x96xf32> to vector<2x64x8xf32>
    %57 = arith.truncf %56 : vector<2x64x8xf32> to vector<2x64x8xbf16>
    "tpu.trace_start"() <{level = 10 : i32, message = "bqd,bkd->bqk"}> : () -> ()
    %cst_18 = arith.constant dense<0.000000e+00> : vector<2x64x64xf32>
    %58 = tpu.matmul %53, %55, %cst_18 {dimension_numbers = #tpu.dot_dimension_numbers<[2], [2], [1], [1], [0, 0, 0, 1, 1, 1], [0], [0]>} : vector<2x64x8xbf16>, vector<2x64x8xbf16>, vector<2x64x64xf32> -> vector<2x64x64xf32>
    "tpu.trace_stop"() : () -> ()
    %cst_19 = arith.constant dense<0xFF800000> : vector<2x64xf32>
    %59 = vector.multi_reduction <maximumf>, %58, %cst_19 [2] : vector<2x64x64xf32> to vector<2x64xf32>
    %60 = vector.shape_cast %59 : vector<2x64xf32> to vector<2x64x1xf32>
    %61 = vector.broadcast %60 : vector<2x64x1xf32> to vector<2x64x64xf32>
    %62 = arith.subf %58, %61 : vector<2x64x64xf32>
    %63 = math.exp %62 : vector<2x64x64xf32>
    %cst_20 = arith.constant dense<0.000000e+00> : vector<2x64xf32>
    %64 = vector.multi_reduction <add>, %63, %cst_20 [2] : vector<2x64x64xf32> to vector<2x64xf32>
    %65 = vector.shape_cast %64 : vector<2x64xf32> to vector<2x64x1xf32>
    %66 = arith.truncf %63 : vector<2x64x64xf32> to vector<2x64x64xbf16>
    "tpu.trace_start"() <{level = 10 : i32, message = "bqk,bkd->bqd"}> : () -> ()
    %cst_21 = arith.constant dense<0.000000e+00> : vector<2x64x8xf32>
    %67 = tpu.matmul %66, %57, %cst_21 {dimension_numbers = #tpu.dot_dimension_numbers<[2], [1], [1], [2], [0, 0, 0, 1, 1, 2], [0], [0]>} : vector<2x64x64xbf16>, vector<2x64x8xbf16>, vector<2x64x8xf32> -> vector<2x64x8xf32>
    "tpu.trace_stop"() : () -> ()
    %68 = tpu.reciprocal %65 {approx = true} : vector<2x64x1xf32> -> vector<2x64x1xf32>
    %69 = vector.broadcast %68 : vector<2x64x1xf32> to vector<2x64x8xf32>
    %70 = arith.mulf %67, %69 : vector<2x64x8xf32>
    %71 = vector.extract_strided_slice %32 {offsets = [0, 0, 16], sizes = [2, 64, 8], strides = [1, 1, 1]} : vector<2x64x96xf32> to vector<2x64x8xf32>
    %72 = arith.truncf %71 : vector<2x64x8xf32> to vector<2x64x8xbf16>
    %73 = vector.extract_strided_slice %32 {offsets = [0, 0, 48], sizes = [2, 64, 8], strides = [1, 1, 1]} : vector<2x64x96xf32> to vector<2x64x8xf32>
    %74 = arith.truncf %73 : vector<2x64x8xf32> to vector<2x64x8xbf16>
    %75 = vector.extract_strided_slice %32 {offsets = [0, 0, 80], sizes = [2, 64, 8], strides = [1, 1, 1]} : vector<2x64x96xf32> to vector<2x64x8xf32>
    %76 = arith.truncf %75 : vector<2x64x8xf32> to vector<2x64x8xbf16>
    "tpu.trace_start"() <{level = 10 : i32, message = "bqd,bkd->bqk"}> : () -> ()
    %cst_22 = arith.constant dense<0.000000e+00> : vector<2x64x64xf32>
    %77 = tpu.matmul %72, %74, %cst_22 {dimension_numbers = #tpu.dot_dimension_numbers<[2], [2], [1], [1], [0, 0, 0, 1, 1, 1], [0], [0]>} : vector<2x64x8xbf16>, vector<2x64x8xbf16>, vector<2x64x64xf32> -> vector<2x64x64xf32>
    "tpu.trace_stop"() : () -> ()
    %cst_23 = arith.constant dense<0xFF800000> : vector<2x64xf32>
    %78 = vector.multi_reduction <maximumf>, %77, %cst_23 [2] : vector<2x64x64xf32> to vector<2x64xf32>
    %79 = vector.shape_cast %78 : vector<2x64xf32> to vector<2x64x1xf32>
    %80 = vector.broadcast %79 : vector<2x64x1xf32> to vector<2x64x64xf32>
    %81 = arith.subf %77, %80 : vector<2x64x64xf32>
    %82 = math.exp %81 : vector<2x64x64xf32>
    %cst_24 = arith.constant dense<0.000000e+00> : vector<2x64xf32>
    %83 = vector.multi_reduction <add>, %82, %cst_24 [2] : vector<2x64x64xf32> to vector<2x64xf32>
    %84 = vector.shape_cast %83 : vector<2x64xf32> to vector<2x64x1xf32>
    %85 = arith.truncf %82 : vector<2x64x64xf32> to vector<2x64x64xbf16>
    "tpu.trace_start"() <{level = 10 : i32, message = "bqk,bkd->bqd"}> : () -> ()
    %cst_25 = arith.constant dense<0.000000e+00> : vector<2x64x8xf32>
    %86 = tpu.matmul %85, %76, %cst_25 {dimension_numbers = #tpu.dot_dimension_numbers<[2], [1], [1], [2], [0, 0, 0, 1, 1, 2], [0], [0]>} : vector<2x64x64xbf16>, vector<2x64x8xbf16>, vector<2x64x8xf32> -> vector<2x64x8xf32>
    "tpu.trace_stop"() : () -> ()
    %87 = tpu.reciprocal %84 {approx = true} : vector<2x64x1xf32> -> vector<2x64x1xf32>
    %88 = vector.broadcast %87 : vector<2x64x1xf32> to vector<2x64x8xf32>
    %89 = arith.mulf %86, %88 : vector<2x64x8xf32>
    %90 = vector.extract_strided_slice %32 {offsets = [0, 0, 24], sizes = [2, 64, 8], strides = [1, 1, 1]} : vector<2x64x96xf32> to vector<2x64x8xf32>
    %91 = arith.truncf %90 : vector<2x64x8xf32> to vector<2x64x8xbf16>
    %92 = vector.extract_strided_slice %32 {offsets = [0, 0, 56], sizes = [2, 64, 8], strides = [1, 1, 1]} : vector<2x64x96xf32> to vector<2x64x8xf32>
    %93 = arith.truncf %92 : vector<2x64x8xf32> to vector<2x64x8xbf16>
    %94 = vector.extract_strided_slice %32 {offsets = [0, 0, 88], sizes = [2, 64, 8], strides = [1, 1, 1]} : vector<2x64x96xf32> to vector<2x64x8xf32>
    %95 = arith.truncf %94 : vector<2x64x8xf32> to vector<2x64x8xbf16>
    "tpu.trace_start"() <{level = 10 : i32, message = "bqd,bkd->bqk"}> : () -> ()
    %cst_26 = arith.constant dense<0.000000e+00> : vector<2x64x64xf32>
    %96 = tpu.matmul %91, %93, %cst_26 {dimension_numbers = #tpu.dot_dimension_numbers<[2], [2], [1], [1], [0, 0, 0, 1, 1, 1], [0], [0]>} : vector<2x64x8xbf16>, vector<2x64x8xbf16>, vector<2x64x64xf32> -> vector<2x64x64xf32>
    "tpu.trace_stop"() : () -> ()
    %cst_27 = arith.constant dense<0xFF800000> : vector<2x64xf32>
    %97 = vector.multi_reduction <maximumf>, %96, %cst_27 [2] : vector<2x64x64xf32> to vector<2x64xf32>
    %98 = vector.shape_cast %97 : vector<2x64xf32> to vector<2x64x1xf32>
    %99 = vector.broadcast %98 : vector<2x64x1xf32> to vector<2x64x64xf32>
    %100 = arith.subf %96, %99 : vector<2x64x64xf32>
    %101 = math.exp %100 : vector<2x64x64xf32>
    %cst_28 = arith.constant dense<0.000000e+00> : vector<2x64xf32>
    %102 = vector.multi_reduction <add>, %101, %cst_28 [2] : vector<2x64x64xf32> to vector<2x64xf32>
    %103 = vector.shape_cast %102 : vector<2x64xf32> to vector<2x64x1xf32>
    %104 = arith.truncf %101 : vector<2x64x64xf32> to vector<2x64x64xbf16>
    "tpu.trace_start"() <{level = 10 : i32, message = "bqk,bkd->bqd"}> : () -> ()
    %cst_29 = arith.constant dense<0.000000e+00> : vector<2x64x8xf32>
    %105 = tpu.matmul %104, %95, %cst_29 {dimension_numbers = #tpu.dot_dimension_numbers<[2], [1], [1], [2], [0, 0, 0, 1, 1, 2], [0], [0]>} : vector<2x64x64xbf16>, vector<2x64x8xbf16>, vector<2x64x8xf32> -> vector<2x64x8xf32>
    "tpu.trace_stop"() : () -> ()
    %106 = tpu.reciprocal %103 {approx = true} : vector<2x64x1xf32> -> vector<2x64x1xf32>
    %107 = vector.broadcast %106 : vector<2x64x1xf32> to vector<2x64x8xf32>
    %108 = arith.mulf %105, %107 : vector<2x64x8xf32>
    %109 = tpu.concatenate %51, %70, %89, %108 in 2 : vector<2x64x8xf32>, vector<2x64x8xf32>, vector<2x64x8xf32>, vector<2x64x8xf32> -> vector<2x64x32xf32>
    %110 = vector.shape_cast %109 : vector<2x64x32xf32> to vector<128x32xf32>
    %111 = arith.truncf %110 : vector<128x32xf32> to vector<128x32xbf16>
    %c0_30 = arith.constant 0 : index
    %c0_31 = arith.constant 0 : index
    %c0_32 = arith.constant 0 : index
    %112 = vector.load %arg3[%c0_30, %c0_31, %c0_32] : memref<3x32x32xbf16, #tpu.memory_space<vmem>>, vector<1x32x32xbf16>
    %113 = vector.shape_cast %112 : vector<1x32x32xbf16> to vector<32x32xbf16>
    %cst_33 = arith.constant dense<0.000000e+00> : vector<128x32xf32>
    %114 = tpu.matmul %111, %113, %cst_33 {dimension_numbers = #tpu.dot_dimension_numbers<[1], [0], [0], [1], [0, 0, 1, 1], [], []>} : vector<128x32xbf16>, vector<32x32xbf16>, vector<128x32xf32> -> vector<128x32xf32>
    %c2 = arith.constant 2 : index
    %c0_34 = arith.constant 0 : index
    %115 = vector.load %arg5[%c2, %c0_34] : memref<7x32xf32, #tpu.memory_space<vmem>>, vector<1x32xf32>
    %116 = vector.broadcast %115 : vector<1x32xf32> to vector<128x32xf32>
    %117 = arith.addf %114, %116 : vector<128x32xf32>
    %118 = arith.addf %117, %1 : vector<128x32xf32>
    %c3 = arith.constant 3 : index
    %c0_35 = arith.constant 0 : index
    %119 = vector.load %arg5[%c3, %c0_35] : memref<7x32xf32, #tpu.memory_space<vmem>>, vector<1x32xf32>
    %c4 = arith.constant 4 : index
    %c0_36 = arith.constant 0 : index
    %120 = vector.load %arg5[%c4, %c0_36] : memref<7x32xf32, #tpu.memory_space<vmem>>, vector<1x32xf32>
    %cst_37 = arith.constant dense<0.000000e+00> : vector<128xf32>
    %121 = vector.multi_reduction <add>, %118, %cst_37 [1] : vector<128x32xf32> to vector<128xf32>
    %122 = vector.shape_cast %121 : vector<128xf32> to vector<128x1xf32>
    %cst_38 = arith.constant 3.200000e+01 : f32
    %123 = vector.broadcast %cst_38 : f32 to vector<128x1xf32>
    %124 = arith.divf %122, %123 : vector<128x1xf32>
    %125 = vector.broadcast %124 : vector<128x1xf32> to vector<128x32xf32>
    %126 = arith.subf %118, %125 : vector<128x32xf32>
    %127 = arith.mulf %126, %126 : vector<128x32xf32>
    %cst_39 = arith.constant dense<0.000000e+00> : vector<128xf32>
    %128 = vector.multi_reduction <add>, %127, %cst_39 [1] : vector<128x32xf32> to vector<128xf32>
    %129 = vector.shape_cast %128 : vector<128xf32> to vector<128x1xf32>
    %cst_40 = arith.constant 3.200000e+01 : f32
    %130 = vector.broadcast %cst_40 : f32 to vector<128x1xf32>
    %131 = arith.divf %129, %130 : vector<128x1xf32>
    %132 = vector.broadcast %124 : vector<128x1xf32> to vector<128x32xf32>
    %133 = arith.subf %118, %132 : vector<128x32xf32>
    %cst_41 = arith.constant 9.99999974E-6 : f32
    %134 = vector.broadcast %cst_41 : f32 to vector<128x1xf32>
    %135 = arith.addf %131, %134 : vector<128x1xf32>
    %136 = math.rsqrt %135 : vector<128x1xf32>
    %137 = vector.broadcast %136 : vector<128x1xf32> to vector<128x32xf32>
    %138 = arith.mulf %133, %137 : vector<128x32xf32>
    %139 = vector.broadcast %119 : vector<1x32xf32> to vector<128x32xf32>
    %140 = arith.mulf %138, %139 : vector<128x32xf32>
    %141 = vector.broadcast %120 : vector<1x32xf32> to vector<128x32xf32>
    %142 = arith.addf %140, %141 : vector<128x32xf32>
    %143 = arith.truncf %142 : vector<128x32xf32> to vector<128x32xbf16>
    %c1_42 = arith.constant 1 : index
    %c0_43 = arith.constant 0 : index
    %c0_44 = arith.constant 0 : index
    %144 = vector.load %arg3[%c1_42, %c0_43, %c0_44] : memref<3x32x32xbf16, #tpu.memory_space<vmem>>, vector<1x32x32xbf16>
    %145 = vector.shape_cast %144 : vector<1x32x32xbf16> to vector<32x32xbf16>
    %cst_45 = arith.constant dense<0.000000e+00> : vector<128x32xf32>
    %146 = tpu.matmul %143, %145, %cst_45 {dimension_numbers = #tpu.dot_dimension_numbers<[1], [0], [0], [1], [0, 0, 1, 1], [], []>} : vector<128x32xbf16>, vector<32x32xbf16>, vector<128x32xf32> -> vector<128x32xf32>
    %c5 = arith.constant 5 : index
    %c0_46 = arith.constant 0 : index
    %147 = vector.load %arg5[%c5, %c0_46] : memref<7x32xf32, #tpu.memory_space<vmem>>, vector<1x32xf32>
    %148 = vector.broadcast %147 : vector<1x32xf32> to vector<128x32xf32>
    %149 = arith.addf %146, %148 : vector<128x32xf32>
    %cst_47 = arith.constant 5.000000e-01 : f32
    %150 = vector.broadcast %cst_47 : f32 to vector<128x32xf32>
    %151 = arith.mulf %150, %149 : vector<128x32xf32>
    %cst_48 = arith.constant 4.471500e-02 : f32
    %152 = vector.broadcast %cst_48 : f32 to vector<128x32xf32>
    %153 = arith.mulf %152, %149 : vector<128x32xf32>
    %154 = arith.mulf %153, %149 : vector<128x32xf32>
    %155 = arith.mulf %154, %149 : vector<128x32xf32>
    %156 = arith.addf %149, %155 : vector<128x32xf32>
    %cst_49 = arith.constant 0.797884583 : f32
    %157 = vector.broadcast %cst_49 : f32 to vector<128x32xf32>
    %158 = arith.mulf %157, %156 : vector<128x32xf32>
    %159 = math.tanh %158 : vector<128x32xf32>
    %cst_50 = arith.constant 1.000000e+00 : f32
    %160 = vector.broadcast %cst_50 : f32 to vector<128x32xf32>
    %161 = arith.addf %160, %159 : vector<128x32xf32>
    %162 = arith.mulf %151, %161 : vector<128x32xf32>
    %163 = arith.truncf %162 : vector<128x32xf32> to vector<128x32xbf16>
    %c2_51 = arith.constant 2 : index
    %c0_52 = arith.constant 0 : index
    %c0_53 = arith.constant 0 : index
    %164 = vector.load %arg3[%c2_51, %c0_52, %c0_53] : memref<3x32x32xbf16, #tpu.memory_space<vmem>>, vector<1x32x32xbf16>
    %165 = vector.shape_cast %164 : vector<1x32x32xbf16> to vector<32x32xbf16>
    %cst_54 = arith.constant dense<0.000000e+00> : vector<128x32xf32>
    %166 = tpu.matmul %163, %165, %cst_54 {dimension_numbers = #tpu.dot_dimension_numbers<[1], [0], [0], [1], [0, 0, 1, 1], [], []>} : vector<128x32xbf16>, vector<32x32xbf16>, vector<128x32xf32> -> vector<128x32xf32>
    %c6 = arith.constant 6 : index
    %c0_55 = arith.constant 0 : index
    %167 = vector.load %arg5[%c6, %c0_55] : memref<7x32xf32, #tpu.memory_space<vmem>>, vector<1x32xf32>
    %168 = vector.broadcast %167 : vector<1x32xf32> to vector<128x32xf32>
    %169 = arith.addf %166, %168 : vector<128x32xf32>
    %170 = arith.addf %169, %118 : vector<128x32xf32>
    %171 = vector.shape_cast %170 : vector<128x32xf32> to vector<2x64x32xf32>
    %c0_56 = arith.constant 0 : index
    %c0_57 = arith.constant 0 : index
    %c0_58 = arith.constant 0 : index
    %172 = vector.load %arg6[%c0_56, %c0_57, %c0_58] : memref<2x64x32xf32, #tpu.memory_space<vmem>>, vector<2x64x32xf32>
    tpu.vector_store %arg6[%c0_56, %c0_57, %c0_58], %171 {strides = array<i32>} : memref<2x64x32xf32, #tpu.memory_space<vmem>>, vector<2x64x32xf32>,
    return
  }
  func.func @transform_0(%arg0: i32) -> (i32, i32, i32) {
    %c0_i32 = arith.constant 0 : i32
    %c0_i32_0 = arith.constant 0 : i32
    %c0_i32_1 = arith.constant 0 : i32
    return %arg0, %c0_i32, %c0_i32_0 : i32, i32, i32
  }
  func.func @transform_1(%arg0: i32) -> (i32, i32) {
    %c0_i32 = arith.constant 0 : i32
    %c0_i32_0 = arith.constant 0 : i32
    %c0_i32_1 = arith.constant 0 : i32
    return %c0_i32, %c0_i32_0 : i32, i32
  }
  func.func @transform_2(%arg0: i32) -> (i32, i32, i32) {
    %c0_i32 = arith.constant 0 : i32
    %c0_i32_0 = arith.constant 0 : i32
    %c0_i32_1 = arith.constant 0 : i32
    %c0_i32_2 = arith.constant 0 : i32
    return %c0_i32, %c0_i32_0, %c0_i32_1 : i32, i32, i32
  }
  func.func @transform_3(%arg0: i32) -> (i32, i32) {
    %c0_i32 = arith.constant 0 : i32
    %c0_i32_0 = arith.constant 0 : i32
    %c0_i32_1 = arith.constant 0 : i32
    return %c0_i32, %c0_i32_0 : i32, i32
  }
  func.func @transform_4(%arg0: i32) -> (i32, i32) {
    %c0_i32 = arith.constant 0 : i32
    %c0_i32_0 = arith.constant 0 : i32
    %c0_i32_1 = arith.constant 0 : i32
    return %c0_i32, %c0_i32_0 : i32, i32
  }
  func.func @transform_5(%arg0: i32) -> (i32, i32, i32) {
    %c0_i32 = arith.constant 0 : i32
    %c0_i32_0 = arith.constant 0 : i32
    %c0_i32_1 = arith.constant 0 : i32
    return %arg0, %c0_i32, %c0_i32_0 : i32, i32, i32
  }
}

</mosaic_0001>

<llo_original>
// kernel: tpu_custom_call.1
$region0: #{tpu_custom_call.1}
  #allocation0 [shape = 'u32[]', space=smem, size = 0x4, offset = 0x4, fixed_abs, tag = 'smem constant byte address 0x4 - core index']
  #allocation1 [shape = 'u32[144,128]{1,0:T(1,128)}', space=vmem, size = 0x12000, scoped, tag = 'internal scratch']
  %s0 = inlined_call_operand.vmem [shape: f32[2,64,32], index: 0, kind: input, shape index: {}]
  %s1 = inlined_call_operand.vmem [shape: bf16[32,96], index: 1, kind: input, shape index: {}]
  %s2 = inlined_call_operand.vmem [shape: bf16[3,32,32], index: 2, kind: input, shape index: {}]
  %s3 = inlined_call_operand.vmem [shape: f32[1,96], index: 3, kind: input, shape index: {}]
  %s4 = inlined_call_operand.vmem [shape: f32[7,32], index: 4, kind: input, shape index: {}]
  %s5 = inlined_call_operand.vmem [shape: f32[2,64,32], index: 5, kind: output, shape index: {}]
  %s6 = sld [smem:[#allocation0]]
  $region30: #{tpu_custom_call.1} parent=0
    _
  %s8 = ssub.s32 1, %s6
  %s9 = scalar_select 0, %s8, %s6
  // Predicated region
  $region2: #{tpu_custom_call.1} parent=0 // pred_check
    _
  $region3: #{tpu_custom_call.1} parent=0 // pred_check_branch
    %11 = sbr.rel (0) target = $region5
  $region4: #{tpu_custom_call.1} parent=0 // pred_region
    _
  $region5: #{tpu_custom_call.1} parent=0 // pred_fallthru
    _
  // Predicated region
  $region6: #{tpu_custom_call.1} parent=0 // pred_check
    _
  $region7: #{tpu_custom_call.1} parent=0 // pred_check_branch
    %13 = sbr.rel (0) target = $region9
  $region8: #{tpu_custom_call.1} parent=0 // pred_region
    _
  $region9: #{tpu_custom_call.1} parent=0 // pred_fallthru
    _
  // Predicated region
  $region10: #{tpu_custom_call.1} parent=0 // pred_check
    _
  $region11: #{tpu_custom_call.1} parent=0 // pred_check_branch
    %15 = sbr.rel (0) target = $region13
  $region12: #{tpu_custom_call.1} parent=0 // pred_region
    _
  $region13: #{tpu_custom_call.1} parent=0 // pred_fallthru
    _
  // Predicated region
  $region14: #{tpu_custom_call.1} parent=0 // pred_check
    _
  $region15: #{tpu_custom_call.1} parent=0 // pred_check_branch
    %17 = sbr.rel (0) target = $region17
  $region16: #{tpu_custom_call.1} parent=0 // pred_region
    _
  $region17: #{tpu_custom_call.1} parent=0 // pred_fallthru
    _
  // Predicated region
  $region18: #{tpu_custom_call.1} parent=0 // pred_check
    _
  $region19: #{tpu_custom_call.1} parent=0 // pred_check_branch
    %19 = sbr.rel (0) target = $region21
  $region20: #{tpu_custom_call.1} parent=0 // pred_region
    _
  $region21: #{tpu_custom_call.1} parent=0 // pred_fallthru
    _
  %v21 = vld [vmem:[%s0] sm:$0xff]
  %v22 = vld [vmem:[%s0 + $0x8] sm:$0xff]
  %v23 = vld [vmem:[%s0 + $0x10] sm:$0xff]
  %v24 = vld [vmem:[%s0 + $0x18] sm:$0xff]
  %v25 = vld [vmem:[%s0 + $0x20] sm:$0xff]
  %v26 = vld [vmem:[%s0 + $0x28] sm:$0xff]
  %v27 = vld [vmem:[%s0 + $0x30] sm:$0xff]
  %v28 = vld [vmem:[%s0 + $0x38] sm:$0xff]
  %v29 = vld [vmem:[%s0 + $0x40] sm:$0xff]
  %v30 = vld [vmem:[%s0 + $0x48] sm:$0xff]
  %v31 = vld [vmem:[%s0 + $0x50] sm:$0xff]
  %v32 = vld [vmem:[%s0 + $0x58] sm:$0xff]
  %v33 = vld [vmem:[%s0 + $0x60] sm:$0xff]
  %v34 = vld [vmem:[%s0 + $0x68] sm:$0xff]
  %v35 = vld [vmem:[%s0 + $0x70] sm:$0xff]
  %v36 = vld [vmem:[%s0 + $0x78] sm:$0xff]
  %v37 = vld [vmem:[%s4] sm:$0x1]
  %v38 = vld [vmem:[%s4 + $0x1] sm:$0x1]
  %vm39 = vcmask 261120
  %v40 = vsel %vm39, %v21, 0.0
  %41 = vadd.xlane.f32.xlu0 %v40
  %v42 = vpop.xlane.xlu0 %41
  %v43 = vsel %vm39, %v22, 0.0
  %44 = vadd.xlane.f32.xlu0 %v43
  %v45 = vpop.xlane.xlu0 %44
  %v46 = vsel %vm39, %v23, 0.0
  %47 = vadd.xlane.f32.xlu0 %v46
  %v48 = vpop.xlane.xlu0 %47
  %v49 = vsel %vm39, %v24, 0.0
  %50 = vadd.xlane.f32.xlu0 %v49
  %v51 = vpop.xlane.xlu0 %50
  %v52 = vsel %vm39, %v25, 0.0
  %53 = vadd.xlane.f32.xlu0 %v52
  %v54 = vpop.xlane.xlu0 %53
  %v55 = vsel %vm39, %v26, 0.0
  %56 = vadd.xlane.f32.xlu0 %v55
  %v57 = vpop.xlane.xlu0 %56
  %v58 = vsel %vm39, %v27, 0.0
  %59 = vadd.xlane.f32.xlu0 %v58
  %v60 = vpop.xlane.xlu0 %59
  %v61 = vsel %vm39, %v28, 0.0
  %62 = vadd.xlane.f32.xlu0 %v61
  %v63 = vpop.xlane.xlu0 %62
  %v64 = vsel %vm39, %v29, 0.0
  %65 = vadd.xlane.f32.xlu0 %v64
  %v66 = vpop.xlane.xlu0 %65
  %v67 = vsel %vm39, %v30, 0.0
  %68 = vadd.xlane.f32.xlu0 %v67
  %v69 = vpop.xlane.xlu0 %68
  %v70 = vsel %vm39, %v31, 0.0
  %71 = vadd.xlane.f32.xlu0 %v70
  %v72 = vpop.xlane.xlu0 %71
  %v73 = vsel %vm39, %v32, 0.0
  %74 = vadd.xlane.f32.xlu0 %v73
  %v75 = vpop.xlane.xlu0 %74
  %v76 = vsel %vm39, %v33, 0.0
  %77 = vadd.xlane.f32.xlu0 %v76
  %v78 = vpop.xlane.xlu0 %77
  %v79 = vsel %vm39, %v34, 0.0
  %80 = vadd.xlane.f32.xlu0 %v79
  %v81 = vpop.xlane.xlu0 %80
  %v82 = vsel %vm39, %v35, 0.0
  %83 = vadd.xlane.f32.xlu0 %v82
  %v84 = vpop.xlane.xlu0 %83
  %v85 = vsel %vm39, %v36, 0.0
  %86 = vadd.xlane.f32.xlu0 %v85
  %v87 = vpop.xlane.xlu0 %86
  %v88 = vrcp.pop 32.0
  %v89 = vmul.f32 %v42, %v88
  %v90 = vmul.f32 %v45, %v88
  %v91 = vmul.f32 %v48, %v88
  %v92 = vmul.f32 %v51, %v88
  %v93 = vmul.f32 %v54, %v88
  %v94 = vmul.f32 %v57, %v88
  %v95 = vmul.f32 %v60, %v88
  %v96 = vmul.f32 %v63, %v88
  %v97 = vmul.f32 %v66, %v88
  %v98 = vmul.f32 %v69, %v88
  %v99 = vmul.f32 %v72, %v88
  %v100 = vmul.f32 %v75, %v88
  %v101 = vmul.f32 %v78, %v88
  %v102 = vmul.f32 %v81, %v88
  %v103 = vmul.f32 %v84, %v88
  %v104 = vmul.f32 %v87, %v88
  %v105 = vsub.f32 %v21, %v89
  %v106 = vsub.f32 %v22, %v90
  %v107 = vsub.f32 %v23, %v91
  %v108 = vsub.f32 %v24, %v92
  %v109 = vsub.f32 %v25, %v93
  %v110 = vsub.f32 %v26, %v94
  %v111 = vsub.f32 %v27, %v95
  %v112 = vsub.f32 %v28, %v96
  %v113 = vsub.f32 %v29, %v97
  %v114 = vsub.f32 %v30, %v98
  %v115 = vsub.f32 %v31, %v99
  %v116 = vsub.f32 %v32, %v100
  %v117 = vsub.f32 %v33, %v101
  %v118 = vsub.f32 %v34, %v102
  %v119 = vsub.f32 %v35, %v103
  %v120 = vsub.f32 %v36, %v104
  %v121 = vmul.f32 %v105, %v105
  %v122 = vmul.f32 %v106, %v106
  %v123 = vmul.f32 %v107, %v107
  %v124 = vmul.f32 %v108, %v108
  %v125 = vmul.f32 %v109, %v109
  %v126 = vmul.f32 %v110, %v110
  %v127 = vmul.f32 %v111, %v111
  %v128 = vmul.f32 %v112, %v112
  %v129 = vmul.f32 %v113, %v113
  %v130 = vmul.f32 %v114, %v114
  %v131 = vmul.f32 %v115, %v115
  %v132 = vmul.f32 %v116, %v116
  %v133 = vmul.f32 %v117, %v117
  %v134 = vmul.f32 %v118, %v118
  %v135 = vmul.f32 %v119, %v119
  %v136 = vmul.f32 %v120, %v120
  %v137 = vsel %vm39, %v121, 0.0
  %138 = vadd.xlane.f32.xlu0 %v137
  %v139 = vpop.xlane.xlu0 %138
  %v140 = vsel %vm39, %v122, 0.0
  %141 = vadd.xlane.f32.xlu0 %v140
  %v142 = vpop.xlane.xlu0 %141
  %v143 = vsel %vm39, %v123, 0.0
  %144 = vadd.xlane.f32.xlu0 %v143
  %v145 = vpop.xlane.xlu0 %144
  %v146 = vsel %vm39, %v124, 0.0
  %147 = vadd.xlane.f32.xlu0 %v146
  %v148 = vpop.xlane.xlu0 %147
  %v149 = vsel %vm39, %v125, 0.0
  %150 = vadd.xlane.f32.xlu0 %v149
  %v151 = vpop.xlane.xlu0 %150
  %v152 = vsel %vm39, %v126, 0.0
  %153 = vadd.xlane.f32.xlu0 %v152
  %v154 = vpop.xlane.xlu0 %153
  %v155 = vsel %vm39, %v127, 0.0
  %156 = vadd.xlane.f32.xlu0 %v155
  %v157 = vpop.xlane.xlu0 %156
  %v158 = vsel %vm39, %v128, 0.0
  %159 = vadd.xlane.f32.xlu0 %v158
  %v160 = vpop.xlane.xlu0 %159
  %v161 = vsel %vm39, %v129, 0.0
  %162 = vadd.xlane.f32.xlu0 %v161
  %v163 = vpop.xlane.xlu0 %162
  %v164 = vsel %vm39, %v130, 0.0
  %165 = vadd.xlane.f32.xlu0 %v164
  %v166 = vpop.xlane.xlu0 %165
  %v167 = vsel %vm39, %v131, 0.0
  %168 = vadd.xlane.f32.xlu0 %v167
  %v169 = vpop.xlane.xlu0 %168
  %v170 = vsel %vm39, %v132, 0.0
  %171 = vadd.xlane.f32.xlu0 %v170
  %v172 = vpop.xlane.xlu0 %171
  %v173 = vsel %vm39, %v133, 0.0
  %174 = vadd.xlane.f32.xlu0 %v173
  %v175 = vpop.xlane.xlu0 %174
  %v176 = vsel %vm39, %v134, 0.0
  %177 = vadd.xlane.f32.xlu0 %v176
  %v178 = vpop.xlane.xlu0 %177
  %v179 = vsel %vm39, %v135, 0.0
  %180 = vadd.xlane.f32.xlu0 %v179
  %v181 = vpop.xlane.xlu0 %180
  %v182 = vsel %vm39, %v136, 0.0
  %183 = vadd.xlane.f32.xlu0 %v182
  %v184 = vpop.xlane.xlu0 %183
  %v185 = vmul.f32 %v139, %v88
  %v186 = vmul.f32 %v142, %v88
  %v187 = vmul.f32 %v145, %v88
  %v188 = vmul.f32 %v148, %v88
  %v189 = vmul.f32 %v151, %v88
  %v190 = vmul.f32 %v154, %v88
  %v191 = vmul.f32 %v157, %v88
  %v192 = vmul.f32 %v160, %v88
  %v193 = vmul.f32 %v163, %v88
  %v194 = vmul.f32 %v166, %v88
  %v195 = vmul.f32 %v169, %v88
  %v196 = vmul.f32 %v172, %v88
  %v197 = vmul.f32 %v175, %v88
  %v198 = vmul.f32 %v178, %v88
  %v199 = vmul.f32 %v181, %v88
  %v200 = vmul.f32 %v184, %v88
  %v201 = vadd.f32 %v185, 1e-05
  %v202 = vadd.f32 %v186, 1e-05
  %v203 = vadd.f32 %v187, 1e-05
  %v204 = vadd.f32 %v188, 1e-05
  %v205 = vadd.f32 %v189, 1e-05
  %v206 = vadd.f32 %v190, 1e-05
  %v207 = vadd.f32 %v191, 1e-05
  %v208 = vadd.f32 %v192, 1e-05
  %v209 = vadd.f32 %v193, 1e-05
  %v210 = vadd.f32 %v194, 1e-05
  %v211 = vadd.f32 %v195, 1e-05
  %v212 = vadd.f32 %v196, 1e-05
  %v213 = vadd.f32 %v197, 1e-05
  %v214 = vadd.f32 %v198, 1e-05
  %v215 = vadd.f32 %v199, 1e-05
  %v216 = vadd.f32 %v200, 1e-05
  %v217 = vrsqrt.pop %v201
  %v218 = vrsqrt.pop %v202
  %v219 = vrsqrt.pop %v203
  %v220 = vrsqrt.pop %v204
  %v221 = vrsqrt.pop %v205
  %v222 = vrsqrt.pop %v206
  %v223 = vrsqrt.pop %v207
  %v224 = vrsqrt.pop %v208
  %v225 = vrsqrt.pop %v209
  %v226 = vrsqrt.pop %v210
  %v227 = vrsqrt.pop %v211
  %v228 = vrsqrt.pop %v212
  %v229 = vrsqrt.pop %v213
  %v230 = vrsqrt.pop %v214
  %v231 = vrsqrt.pop %v215
  %v232 = vrsqrt.pop %v216
  %v233 = vmul.f32 %v105, %v217
  %v234 = vmul.f32 %v106, %v218
  %v235 = vmul.f32 %v107, %v219
  %v236 = vmul.f32 %v108, %v220
  %v237 = vmul.f32 %v109, %v221
  %v238 = vmul.f32 %v110, %v222
  %v239 = vmul.f32 %v111, %v223
  %v240 = vmul.f32 %v112, %v224
  %v241 = vmul.f32 %v113, %v225
  %v242 = vmul.f32 %v114, %v226
  %v243 = vmul.f32 %v115, %v227
  %v244 = vmul.f32 %v116, %v228
  %v245 = vmul.f32 %v117, %v229
  %v246 = vmul.f32 %v118, %v230
  %v247 = vmul.f32 %v119, %v231
  %v248 = vmul.f32 %v120, %v232
  %v249 = vlaneseq
  %v250 = vshrl.u32 %v249, 7
  %v251 = vsub.s32 0, %v250
  %v252 = vrot.slane %v37, %v251
  %v253 = vmul.f32 %v233, %v252
  %v254 = vmul.f32 %v234, %v252
  %v255 = vmul.f32 %v235, %v252
  %v256 = vmul.f32 %v236, %v252
  %v257 = vmul.f32 %v237, %v252
  %v258 = vmul.f32 %v238, %v252
  %v259 = vmul.f32 %v239, %v252
  %v260 = vmul.f32 %v240, %v252
  %v261 = vmul.f32 %v241, %v252
  %v262 = vmul.f32 %v242, %v252
  %v263 = vmul.f32 %v243, %v252
  %v264 = vmul.f32 %v244, %v252
  %v265 = vmul.f32 %v245, %v252
  %v266 = vmul.f32 %v246, %v252
  %v267 = vmul.f32 %v247, %v252
  %v268 = vmul.f32 %v248, %v252
  %v269 = vlaneseq
  %v270 = vshrl.u32 %v269, 7
  %v271 = vsub.s32 0, %v270
  %v272 = vrot.slane %v38, %v271
  %v273 = vadd.f32 %v253, %v272
  %v274 = vadd.f32 %v254, %v272
  %v275 = vadd.f32 %v255, %v272
  %v276 = vadd.f32 %v256, %v272
  %v277 = vadd.f32 %v257, %v272
  %v278 = vadd.f32 %v258, %v272
  %v279 = vadd.f32 %v259, %v272
  %v280 = vadd.f32 %v260, %v272
  %v281 = vadd.f32 %v261, %v272
  %v282 = vadd.f32 %v262, %v272
  %v283 = vadd.f32 %v263, %v272
  %v284 = vadd.f32 %v264, %v272
  %v285 = vadd.f32 %v265, %v272
  %v286 = vadd.f32 %v266, %v272
  %v287 = vadd.f32 %v267, %v272
  %v288 = vadd.f32 %v268, %v272
  %v289 = vpack.c.bf16 %v274, %v273
  %v290 = vpack.c.bf16 %v276, %v275
  %v291 = vpack.c.bf16 %v278, %v277
  %v292 = vpack.c.bf16 %v280, %v279
  %v293 = vpack.c.bf16 %v282, %v281
  %v294 = vpack.c.bf16 %v284, %v283
  %v295 = vpack.c.bf16 %v286, %v285
  %v296 = vpack.c.bf16 %v288, %v287
  %v297 = vld [vmem:[%s1] sm:$0xf]
  %v298 = vld [vmem:[%s1 + $0x4] sm:$0xf]
  %v299 = vld [vmem:[%s1 + $0x8] sm:$0xf]
  %v300 = vld [vmem:[%s1 + $0xc] sm:$0xf]
  %v301 = vld [vmem:[%s3] sm:$0x1]
  %v303 = vlaneseq
  %v304 = vshrl.u32 %v303, 7
  %v305 = vsub.s32 0, %v304
  %v306 = vrot.slane %v301, %v305
  %v312 = vunpack.c.l.b16 %v297
  %v313 = vunpack.c.l.b16 %v298
  %v314 = vunpack.c.l.b16 %v299
  %v315 = vunpack.c.l.b16 %v300
  %v316 = vpack.c.b16 %v313, %v312
  %v317 = vpack.c.b16 %v315, %v314
  %v321 = vsel %vm39, %v289, 0
  %v324 = vsel %vm39, %v290, 0
  %v327 = vsel %vm39, %v291, 0
  %v330 = vsel %vm39, %v292, 0
  %v333 = vsel %vm39, %v293, 0
  %v336 = vsel %vm39, %v294, 0
  %v339 = vsel %vm39, %v295, 0
  %v342 = vsel %vm39, %v296, 0
  %344 = vmatprep.subr.bf16.mxu0 0
  %345 = vmatpush1.bf16.msra.mxu0 %v316
  %346 = vmatprep.subr.bf16.mxu0 0
  %347 = vmatpush1.bf16.msra.mxu0 %v317
  %348 = vmatprep.subr.bf16.mxu0 0
  %349 = vmatpush1.bf16.msra.mxu0 0
  %350 = vmatprep.subr.bf16.mxu0 0
  %351 = vmatpush1.bf16.msra.mxu0 0
  %352 = vmatprep.subr.bf16.mxu0 0
  %353 = vmatpush1.bf16.msra.mxu0 0
  %354 = vmatprep.subr.bf16.mxu0 0
  %355 = vmatpush1.bf16.msra.mxu0 0
  %356 = vmatprep.subr.bf16.mxu0 0
  %357 = vmatpush1.bf16.msra.mxu0 0
  %358 = vmatprep.subr.bf16.mxu0 0
  %359 = vmatpush1.bf16.msra.mxu0 0
  %360 = vmatprep.subr.bf16.mxu0 0
  %361 = vmatpush1.bf16.msra.mxu0 0
  %362 = vmatprep.subr.bf16.mxu0 0
  %363 = vmatpush1.bf16.msra.mxu0 0
  %364 = vmatprep.subr.bf16.mxu0 0
  %365 = vmatpush1.bf16.msra.mxu0 0
  %366 = vmatprep.subr.bf16.mxu0 0
  %367 = vmatpush1.bf16.msra.mxu0 0
  %368 = vmatprep.subr.bf16.mxu0 0
  %369 = vmatpush1.bf16.msra.mxu0 0
  %370 = vmatprep.subr.bf16.mxu0 0
  %371 = vmatpush1.bf16.msra.mxu0 0
  %372 = vmatprep.subr.bf16.mxu0 0
  %373 = vmatpush1.bf16.msra.mxu0 0
  %374 = vmatprep.subr.bf16.mxu0 0
  %375 = vmatpush1.bf16.msra.mxu0 0
  %376 = vmatprep.mubr.bf16.mxu0 0
  %377 = vmatmul.mubr.bf16.gmra.mrb[0].mxu0 %v321
  %v378 = vpop.f32.mrb[0].mxu0
  %v379 = vadd.f32 %v306, %v378
  %v380 = vpop.f32.mrb[0].mxu0
  %v381 = vpop.f32.mrb[0].mxu0
  %v382 = vadd.f32 %v306, %v381
  %v383 = vpop.f32.mrb[0].mxu0
  %384 = vmatprep.mubr.bf16.mxu0 0
  %385 = vmatmul.mubr.bf16.gmra.mrb[0].mxu0 %v324
  %v386 = vpop.f32.mrb[0].mxu0
  %v387 = vadd.f32 %v306, %v386
  %v388 = vpop.f32.mrb[0].mxu0
  %v389 = vpop.f32.mrb[0].mxu0
  %v390 = vadd.f32 %v306, %v389
  %v391 = vpop.f32.mrb[0].mxu0
  %392 = vmatprep.mubr.bf16.mxu0 0
  %393 = vmatmul.mubr.bf16.gmra.mrb[0].mxu0 %v327
  %v394 = vpop.f32.mrb[0].mxu0
  %v395 = vadd.f32 %v306, %v394
  %v396 = vpop.f32.mrb[0].mxu0
  %v397 = vpop.f32.mrb[0].mxu0
  %v398 = vadd.f32 %v306, %v397
  %v399 = vpop.f32.mrb[0].mxu0
  %400 = vmatprep.mubr.bf16.mxu0 0
  %401 = vmatmul.mubr.bf16.gmra.mrb[0].mxu0 %v330
  %v402 = vpop.f32.mrb[0].mxu0
  %v403 = vadd.f32 %v306, %v402
  %v404 = vpop.f32.mrb[0].mxu0
  %v405 = vpop.f32.mrb[0].mxu0
  %v406 = vadd.f32 %v306, %v405
  %v407 = vpop.f32.mrb[0].mxu0
  %408 = vmatprep.mubr.bf16.mxu0 0
  %409 = vmatmul.mubr.bf16.gmra.mrb[0].mxu0 %v333
  %v410 = vpop.f32.mrb[0].mxu0
  %v411 = vadd.f32 %v306, %v410
  %v412 = vpop.f32.mrb[0].mxu0
  %v413 = vpop.f32.mrb[0].mxu0
  %v414 = vadd.f32 %v306, %v413
  %v415 = vpop.f32.mrb[0].mxu0
  %416 = vmatprep.mubr.bf16.mxu0 0
  %417 = vmatmul.mubr.bf16.gmra.mrb[0].mxu0 %v336
  %v418 = vpop.f32.mrb[0].mxu0
  %v419 = vadd.f32 %v306, %v418
  %v420 = vpop.f32.mrb[0].mxu0
  %v421 = vpop.f32.mrb[0].mxu0
  %v422 = vadd.f32 %v306, %v421
  %v423 = vpop.f32.mrb[0].mxu0
  %424 = vmatprep.mubr.bf16.mxu0 0
  %425 = vmatmul.mubr.bf16.gmra.mrb[0].mxu0 %v339
  %v426 = vpop.f32.mrb[0].mxu0
  %v427 = vadd.f32 %v306, %v426
  %v428 = vpop.f32.mrb[0].mxu0
  %v429 = vpop.f32.mrb[0].mxu0
  %v430 = vadd.f32 %v306, %v429
  %v431 = vpop.f32.mrb[0].mxu0
  %432 = vmatprep.mubr.bf16.mxu0 0
  %433 = vmatmul.mubr.bf16.gmra.mrb[0].mxu0 %v342
  %v434 = vpop.f32.mrb[0].mxu0
  %v435 = vadd.f32 %v306, %v434
  %v436 = vpop.f32.mrb[0].mxu0
  %v437 = vpop.f32.mrb[0].mxu0
  %v438 = vadd.f32 %v306, %v437
  %v439 = vpop.f32.mrb[0].mxu0
  %440 = vdwg.mxu0
  %v441 = vpack.c.bf16 %v382, %v379
  %v442 = vpack.c.bf16 %v390, %v387
  %v443 = vpack.c.bf16 %v398, %v395
  %v444 = vpack.c.bf16 %v406, %v403
  %v445 = vpack.c.bf16 %v414, %v411
  %v446 = vpack.c.bf16 %v422, %v419
  %v447 = vpack.c.bf16 %v430, %v427
  %v448 = vpack.c.bf16 %v438, %v435
  %453 = vrot.lane.b32.xlu0 %v441, 96
  %v454 = vpop.permute.xlu0 %453
  %455 = vrot.lane.b32.xlu0 %v442, 96
  %v456 = vpop.permute.xlu0 %455
  %457 = vrot.lane.b32.xlu0 %v443, 96
  %v458 = vpop.permute.xlu0 %457
  %459 = vrot.lane.b32.xlu0 %v444, 96
  %v460 = vpop.permute.xlu0 %459
  %vm461 = vcmask 64512
  %v463 = vsel %vm461, %v441, 0
  %v466 = vsel %vm461, %v442, 0
  %v469 = vsel %vm461, %v443, 0
  %v472 = vsel %vm461, %v444, 0
  %v475 = vsel %vm461, %v454, 0
  %v478 = vsel %vm461, %v456, 0
  %v481 = vsel %vm461, %v458, 0
  %v484 = vsel %vm461, %v460, 0
  %486 = vmatprep.subr.bf16.mxu0 0
  %487 = vmatpush1.bf16.xpose.msra.mxu0 %v475
  %488 = vmatprep.subr.bf16.mxu0 0
  %489 = vmatpush1.bf16.xpose.msra.mxu0 %v478
  %490 = vmatprep.subr.bf16.mxu0 0
  %491 = vmatpush1.bf16.xpose.msra.mxu0 %v481
  %492 = vmatprep.subr.bf16.mxu0 0
  %493 = vmatpush1.bf16.xpose.msra.mxu0 %v484
  %494 = vmatprep.subr.bf16.mxu0 0
  %495 = vmatpush1.bf16.xpose.msra.mxu0 0
  %496 = vmatprep.subr.bf16.mxu0 0
  %497 = vmatpush1.bf16.xpose.msra.mxu0 0
  %498 = vmatprep.subr.bf16.mxu0 0
  %499 = vmatpush1.bf16.xpose.msra.mxu0 0
  %500 = vmatprep.subr.bf16.mxu0 0
  %501 = vmatpush1.bf16.xpose.msra.mxu0 0
  %502 = vmatprep.subr.bf16.mxu0 0
  %503 = vmatpush1.bf16.xpose.msra.mxu0 0
  %504 = vmatprep.subr.bf16.mxu0 0
  %505 = vmatpush1.bf16.xpose.msra.mxu0 0
  %506 = vmatprep.subr.bf16.mxu0 0
  %507 = vmatpush1.bf16.xpose.msra.mxu0 0
  %508 = vmatprep.subr.bf16.mxu0 0
  %509 = vmatpush1.bf16.xpose.msra.mxu0 0
  %510 = vmatprep.subr.bf16.mxu0 0
  %511 = vmatpush1.bf16.xpose.msra.mxu0 0
  %512 = vmatprep.subr.bf16.mxu0 0
  %513 = vmatpush1.bf16.xpose.msra.mxu0 0
  %514 = vmatprep.subr.bf16.mxu0 0
  %515 = vmatpush1.bf16.xpose.msra.mxu0 0
  %516 = vmatprep.subr.bf16.mxu0 0
  %517 = vmatpush1.bf16.xpose.msra.mxu0 0
  %518 = vmatprep.mubr.bf16.mxu0 0
  %519 = vmatmul.mubr.bf16.gmra.mrb[0].mxu0 %v463
  %v520 = vpop.f32.mrb[0].mxu0
  %v521 = vadd.f32 0.0, %v520
  %v522 = vpop.f32.mrb[0].mxu0
  %v523 = vpop.f32.mrb[0].mxu0
  %v524 = vadd.f32 0.0, %v523
  %v525 = vpop.f32.mrb[0].mxu0
  %526 = vmatprep.mubr.bf16.mxu0 0
  %527 = vmatmul.mubr.bf16.gmra.mrb[0].mxu0 %v466
  %v528 = vpop.f32.mrb[0].mxu0
  %v529 = vadd.f32 0.0, %v528
  %v530 = vpop.f32.mrb[0].mxu0
  %v531 = vpop.f32.mrb[0].mxu0
  %v532 = vadd.f32 0.0, %v531
  %v533 = vpop.f32.mrb[0].mxu0
  %534 = vmatprep.mubr.bf16.mxu0 0
  %535 = vmatmul.mubr.bf16.gmra.mrb[0].mxu0 %v469
  %v536 = vpop.f32.mrb[0].mxu0
  %v537 = vadd.f32 0.0, %v536
  %v538 = vpop.f32.mrb[0].mxu0
  %v539 = vpop.f32.mrb[0].mxu0
  %v540 = vadd.f32 0.0, %v539
  %v541 = vpop.f32.mrb[0].mxu0
  %542 = vmatprep.mubr.bf16.mxu0 0
  %543 = vmatmul.mubr.bf16.gmra.mrb[0].mxu0 %v472
  %v544 = vpop.f32.mrb[0].mxu0
  %v545 = vadd.f32 0.0, %v544
  %v546 = vpop.f32.mrb[0].mxu0
  %v547 = vpop.f32.mrb[0].mxu0
  %v548 = vadd.f32 0.0, %v547
  %v549 = vpop.f32.mrb[0].mxu0
  %550 = vdwg.mxu0
  %555 = vrot.lane.b32.xlu0 %v445, 96
  %v556 = vpop.permute.xlu0 %555
  %557 = vrot.lane.b32.xlu0 %v446, 96
  %v558 = vpop.permute.xlu0 %557
  %559 = vrot.lane.b32.xlu0 %v447, 96
  %v560 = vpop.permute.xlu0 %559
  %561 = vrot.lane.b32.xlu0 %v448, 96
  %v562 = vpop.permute.xlu0 %561
  %v564 = vsel %vm461, %v445, 0
  %v567 = vsel %vm461, %v446, 0
  %v570 = vsel %vm461, %v447, 0
  %v573 = vsel %vm461, %v448, 0
  %v576 = vsel %vm461, %v556, 0
  %v579 = vsel %vm461, %v558, 0
  %v582 = vsel %vm461, %v560, 0
  %v585 = vsel %vm461, %v562, 0
  %587 = vmatprep.subr.bf16.mxu0 0
  %588 = vmatpush1.bf16.xpose.msra.mxu0 %v576
  %589 = vmatprep.subr.bf16.mxu0 0
  %590 = vmatpush1.bf16.xpose.msra.mxu0 %v579
  %591 = vmatprep.subr.bf16.mxu0 0
  %592 = vmatpush1.bf16.xpose.msra.mxu0 %v582
  %593 = vmatprep.subr.bf16.mxu0 0
  %594 = vmatpush1.bf16.xpose.msra.mxu0 %v585
  %595 = vmatprep.subr.bf16.mxu0 0
  %596 = vmatpush1.bf16.xpose.msra.mxu0 0
  %597 = vmatprep.subr.bf16.mxu0 0
  %598 = vmatpush1.bf16.xpose.msra.mxu0 0
  %599 = vmatprep.subr.bf16.mxu0 0
  %600 = vmatpush1.bf16.xpose.msra.mxu0 0
  %601 = vmatprep.subr.bf16.mxu0 0
  %602 = vmatpush1.bf16.xpose.msra.mxu0 0
  %603 = vmatprep.subr.bf16.mxu0 0
  %604 = vmatpush1.bf16.xpose.msra.mxu0 0
  %605 = vmatprep.subr.bf16.mxu0 0
  %606 = vmatpush1.bf16.xpose.msra.mxu0 0
  %607 = vmatprep.subr.bf16.mxu0 0
  %608 = vmatpush1.bf16.xpose.msra.mxu0 0
  %609 = vmatprep.subr.bf16.mxu0 0
  %610 = vmatpush1.bf16.xpose.msra.mxu0 0
  %611 = vmatprep.subr.bf16.mxu0 0
  %612 = vmatpush1.bf16.xpose.msra.mxu0 0
  %613 = vmatprep.subr.bf16.mxu0 0
  %614 = vmatpush1.bf16.xpose.msra.mxu0 0
  %615 = vmatprep.subr.bf16.mxu0 0
  %616 = vmatpush1.bf16.xpose.msra.mxu0 0
  %617 = vmatprep.subr.bf16.mxu0 0
  %618 = vmatpush1.bf16.xpose.msra.mxu0 0
  %619 = vmatprep.mubr.bf16.mxu0 0
  %620 = vmatmul.mubr.bf16.gmra.mrb[0].mxu0 %v564
  %v621 = vpop.f32.mrb[0].mxu0
  %v622 = vadd.f32 0.0, %v621
  %v623 = vpop.f32.mrb[0].mxu0
  %v624 = vpop.f32.mrb[0].mxu0
  %v625 = vadd.f32 0.0, %v624
  %v626 = vpop.f32.mrb[0].mxu0
  %627 = vmatprep.mubr.bf16.mxu0 0
  %628 = vmatmul.mubr.bf16.gmra.mrb[0].mxu0 %v567
  %v629 = vpop.f32.mrb[0].mxu0
  %v630 = vadd.f32 0.0, %v629
  %v631 = vpop.f32.mrb[0].mxu0
  %v632 = vpop.f32.mrb[0].mxu0
  %v633 = vadd.f32 0.0, %v632
  %v634 = vpop.f32.mrb[0].mxu0
  %635 = vmatprep.mubr.bf16.mxu0 0
  %636 = vmatmul.mubr.bf16.gmra.mrb[0].mxu0 %v570
  %v637 = vpop.f32.mrb[0].mxu0
  %v638 = vadd.f32 0.0, %v637
  %v639 = vpop.f32.mrb[0].mxu0
  %v640 = vpop.f32.mrb[0].mxu0
  %v641 = vadd.f32 0.0, %v640
  %v642 = vpop.f32.mrb[0].mxu0
  %643 = vmatprep.mubr.bf16.mxu0 0
  %644 = vmatmul.mubr.bf16.gmra.mrb[0].mxu0 %v573
  %v645 = vpop.f32.mrb[0].mxu0
  %v646 = vadd.f32 0.0, %v645
  %v647 = vpop.f32.mrb[0].mxu0
  %v648 = vpop.f32.mrb[0].mxu0
  %v649 = vadd.f32 0.0, %v648
  %v650 = vpop.f32.mrb[0].mxu0
  %651 = vdwg.mxu0
  %vm652 = vcmask 523264
  %v653 = vsel %vm652, %v521, -inf
  %654 = vmax.xlane.f32.xlu0 %v653
  %v655 = vpop.xlane.xlu0 %654
  %v656 = vsel %vm652, %v524, -inf
  %657 = vmax.xlane.f32.xlu0 %v656
  %v658 = vpop.xlane.xlu0 %657
  %v659 = vsel %vm652, %v529, -inf
  %660 = vmax.xlane.f32.xlu0 %v659
  %v661 = vpop.xlane.xlu0 %660
  %v662 = vsel %vm652, %v532, -inf
  %663 = vmax.xlane.f32.xlu0 %v662
  %v664 = vpop.xlane.xlu0 %663
  %v665 = vsel %vm652, %v537, -inf
  %666 = vmax.xlane.f32.xlu0 %v665
  %v667 = vpop.xlane.xlu0 %666
  %v668 = vsel %vm652, %v540, -inf
  %669 = vmax.xlane.f32.xlu0 %v668
  %v670 = vpop.xlane.xlu0 %669
  %v671 = vsel %vm652, %v545, -inf
  %672 = vmax.xlane.f32.xlu0 %v671
  %v673 = vpop.xlane.xlu0 %672
  %v674 = vsel %vm652, %v548, -inf
  %675 = vmax.xlane.f32.xlu0 %v674
  %v676 = vpop.xlane.xlu0 %675
  %v677 = vsel %vm652, %v622, -inf
  %678 = vmax.xlane.f32.xlu0 %v677
  %v679 = vpop.xlane.xlu0 %678
  %v680 = vsel %vm652, %v625, -inf
  %681 = vmax.xlane.f32.xlu0 %v680
  %v682 = vpop.xlane.xlu0 %681
  %v683 = vsel %vm652, %v630, -inf
  %684 = vmax.xlane.f32.xlu0 %v683
  %v685 = vpop.xlane.xlu0 %684
  %v686 = vsel %vm652, %v633, -inf
  %687 = vmax.xlane.f32.xlu0 %v686
  %v688 = vpop.xlane.xlu0 %687
  %v689 = vsel %vm652, %v638, -inf
  %690 = vmax.xlane.f32.xlu0 %v689
  %v691 = vpop.xlane.xlu0 %690
  %v692 = vsel %vm652, %v641, -inf
  %693 = vmax.xlane.f32.xlu0 %v692
  %v694 = vpop.xlane.xlu0 %693
  %v695 = vsel %vm652, %v646, -inf
  %696 = vmax.xlane.f32.xlu0 %v695
  %v697 = vpop.xlane.xlu0 %696
  %v698 = vsel %vm652, %v649, -inf
  %699 = vmax.xlane.f32.xlu0 %v698
  %v700 = vpop.xlane.xlu0 %699
  %v701 = vsub.f32 %v521, %v655
  %v702 = vsub.f32 %v524, %v658
  %v703 = vsub.f32 %v529, %v661
  %v704 = vsub.f32 %v532, %v664
  %v705 = vsub.f32 %v537, %v667
  %v706 = vsub.f32 %v540, %v670
  %v707 = vsub.f32 %v545, %v673
  %v708 = vsub.f32 %v548, %v676
  %v709 = vsub.f32 %v622, %v679
  %v710 = vsub.f32 %v625, %v682
  %v711 = vsub.f32 %v630, %v685
  %v712 = vsub.f32 %v633, %v688
  %v713 = vsub.f32 %v638, %v691
  %v714 = vsub.f32 %v641, %v694
  %v715 = vsub.f32 %v646, %v697
  %v716 = vsub.f32 %v649, %v700
  %v717 = vmul.f32 %v701, 1.442695
  %v718 = vpow.pop %v717
  %v719 = vmul.f32 %v702, 1.442695
  %v720 = vpow.pop %v719
  %v721 = vmul.f32 %v703, 1.442695
  %v722 = vpow.pop %v721
  %v723 = vmul.f32 %v704, 1.442695
  %v724 = vpow.pop %v723
  %v725 = vmul.f32 %v705, 1.442695
  %v726 = vpow.pop %v725
  %v727 = vmul.f32 %v706, 1.442695
  %v728 = vpow.pop %v727
  %v729 = vmul.f32 %v707, 1.442695
  %v730 = vpow.pop %v729
  %v731 = vmul.f32 %v708, 1.442695
  %v732 = vpow.pop %v731
  %v733 = vmul.f32 %v709, 1.442695
  %v734 = vpow.pop %v733
  %v735 = vmul.f32 %v710, 1.442695
  %v736 = vpow.pop %v735
  %v737 = vmul.f32 %v711, 1.442695
  %v738 = vpow.pop %v737
  %v739 = vmul.f32 %v712, 1.442695
  %v740 = vpow.pop %v739
  %v741 = vmul.f32 %v713, 1.442695
  %v742 = vpow.pop %v741
  %v743 = vmul.f32 %v714, 1.442695
  %v744 = vpow.pop %v743
  %v745 = vmul.f32 %v715, 1.442695
  %v746 = vpow.pop %v745
  %v747 = vmul.f32 %v716, 1.442695
  %v748 = vpow.pop %v747
  %v749 = vsel %vm652, %v718, 0.0
  %750 = vadd.xlane.f32.xlu0 %v749
  %v751 = vpop.xlane.xlu0 %750
  %v752 = vsel %vm652, %v720, 0.0
  %753 = vadd.xlane.f32.xlu0 %v752
  %v754 = vpop.xlane.xlu0 %753
  %v755 = vsel %vm652, %v722, 0.0
  %756 = vadd.xlane.f32.xlu0 %v755
  %v757 = vpop.xlane.xlu0 %756
  %v758 = vsel %vm652, %v724, 0.0
  %759 = vadd.xlane.f32.xlu0 %v758
  %v760 = vpop.xlane.xlu0 %759
  %v761 = vsel %vm652, %v726, 0.0
  %762 = vadd.xlane.f32.xlu0 %v761
  %v763 = vpop.xlane.xlu0 %762
  %v764 = vsel %vm652, %v728, 0.0
  %765 = vadd.xlane.f32.xlu0 %v764
  %v766 = vpop.xlane.xlu0 %765
  %v767 = vsel %vm652, %v730, 0.0
  %768 = vadd.xlane.f32.xlu0 %v767
  %v769 = vpop.xlane.xlu0 %768
  %v770 = vsel %vm652, %v732, 0.0
  %771 = vadd.xlane.f32.xlu0 %v770
  %v772 = vpop.xlane.xlu0 %771
  %v773 = vsel %vm652, %v734, 0.0
  %774 = vadd.xlane.f32.xlu0 %v773
  %v775 = vpop.xlane.xlu0 %774
  %v776 = vsel %vm652, %v736, 0.0
  %777 = vadd.xlane.f32.xlu0 %v776
  %v778 = vpop.xlane.xlu0 %777
  %v779 = vsel %vm652, %v738, 0.0
  %780 = vadd.xlane.f32.xlu0 %v779
  %v781 = vpop.xlane.xlu0 %780
  %v782 = vsel %vm652, %v740, 0.0
  %783 = vadd.xlane.f32.xlu0 %v782
  %v784 = vpop.xlane.xlu0 %783
  %v785 = vsel %vm652, %v742, 0.0
  %786 = vadd.xlane.f32.xlu0 %v785
  %v787 = vpop.xlane.xlu0 %786
  %v788 = vsel %vm652, %v744, 0.0
  %789 = vadd.xlane.f32.xlu0 %v788
  %v790 = vpop.xlane.xlu0 %789
  %v791 = vsel %vm652, %v746, 0.0
  %792 = vadd.xlane.f32.xlu0 %v791
  %v793 = vpop.xlane.xlu0 %792
  %v794 = vsel %vm652, %v748, 0.0
  %795 = vadd.xlane.f32.xlu0 %v794
  %v796 = vpop.xlane.xlu0 %795
  %v797 = vpack.c.bf16 %v720, %v718
  %v798 = vpack.c.bf16 %v724, %v722
  %v799 = vpack.c.bf16 %v728, %v726
  %v800 = vpack.c.bf16 %v732, %v730
  %v801 = vpack.c.bf16 %v736, %v734
  %v802 = vpack.c.bf16 %v740, %v738
  %v803 = vpack.c.bf16 %v744, %v742
  %v804 = vpack.c.bf16 %v748, %v746
  %805 = vrot.lane.b32.xlu0 %v441, 64
  %v806 = vpop.permute.xlu0 %805
  %807 = vrot.lane.b32.xlu0 %v442, 64
  %v808 = vpop.permute.xlu0 %807
  %809 = vrot.lane.b32.xlu0 %v443, 64
  %v810 = vpop.permute.xlu0 %809
  %811 = vrot.lane.b32.xlu0 %v444, 64
  %v812 = vpop.permute.xlu0 %811
  %v818 = vsel %vm652, %v797, 0
  %v821 = vsel %vm652, %v798, 0
  %v824 = vsel %vm652, %v799, 0
  %v827 = vsel %vm652, %v800, 0
  %829 = vmatprep.subr.bf16.mxu0 0
  %830 = vmatpush1.bf16.msra.mxu0 %v806
  %831 = vmatprep.subr.bf16.mxu0 0
  %832 = vmatpush1.bf16.msra.mxu0 %v808
  %833 = vmatprep.subr.bf16.mxu0 0
  %834 = vmatpush1.bf16.msra.mxu0 %v810
  %835 = vmatprep.subr.bf16.mxu0 0
  %836 = vmatpush1.bf16.msra.mxu0 %v812
  %837 = vmatprep.subr.bf16.mxu0 0
  %838 = vmatpush1.bf16.msra.mxu0 0
  %839 = vmatprep.subr.bf16.mxu0 0
  %840 = vmatpush1.bf16.msra.mxu0 0
  %841 = vmatprep.subr.bf16.mxu0 0
  %842 = vmatpush1.bf16.msra.mxu0 0
  %843 = vmatprep.subr.bf16.mxu0 0
  %844 = vmatpush1.bf16.msra.mxu0 0
  %845 = vmatprep.subr.bf16.mxu0 0
  %846 = vmatpush1.bf16.msra.mxu0 0
  %847 = vmatprep.subr.bf16.mxu0 0
  %848 = vmatpush1.bf16.msra.mxu0 0
  %849 = vmatprep.subr.bf16.mxu0 0
  %850 = vmatpush1.bf16.msra.mxu0 0
  %851 = vmatprep.subr.bf16.mxu0 0
  %852 = vmatpush1.bf16.msra.mxu0 0
  %853 = vmatprep.subr.bf16.mxu0 0
  %854 = vmatpush1.bf16.msra.mxu0 0
  %855 = vmatprep.subr.bf16.mxu0 0
  %856 = vmatpush1.bf16.msra.mxu0 0
  %857 = vmatprep.subr.bf16.mxu0 0
  %858 = vmatpush1.bf16.msra.mxu0 0
  %859 = vmatprep.subr.bf16.mxu0 0
  %860 = vmatpush1.bf16.msra.mxu0 0
  %861 = vmatprep.mubr.bf16.mxu0 0
  %862 = vmatmul.mubr.bf16.gmra.mrb[0].mxu0 %v818
  %v863 = vpop.f32.mrb[0].mxu0
  %v864 = vadd.f32 0.0, %v863
  %v865 = vpop.f32.mrb[0].mxu0
  %v866 = vpop.f32.mrb[0].mxu0
  %v867 = vadd.f32 0.0, %v866
  %v868 = vpop.f32.mrb[0].mxu0
  %869 = vmatprep.mubr.bf16.mxu0 0
  %870 = vmatmul.mubr.bf16.gmra.mrb[0].mxu0 %v821
  %v871 = vpop.f32.mrb[0].mxu0
  %v872 = vadd.f32 0.0, %v871
  %v873 = vpop.f32.mrb[0].mxu0
  %v874 = vpop.f32.mrb[0].mxu0
  %v875 = vadd.f32 0.0, %v874
  %v876 = vpop.f32.mrb[0].mxu0
  %877 = vmatprep.mubr.bf16.mxu0 0
  %878 = vmatmul.mubr.bf16.gmra.mrb[0].mxu0 %v824
  %v879 = vpop.f32.mrb[0].mxu0
  %v880 = vadd.f32 0.0, %v879
  %v881 = vpop.f32.mrb[0].mxu0
  %v882 = vpop.f32.mrb[0].mxu0
  %v883 = vadd.f32 0.0, %v882
  %v884 = vpop.f32.mrb[0].mxu0
  %885 = vmatprep.mubr.bf16.mxu0 0
  %886 = vmatmul.mubr.bf16.gmra.mrb[0].mxu0 %v827
  %v887 = vpop.f32.mrb[0].mxu0
  %v888 = vadd.f32 0.0, %v887
  %v889 = vpop.f32.mrb[0].mxu0
  %v890 = vpop.f32.mrb[0].mxu0
  %v891 = vadd.f32 0.0, %v890
  %v892 = vpop.f32.mrb[0].mxu0
  %893 = vdwg.mxu0
  %894 = vrot.lane.b32.xlu0 %v445, 64
  %v895 = vpop.permute.xlu0 %894
  %896 = vrot.lane.b32.xlu0 %v446, 64
  %v897 = vpop.permute.xlu0 %896
  %898 = vrot.lane.b32.xlu0 %v447, 64
  %v899 = vpop.permute.xlu0 %898
  %900 = vrot.lane.b32.xlu0 %v448, 64
  %v901 = vpop.permute.xlu0 %900
  %v907 = vsel %vm652, %v801, 0
  %v910 = vsel %vm652, %v802, 0
  %v913 = vsel %vm652, %v803, 0
  %v916 = vsel %vm652, %v804, 0
  %918 = vmatprep.subr.bf16.mxu0 0
  %919 = vmatpush1.bf16.msra.mxu0 %v895
  %920 = vmatprep.subr.bf16.mxu0 0
  %921 = vmatpush1.bf16.msra.mxu0 %v897
  %922 = vmatprep.subr.bf16.mxu0 0
  %923 = vmatpush1.bf16.msra.mxu0 %v899
  %924 = vmatprep.subr.bf16.mxu0 0
  %925 = vmatpush1.bf16.msra.mxu0 %v901
  %926 = vmatprep.subr.bf16.mxu0 0
  %927 = vmatpush1.bf16.msra.mxu0 0
  %928 = vmatprep.subr.bf16.mxu0 0
  %929 = vmatpush1.bf16.msra.mxu0 0
  %930 = vmatprep.subr.bf16.mxu0 0
  %931 = vmatpush1.bf16.msra.mxu0 0
  %932 = vmatprep.subr.bf16.mxu0 0
  %933 = vmatpush1.bf16.msra.mxu0 0
  %934 = vmatprep.subr.bf16.mxu0 0
  %935 = vmatpush1.bf16.msra.mxu0 0
  %936 = vmatprep.subr.bf16.mxu0 0
  %937 = vmatpush1.bf16.msra.mxu0 0
  %938 = vmatprep.subr.bf16.mxu0 0
  %939 = vmatpush1.bf16.msra.mxu0 0
  %940 = vmatprep.subr.bf16.mxu0 0
  %941 = vmatpush1.bf16.msra.mxu0 0
  %942 = vmatprep.subr.bf16.mxu0 0
  %943 = vmatpush1.bf16.msra.mxu0 0
  %944 = vmatprep.subr.bf16.mxu0 0
  %945 = vmatpush1.bf16.msra.mxu0 0
  %946 = vmatprep.subr.bf16.mxu0 0
  %947 = vmatpush1.bf16.msra.mxu0 0
  %948 = vmatprep.subr.bf16.mxu0 0
  %949 = vmatpush1.bf16.msra.mxu0 0
  %950 = vmatprep.mubr.bf16.mxu0 0
  %951 = vmatmul.mubr.bf16.gmra.mrb[0].mxu0 %v907
  %v952 = vpop.f32.mrb[0].mxu0
  %v953 = vadd.f32 0.0, %v952
  %v954 = vpop.f32.mrb[0].mxu0
  %v955 = vpop.f32.mrb[0].mxu0
  %v956 = vadd.f32 0.0, %v955
  %v957 = vpop.f32.mrb[0].mxu0
  %958 = vmatprep.mubr.bf16.mxu0 0
  %959 = vmatmul.mubr.bf16.gmra.mrb[0].mxu0 %v910
  %v960 = vpop.f32.mrb[0].mxu0
  %v961 = vadd.f32 0.0, %v960
  %v962 = vpop.f32.mrb[0].mxu0
  %v963 = vpop.f32.mrb[0].mxu0
  %v964 = vadd.f32 0.0, %v963
  %v965 = vpop.f32.mrb[0].mxu0
  %966 = vmatprep.mubr.bf16.mxu0 0
  %967 = vmatmul.mubr.bf16.gmra.mrb[0].mxu0 %v913
  %v968 = vpop.f32.mrb[0].mxu0
  %v969 = vadd.f32 0.0, %v968
  %v970 = vpop.f32.mrb[0].mxu0
  %v971 = vpop.f32.mrb[0].mxu0
  %v972 = vadd.f32 0.0, %v971
  %v973 = vpop.f32.mrb[0].mxu0
  %974 = vmatprep.mubr.bf16.mxu0 0
  %975 = vmatmul.mubr.bf16.gmra.mrb[0].mxu0 %v916
  %v976 = vpop.f32.mrb[0].mxu0
  %v977 = vadd.f32 0.0, %v976
  %v978 = vpop.f32.mrb[0].mxu0
  %v979 = vpop.f32.mrb[0].mxu0
  %v980 = vadd.f32 0.0, %v979
  %v981 = vpop.f32.mrb[0].mxu0
  %982 = vdwg.mxu0
  %v983 = vrcp.pop %v751
  %v984 = vrcp.pop %v754
  %v985 = vrcp.pop %v757
  %v986 = vrcp.pop %v760
  %v987 = vrcp.pop %v763
  %v988 = vrcp.pop %v766
  %v989 = vrcp.pop %v769
  %v990 = vrcp.pop %v772
  %v991 = vrcp.pop %v775
  %v992 = vrcp.pop %v778
  %v993 = vrcp.pop %v781
  %v994 = vrcp.pop %v784
  %v995 = vrcp.pop %v787
  %v996 = vrcp.pop %v790
  %v997 = vrcp.pop %v793
  %v998 = vrcp.pop %v796
  %v999 = vmul.f32 %v864, %v983
  %v1000 = vmul.f32 %v867, %v984
  %v1001 = vmul.f32 %v872, %v985
  %v1002 = vmul.f32 %v875, %v986
  %v1003 = vmul.f32 %v880, %v987
  %v1004 = vmul.f32 %v883, %v988
  %v1005 = vmul.f32 %v888, %v989
  %v1006 = vmul.f32 %v891, %v990
  %v1007 = vmul.f32 %v953, %v991
  %v1008 = vmul.f32 %v956, %v992
  %v1009 = vmul.f32 %v961, %v993
  %v1010 = vmul.f32 %v964, %v994
  %v1011 = vmul.f32 %v969, %v995
  %v1012 = vmul.f32 %v972, %v996
  %v1013 = vmul.f32 %v977, %v997
  %v1014 = vmul.f32 %v980, %v998
  %1015 = vrot.lane.b32.xlu0 %v441, 120
  %v1016 = vpop.permute.xlu0 %1015
  %1017 = vrot.lane.b32.xlu0 %v442, 120
  %v1018 = vpop.permute.xlu0 %1017
  %1019 = vrot.lane.b32.xlu0 %v443, 120
  %v1020 = vpop.permute.xlu0 %1019
  %1021 = vrot.lane.b32.xlu0 %v444, 120
  %v1022 = vpop.permute.xlu0 %1021
  %1023 = vrot.lane.b32.xlu0 %v441, 88
  %v1024 = vpop.permute.xlu0 %1023
  %1025 = vrot.lane.b32.xlu0 %v442, 88
  %v1026 = vpop.permute.xlu0 %1025
  %1027 = vrot.lane.b32.xlu0 %v443, 88
  %v1028 = vpop.permute.xlu0 %1027
  %1029 = vrot.lane.b32.xlu0 %v444, 88
  %v1030 = vpop.permute.xlu0 %1029
  %v1032 = vsel %vm461, %v1016, 0
  %v1035 = vsel %vm461, %v1018, 0
  %v1038 = vsel %vm461, %v1020, 0
  %v1041 = vsel %vm461, %v1022, 0
  %v1044 = vsel %vm461, %v1024, 0
  %v1047 = vsel %vm461, %v1026, 0
  %v1050 = vsel %vm461, %v1028, 0
  %v1053 = vsel %vm461, %v1030, 0
  %1055 = vmatprep.subr.bf16.mxu0 0
  %1056 = vmatpush1.bf16.xpose.msra.mxu0 %v1044
  %1057 = vmatprep.subr.bf16.mxu0 0
  %1058 = vmatpush1.bf16.xpose.msra.mxu0 %v1047
  %1059 = vmatprep.subr.bf16.mxu0 0
  %1060 = vmatpush1.bf16.xpose.msra.mxu0 %v1050
  %1061 = vmatprep.subr.bf16.mxu0 0
  %1062 = vmatpush1.bf16.xpose.msra.mxu0 %v1053
  %1063 = vmatprep.subr.bf16.mxu0 0
  %1064 = vmatpush1.bf16.xpose.msra.mxu0 0
  %1065 = vmatprep.subr.bf16.mxu0 0
  %1066 = vmatpush1.bf16.xpose.msra.mxu0 0
  %1067 = vmatprep.subr.bf16.mxu0 0
  %1068 = vmatpush1.bf16.xpose.msra.mxu0 0
  %1069 = vmatprep.subr.bf16.mxu0 0
  %1070 = vmatpush1.bf16.xpose.msra.mxu0 0
  %1071 = vmatprep.subr.bf16.mxu0 0
  %1072 = vmatpush1.bf16.xpose.msra.mxu0 0
  %1073 = vmatprep.subr.bf16.mxu0 0
  %1074 = vmatpush1.bf16.xpose.msra.mxu0 0
  %1075 = vmatprep.subr.bf16.mxu0 0
  %1076 = vmatpush1.bf16.xpose.msra.mxu0 0
  %1077 = vmatprep.subr.bf16.mxu0 0
  %1078 = vmatpush1.bf16.xpose.msra.mxu0 0
  %1079 = vmatprep.subr.bf16.mxu0 0
  %1080 = vmatpush1.bf16.xpose.msra.mxu0 0
  %1081 = vmatprep.subr.bf16.mxu0 0
  %1082 = vmatpush1.bf16.xpose.msra.mxu0 0
  %1083 = vmatprep.subr.bf16.mxu0 0
  %1084 = vmatpush1.bf16.xpose.msra.mxu0 0
  %1085 = vmatprep.subr.bf16.mxu0 0
  %1086 = vmatpush1.bf16.xpose.msra.mxu0 0
  %1087 = vmatprep.mubr.bf16.mxu0 0
  %1088 = vmatmul.mubr.bf16.gmra.mrb[0].mxu0 %v1032
  %v1089 = vpop.f32.mrb[0].mxu0
  %v1090 = vadd.f32 0.0, %v1089
  %v1091 = vpop.f32.mrb[0].mxu0
  %v1092 = vpop.f32.mrb[0].mxu0
  %v1093 = vadd.f32 0.0, %v1092
  %v1094 = vpop.f32.mrb[0].mxu0
  %1095 = vmatprep.mubr.bf16.mxu0 0
  %1096 = vmatmul.mubr.bf16.gmra.mrb[0].mxu0 %v1035
  %v1097 = vpop.f32.mrb[0].mxu0
  %v1098 = vadd.f32 0.0, %v1097
  %v1099 = vpop.f32.mrb[0].mxu0
  %v1100 = vpop.f32.mrb[0].mxu0
  %v1101 = vadd.f32 0.0, %v1100
  %v1102 = vpop.f32.mrb[0].mxu0
  %1103 = vmatprep.mubr.bf16.mxu0 0
  %1104 = vmatmul.mubr.bf16.gmra.mrb[0].mxu0 %v1038
  %v1105 = vpop.f32.mrb[0].mxu0
  %v1106 = vadd.f32 0.0, %v1105
  %v1107 = vpop.f32.mrb[0].mxu0
  %v1108 = vpop.f32.mrb[0].mxu0
  %v1109 = vadd.f32 0.0, %v1108
  %v1110 = vpop.f32.mrb[0].mxu0
  %1111 = vmatprep.mubr.bf16.mxu0 0
  %1112 = vmatmul.mubr.bf16.gmra.mrb[0].mxu0 %v1041
  %v1113 = vpop.f32.mrb[0].mxu0
  %v1114 = vadd.f32 0.0, %v1113
  %v1115 = vpop.f32.mrb[0].mxu0
  %v1116 = vpop.f32.mrb[0].mxu0
  %v1117 = vadd.f32 0.0, %v1116
  %v1118 = vpop.f32.mrb[0].mxu0
  %1119 = vdwg.mxu0
  %1120 = vrot.lane.b32.xlu0 %v445, 120
  %v1121 = vpop.permute.xlu0 %1120
  %1122 = vrot.lane.b32.xlu0 %v446, 120
  %v1123 = vpop.permute.xlu0 %1122
  %1124 = vrot.lane.b32.xlu0 %v447, 120
  %v1125 = vpop.permute.xlu0 %1124
  %1126 = vrot.lane.b32.xlu0 %v448, 120
  %v1127 = vpop.permute.xlu0 %1126
  %1128 = vrot.lane.b32.xlu0 %v445, 88
  %v1129 = vpop.permute.xlu0 %1128
  %1130 = vrot.lane.b32.xlu0 %v446, 88
  %v1131 = vpop.permute.xlu0 %1130
  %1132 = vrot.lane.b32.xlu0 %v447, 88
  %v1133 = vpop.permute.xlu0 %1132
  %1134 = vrot.lane.b32.xlu0 %v448, 88
  %v1135 = vpop.permute.xlu0 %1134
  %v1137 = vsel %vm461, %v1121, 0
  %v1140 = vsel %vm461, %v1123, 0
  %v1143 = vsel %vm461, %v1125, 0
  %v1146 = vsel %vm461, %v1127, 0
  %v1149 = vsel %vm461, %v1129, 0
  %v1152 = vsel %vm461, %v1131, 0
  %v1155 = vsel %vm461, %v1133, 0
  %v1158 = vsel %vm461, %v1135, 0
  %1160 = vmatprep.subr.bf16.mxu0 0
  %1161 = vmatpush1.bf16.xpose.msra.mxu0 %v1149
  %1162 = vmatprep.subr.bf16.mxu0 0
  %1163 = vmatpush1.bf16.xpose.msra.mxu0 %v1152
  %1164 = vmatprep.subr.bf16.mxu0 0
  %1165 = vmatpush1.bf16.xpose.msra.mxu0 %v1155
  %1166 = vmatprep.subr.bf16.mxu0 0
  %1167 = vmatpush1.bf16.xpose.msra.mxu0 %v1158
  %1168 = vmatprep.subr.bf16.mxu0 0
  %1169 = vmatpush1.bf16.xpose.msra.mxu0 0
  %1170 = vmatprep.subr.bf16.mxu0 0
  %1171 = vmatpush1.bf16.xpose.msra.mxu0 0
  %1172 = vmatprep.subr.bf16.mxu0 0
  %1173 = vmatpush1.bf16.xpose.msra.mxu0 0
  %1174 = vmatprep.subr.bf16.mxu0 0
  %1175 = vmatpush1.bf16.xpose.msra.mxu0 0
  %1176 = vmatprep.subr.bf16.mxu0 0
  %1177 = vmatpush1.bf16.xpose.msra.mxu0 0
  %1178 = vmatprep.subr.bf16.mxu0 0
  %1179 = vmatpush1.bf16.xpose.msra.mxu0 0
  %1180 = vmatprep.subr.bf16.mxu0 0
  %1181 = vmatpush1.bf16.xpose.msra.mxu0 0
  %1182 = vmatprep.subr.bf16.mxu0 0
  %1183 = vmatpush1.bf16.xpose.msra.mxu0 0
  %1184 = vmatprep.subr.bf16.mxu0 0
  %1185 = vmatpush1.bf16.xpose.msra.mxu0 0
  %1186 = vmatprep.subr.bf16.mxu0 0
  %1187 = vmatpush1.bf16.xpose.msra.mxu0 0
  %1188 = vmatprep.subr.bf16.mxu0 0
  %1189 = vmatpush1.bf16.xpose.msra.mxu0 0
  %1190 = vmatprep.subr.bf16.mxu0 0
  %1191 = vmatpush1.bf16.xpose.msra.mxu0 0
  %1192 = vmatprep.mubr.bf16.mxu0 0
  %1193 = vmatmul.mubr.bf16.gmra.mrb[0].mxu0 %v1137
  %v1194 = vpop.f32.mrb[0].mxu0
  %v1195 = vadd.f32 0.0, %v1194
  %v1196 = vpop.f32.mrb[0].mxu0
  %v1197 = vpop.f32.mrb[0].mxu0
  %v1198 = vadd.f32 0.0, %v1197
  %v1199 = vpop.f32.mrb[0].mxu0
  %1200 = vmatprep.mubr.bf16.mxu0 0
  %1201 = vmatmul.mubr.bf16.gmra.mrb[0].mxu0 %v1140
  %v1202 = vpop.f32.mrb[0].mxu0
  %v1203 = vadd.f32 0.0, %v1202
  %v1204 = vpop.f32.mrb[0].mxu0
  %v1205 = vpop.f32.mrb[0].mxu0
  %v1206 = vadd.f32 0.0, %v1205
  %v1207 = vpop.f32.mrb[0].mxu0
  %1208 = vmatprep.mubr.bf16.mxu0 0
  %1209 = vmatmul.mubr.bf16.gmra.mrb[0].mxu0 %v1143
  %v1210 = vpop.f32.mrb[0].mxu0
  %v1211 = vadd.f32 0.0, %v1210
  %v1212 = vpop.f32.mrb[0].mxu0
  %v1213 = vpop.f32.mrb[0].mxu0
  %v1214 = vadd.f32 0.0, %v1213
  %v1215 = vpop.f32.mrb[0].mxu0
  %1216 = vmatprep.mubr.bf16.mxu0 0
  %1217 = vmatmul.mubr.bf16.gmra.mrb[0].mxu0 %v1146
  %v1218 = vpop.f32.mrb[0].mxu0
  %v1219 = vadd.f32 0.0, %v1218
  %v1220 = vpop.f32.mrb[0].mxu0
  %v1221 = vpop.f32.mrb[0].mxu0
  %v1222 = vadd.f32 0.0, %v1221
  %v1223 = vpop.f32.mrb[0].mxu0
  %1224 = vdwg.mxu0
  %v1225 = vsel %vm652, %v1090, -inf
  %1226 = vmax.xlane.f32.xlu0 %v1225
  %v1227 = vpop.xlane.xlu0 %1226
  %v1228 = vsel %vm652, %v1093, -inf
  %1229 = vmax.xlane.f32.xlu0 %v1228
  %v1230 = vpop.xlane.xlu0 %1229
  %v1231 = vsel %vm652, %v1098, -inf
  %1232 = vmax.xlane.f32.xlu0 %v1231
  %v1233 = vpop.xlane.xlu0 %1232
  %v1234 = vsel %vm652, %v1101, -inf
  %1235 = vmax.xlane.f32.xlu0 %v1234
  %v1236 = vpop.xlane.xlu0 %1235
  %v1237 = vsel %vm652, %v1106, -inf
  %1238 = vmax.xlane.f32.xlu0 %v1237
  %v1239 = vpop.xlane.xlu0 %1238
  %v1240 = vsel %vm652, %v1109, -inf
  %1241 = vmax.xlane.f32.xlu0 %v1240
  %v1242 = vpop.xlane.xlu0 %1241
  %v1243 = vsel %vm652, %v1114, -inf
  %1244 = vmax.xlane.f32.xlu0 %v1243
  %v1245 = vpop.xlane.xlu0 %1244
  %v1246 = vsel %vm652, %v1117, -inf
  %1247 = vmax.xlane.f32.xlu0 %v1246
  %v1248 = vpop.xlane.xlu0 %1247
  %v1249 = vsel %vm652, %v1195, -inf
  %1250 = vmax.xlane.f32.xlu0 %v1249
  %v1251 = vpop.xlane.xlu0 %1250
  %v1252 = vsel %vm652, %v1198, -inf
  %1253 = vmax.xlane.f32.xlu0 %v1252
  %v1254 = vpop.xlane.xlu0 %1253
  %v1255 = vsel %vm652, %v1203, -inf
  %1256 = vmax.xlane.f32.xlu0 %v1255
  %v1257 = vpop.xlane.xlu0 %1256
  %v1258 = vsel %vm652, %v1206, -inf
  %1259 = vmax.xlane.f32.xlu0 %v1258
  %v1260 = vpop.xlane.xlu0 %1259
  %v1261 = vsel %vm652, %v1211, -inf
  %1262 = vmax.xlane.f32.xlu0 %v1261
  %v1263 = vpop.xlane.xlu0 %1262
  %v1264 = vsel %vm652, %v1214, -inf
  %1265 = vmax.xlane.f32.xlu0 %v1264
  %v1266 = vpop.xlane.xlu0 %1265
  %v1267 = vsel %vm652, %v1219, -inf
  %1268 = vmax.xlane.f32.xlu0 %v1267
  %v1269 = vpop.xlane.xlu0 %1268
  %v1270 = vsel %vm652, %v1222, -inf
  %1271 = vmax.xlane.f32.xlu0 %v1270
  %v1272 = vpop.xlane.xlu0 %1271
  %v1273 = vsub.f32 %v1090, %v1227
  %v1274 = vsub.f32 %v1093, %v1230
  %v1275 = vsub.f32 %v1098, %v1233
  %v1276 = vsub.f32 %v1101, %v1236
  %v1277 = vsub.f32 %v1106, %v1239
  %v1278 = vsub.f32 %v1109, %v1242
  %v1279 = vsub.f32 %v1114, %v1245
  %v1280 = vsub.f32 %v1117, %v1248
  %v1281 = vsub.f32 %v1195, %v1251
  %v1282 = vsub.f32 %v1198, %v1254
  %v1283 = vsub.f32 %v1203, %v1257
  %v1284 = vsub.f32 %v1206, %v1260
  %v1285 = vsub.f32 %v1211, %v1263
  %v1286 = vsub.f32 %v1214, %v1266
  %v1287 = vsub.f32 %v1219, %v1269
  %v1288 = vsub.f32 %v1222, %v1272
  %v1289 = vmul.f32 %v1273, 1.442695
  %v1290 = vpow.pop %v1289
  %v1291 = vmul.f32 %v1274, 1.442695
  %v1292 = vpow.pop %v1291
  %v1293 = vmul.f32 %v1275, 1.442695
  %v1294 = vpow.pop %v1293
  %v1295 = vmul.f32 %v1276, 1.442695
  %v1296 = vpow.pop %v1295
  %v1297 = vmul.f32 %v1277, 1.442695
  %v1298 = vpow.pop %v1297
  %v1299 = vmul.f32 %v1278, 1.442695
  %v1300 = vpow.pop %v1299
  %v1301 = vmul.f32 %v1279, 1.442695
  %v1302 = vpow.pop %v1301
  %v1303 = vmul.f32 %v1280, 1.442695
  %v1304 = vpow.pop %v1303
  %v1305 = vmul.f32 %v1281, 1.442695
  %v1306 = vpow.pop %v1305
  %v1307 = vmul.f32 %v1282, 1.442695
  %v1308 = vpow.pop %v1307
  %v1309 = vmul.f32 %v1283, 1.442695
  %v1310 = vpow.pop %v1309
  %v1311 = vmul.f32 %v1284, 1.442695
  %v1312 = vpow.pop %v1311
  %v1313 = vmul.f32 %v1285, 1.442695
  %v1314 = vpow.pop %v1313
  %v1315 = vmul.f32 %v1286, 1.442695
  %v1316 = vpow.pop %v1315
  %v1317 = vmul.f32 %v1287, 1.442695
  %v1318 = vpow.pop %v1317
  %v1319 = vmul.f32 %v1288, 1.442695
  %v1320 = vpow.pop %v1319
  %v1321 = vsel %vm652, %v1290, 0.0
  %1322 = vadd.xlane.f32.xlu0 %v1321
  %v1323 = vpop.xlane.xlu0 %1322
  %v1324 = vsel %vm652, %v1292, 0.0
  %1325 = vadd.xlane.f32.xlu0 %v1324
  %v1326 = vpop.xlane.xlu0 %1325
  %v1327 = vsel %vm652, %v1294, 0.0
  %1328 = vadd.xlane.f32.xlu0 %v1327
  %v1329 = vpop.xlane.xlu0 %1328
  %v1330 = vsel %vm652, %v1296, 0.0
  %1331 = vadd.xlane.f32.xlu0 %v1330
  %v1332 = vpop.xlane.xlu0 %1331
  %v1333 = vsel %vm652, %v1298, 0.0
  %1334 = vadd.xlane.f32.xlu0 %v1333
  %v1335 = vpop.xlane.xlu0 %1334
  %v1336 = vsel %vm652, %v1300, 0.0
  %1337 = vadd.xlane.f32.xlu0 %v1336
  %v1338 = vpop.xlane.xlu0 %1337
  %v1339 = vsel %vm652, %v1302, 0.0
  %1340 = vadd.xlane.f32.xlu0 %v1339
  %v1341 = vpop.xlane.xlu0 %1340
  %v1342 = vsel %vm652, %v1304, 0.0
  %1343 = vadd.xlane.f32.xlu0 %v1342
  %v1344 = vpop.xlane.xlu0 %1343
  %v1345 = vsel %vm652, %v1306, 0.0
  %1346 = vadd.xlane.f32.xlu0 %v1345
  %v1347 = vpop.xlane.xlu0 %1346
  %v1348 = vsel %vm652, %v1308, 0.0
  %1349 = vadd.xlane.f32.xlu0 %v1348
  %v1350 = vpop.xlane.xlu0 %1349
  %v1351 = vsel %vm652, %v1310, 0.0
  %1352 = vadd.xlane.f32.xlu0 %v1351
  %v1353 = vpop.xlane.xlu0 %1352
  %v1354 = vsel %vm652, %v1312, 0.0
  %1355 = vadd.xlane.f32.xlu0 %v1354
  %v1356 = vpop.xlane.xlu0 %1355
  %v1357 = vsel %vm652, %v1314, 0.0
  %1358 = vadd.xlane.f32.xlu0 %v1357
  %v1359 = vpop.xlane.xlu0 %1358
  %v1360 = vsel %vm652, %v1316, 0.0
  %1361 = vadd.xlane.f32.xlu0 %v1360
  %v1362 = vpop.xlane.xlu0 %1361
  %v1363 = vsel %vm652, %v1318, 0.0
  %1364 = vadd.xlane.f32.xlu0 %v1363
  %v1365 = vpop.xlane.xlu0 %1364
  %v1366 = vsel %vm652, %v1320, 0.0
  %1367 = vadd.xlane.f32.xlu0 %v1366
  %v1368 = vpop.xlane.xlu0 %1367
  %v1369 = vpack.c.bf16 %v1292, %v1290
  %v1370 = vpack.c.bf16 %v1296, %v1294
  %v1371 = vpack.c.bf16 %v1300, %v1298
  %v1372 = vpack.c.bf16 %v1304, %v1302
  %v1373 = vpack.c.bf16 %v1308, %v1306
  %v1374 = vpack.c.bf16 %v1312, %v1310
  %v1375 = vpack.c.bf16 %v1316, %v1314
  %v1376 = vpack.c.bf16 %v1320, %v1318
  %1377 = vrot.lane.b32.xlu0 %v441, 56
  %v1378 = vpop.permute.xlu0 %1377
  %1379 = vrot.lane.b32.xlu0 %v442, 56
  %v1380 = vpop.permute.xlu0 %1379
  %1381 = vrot.lane.b32.xlu0 %v443, 56
  %v1382 = vpop.permute.xlu0 %1381
  %1383 = vrot.lane.b32.xlu0 %v444, 56
  %v1384 = vpop.permute.xlu0 %1383
  %v1390 = vsel %vm652, %v1369, 0
  %v1393 = vsel %vm652, %v1370, 0
  %v1396 = vsel %vm652, %v1371, 0
  %v1399 = vsel %vm652, %v1372, 0
  %1401 = vmatprep.subr.bf16.mxu0 0
  %1402 = vmatpush1.bf16.msra.mxu0 %v1378
  %1403 = vmatprep.subr.bf16.mxu0 0
  %1404 = vmatpush1.bf16.msra.mxu0 %v1380
  %1405 = vmatprep.subr.bf16.mxu0 0
  %1406 = vmatpush1.bf16.msra.mxu0 %v1382
  %1407 = vmatprep.subr.bf16.mxu0 0
  %1408 = vmatpush1.bf16.msra.mxu0 %v1384
  %1409 = vmatprep.subr.bf16.mxu0 0
  %1410 = vmatpush1.bf16.msra.mxu0 0
  %1411 = vmatprep.subr.bf16.mxu0 0
  %1412 = vmatpush1.bf16.msra.mxu0 0
  %1413 = vmatprep.subr.bf16.mxu0 0
  %1414 = vmatpush1.bf16.msra.mxu0 0
  %1415 = vmatprep.subr.bf16.mxu0 0
  %1416 = vmatpush1.bf16.msra.mxu0 0
  %1417 = vmatprep.subr.bf16.mxu0 0
  %1418 = vmatpush1.bf16.msra.mxu0 0
  %1419 = vmatprep.subr.bf16.mxu0 0
  %1420 = vmatpush1.bf16.msra.mxu0 0
  %1421 = vmatprep.subr.bf16.mxu0 0
  %1422 = vmatpush1.bf16.msra.mxu0 0
  %1423 = vmatprep.subr.bf16.mxu0 0
  %1424 = vmatpush1.bf16.msra.mxu0 0
  %1425 = vmatprep.subr.bf16.mxu0 0
  %1426 = vmatpush1.bf16.msra.mxu0 0
  %1427 = vmatprep.subr.bf16.mxu0 0
  %1428 = vmatpush1.bf16.msra.mxu0 0
  %1429 = vmatprep.subr.bf16.mxu0 0
  %1430 = vmatpush1.bf16.msra.mxu0 0
  %1431 = vmatprep.subr.bf16.mxu0 0
  %1432 = vmatpush1.bf16.msra.mxu0 0
  %1433 = vmatprep.mubr.bf16.mxu0 0
  %1434 = vmatmul.mubr.bf16.gmra.mrb[0].mxu0 %v1390
  %v1435 = vpop.f32.mrb[0].mxu0
  %v1436 = vadd.f32 0.0, %v1435
  %v1437 = vpop.f32.mrb[0].mxu0
  %v1438 = vpop.f32.mrb[0].mxu0
  %v1439 = vadd.f32 0.0, %v1438
  %v1440 = vpop.f32.mrb[0].mxu0
  %1441 = vmatprep.mubr.bf16.mxu0 0
  %1442 = vmatmul.mubr.bf16.gmra.mrb[0].mxu0 %v1393
  %v1443 = vpop.f32.mrb[0].mxu0
  %v1444 = vadd.f32 0.0, %v1443
  %v1445 = vpop.f32.mrb[0].mxu0
  %v1446 = vpop.f32.mrb[0].mxu0
  %v1447 = vadd.f32 0.0, %v1446
  %v1448 = vpop.f32.mrb[0].mxu0
  %1449 = vmatprep.mubr.bf16.mxu0 0
  %1450 = vmatmul.mubr.bf16.gmra.mrb[0].mxu0 %v1396
  %v1451 = vpop.f32.mrb[0].mxu0
  %v1452 = vadd.f32 0.0, %v1451
  %v1453 = vpop.f32.mrb[0].mxu0
  %v1454 = vpop.f32.mrb[0].mxu0
  %v1455 = vadd.f32 0.0, %v1454
  %v1456 = vpop.f32.mrb[0].mxu0
  %1457 = vmatprep.mubr.bf16.mxu0 0
  %1458 = vmatmul.mubr.bf16.gmra.mrb[0].mxu0 %v1399
  %v1459 = vpop.f32.mrb[0].mxu0
  %v1460 = vadd.f32 0.0, %v1459
  %v1461 = vpop.f32.mrb[0].mxu0
  %v1462 = vpop.f32.mrb[0].mxu0
  %v1463 = vadd.f32 0.0, %v1462
  %v1464 = vpop.f32.mrb[0].mxu0
  %1465 = vdwg.mxu0
  %1466 = vrot.lane.b32.xlu0 %v445, 56
  %v1467 = vpop.permute.xlu0 %1466
  %1468 = vrot.lane.b32.xlu0 %v446, 56
  %v1469 = vpop.permute.xlu0 %1468
  %1470 = vrot.lane.b32.xlu0 %v447, 56
  %v1471 = vpop.permute.xlu0 %1470
  %1472 = vrot.lane.b32.xlu0 %v448, 56
  %v1473 = vpop.permute.xlu0 %1472
  %v1479 = vsel %vm652, %v1373, 0
  %v1482 = vsel %vm652, %v1374, 0
  %v1485 = vsel %vm652, %v1375, 0
  %v1488 = vsel %vm652, %v1376, 0
  %1490 = vmatprep.subr.bf16.mxu0 0
  %1491 = vmatpush1.bf16.msra.mxu0 %v1467
  %1492 = vmatprep.subr.bf16.mxu0 0
  %1493 = vmatpush1.bf16.msra.mxu0 %v1469
  %1494 = vmatprep.subr.bf16.mxu0 0
  %1495 = vmatpush1.bf16.msra.mxu0 %v1471
  %1496 = vmatprep.subr.bf16.mxu0 0
  %1497 = vmatpush1.bf16.msra.mxu0 %v1473
  %1498 = vmatprep.subr.bf16.mxu0 0
  %1499 = vmatpush1.bf16.msra.mxu0 0
  %1500 = vmatprep.subr.bf16.mxu0 0
  %1501 = vmatpush1.bf16.msra.mxu0 0
  %1502 = vmatprep.subr.bf16.mxu0 0
  %1503 = vmatpush1.bf16.msra.mxu0 0
  %1504 = vmatprep.subr.bf16.mxu0 0
  %1505 = vmatpush1.bf16.msra.mxu0 0
  %1506 = vmatprep.subr.bf16.mxu0 0
  %1507 = vmatpush1.bf16.msra.mxu0 0
  %1508 = vmatprep.subr.bf16.mxu0 0
  %1509 = vmatpush1.bf16.msra.mxu0 0
  %1510 = vmatprep.subr.bf16.mxu0 0
  %1511 = vmatpush1.bf16.msra.mxu0 0
  %1512 = vmatprep.subr.bf16.mxu0 0
  %1513 = vmatpush1.bf16.msra.mxu0 0
  %1514 = vmatprep.subr.bf16.mxu0 0
  %1515 = vmatpush1.bf16.msra.mxu0 0
  %1516 = vmatprep.subr.bf16.mxu0 0
  %1517 = vmatpush1.bf16.msra.mxu0 0
  %1518 = vmatprep.subr.bf16.mxu0 0
  %1519 = vmatpush1.bf16.msra.mxu0 0
  %1520 = vmatprep.subr.bf16.mxu0 0
  %1521 = vmatpush1.bf16.msra.mxu0 0
  %1522 = vmatprep.mubr.bf16.mxu0 0
  %1523 = vmatmul.mubr.bf16.gmra.mrb[0].mxu0 %v1479
  %v1524 = vpop.f32.mrb[0].mxu0
  %v1525 = vadd.f32 0.0, %v1524
  %v1526 = vpop.f32.mrb[0].mxu0
  %v1527 = vpop.f32.mrb[0].mxu0
  %v1528 = vadd.f32 0.0, %v1527
  %v1529 = vpop.f32.mrb[0].mxu0
  %1530 = vmatprep.mubr.bf16.mxu0 0
  %1531 = vmatmul.mubr.bf16.gmra.mrb[0].mxu0 %v1482
  %v1532 = vpop.f32.mrb[0].mxu0
  %v1533 = vadd.f32 0.0, %v1532
  %v1534 = vpop.f32.mrb[0].mxu0
  %v1535 = vpop.f32.mrb[0].mxu0
  %v1536 = vadd.f32 0.0, %v1535
  %v1537 = vpop.f32.mrb[0].mxu0
  %1538 = vmatprep.mubr.bf16.mxu0 0
  %1539 = vmatmul.mubr.bf16.gmra.mrb[0].mxu0 %v1485
  %v1540 = vpop.f32.mrb[0].mxu0
  %v1541 = vadd.f32 0.0, %v1540
  %v1542 = vpop.f32.mrb[0].mxu0
  %v1543 = vpop.f32.mrb[0].mxu0
  %v1544 = vadd.f32 0.0, %v1543
  %v1545 = vpop.f32.mrb[0].mxu0
  %1546 = vmatprep.mubr.bf16.mxu0 0
  %1547 = vmatmul.mubr.bf16.gmra.mrb[0].mxu0 %v1488
  %v1548 = vpop.f32.mrb[0].mxu0
  %v1549 = vadd.f32 0.0, %v1548
  %v1550 = vpop.f32.mrb[0].mxu0
  %v1551 = vpop.f32.mrb[0].mxu0
  %v1552 = vadd.f32 0.0, %v1551
  %v1553 = vpop.f32.mrb[0].mxu0
  %1554 = vdwg.mxu0
  %v1555 = vrcp.pop %v1323
  %v1556 = vrcp.pop %v1326
  %v1557 = vrcp.pop %v1329
  %v1558 = vrcp.pop %v1332
  %v1559 = vrcp.pop %v1335
  %v1560 = vrcp.pop %v1338
  %v1561 = vrcp.pop %v1341
  %v1562 = vrcp.pop %v1344
  %v1563 = vrcp.pop %v1347
  %v1564 = vrcp.pop %v1350
  %v1565 = vrcp.pop %v1353
  %v1566 = vrcp.pop %v1356
  %v1567 = vrcp.pop %v1359
  %v1568 = vrcp.pop %v1362
  %v1569 = vrcp.pop %v1365
  %v1570 = vrcp.pop %v1368
  %v1571 = vmul.f32 %v1436, %v1555
  %v1572 = vmul.f32 %v1439, %v1556
  %v1573 = vmul.f32 %v1444, %v1557
  %v1574 = vmul.f32 %v1447, %v1558
  %v1575 = vmul.f32 %v1452, %v1559
  %v1576 = vmul.f32 %v1455, %v1560
  %v1577 = vmul.f32 %v1460, %v1561
  %v1578 = vmul.f32 %v1463, %v1562
  %v1579 = vmul.f32 %v1525, %v1563
  %v1580 = vmul.f32 %v1528, %v1564
  %v1581 = vmul.f32 %v1533, %v1565
  %v1582 = vmul.f32 %v1536, %v1566
  %v1583 = vmul.f32 %v1541, %v1567
  %v1584 = vmul.f32 %v1544, %v1568
  %v1585 = vmul.f32 %v1549, %v1569
  %v1586 = vmul.f32 %v1552, %v1570
  %1587 = vrot.lane.b32.xlu0 %v441, 112
  %v1588 = vpop.permute.xlu0 %1587
  %1589 = vrot.lane.b32.xlu0 %v442, 112
  %v1590 = vpop.permute.xlu0 %1589
  %1591 = vrot.lane.b32.xlu0 %v443, 112
  %v1592 = vpop.permute.xlu0 %1591
  %1593 = vrot.lane.b32.xlu0 %v444, 112
  %v1594 = vpop.permute.xlu0 %1593
  %1595 = vrot.lane.b32.xlu0 %v441, 80
  %v1596 = vpop.permute.xlu0 %1595
  %1597 = vrot.lane.b32.xlu0 %v442, 80
  %v1598 = vpop.permute.xlu0 %1597
  %1599 = vrot.lane.b32.xlu0 %v443, 80
  %v1600 = vpop.permute.xlu0 %1599
  %1601 = vrot.lane.b32.xlu0 %v444, 80
  %v1602 = vpop.permute.xlu0 %1601
  %v1604 = vsel %vm461, %v1588, 0
  %v1607 = vsel %vm461, %v1590, 0
  %v1610 = vsel %vm461, %v1592, 0
  %v1613 = vsel %vm461, %v1594, 0
  %v1616 = vsel %vm461, %v1596, 0
  %v1619 = vsel %vm461, %v1598, 0
  %v1622 = vsel %vm461, %v1600, 0
  %v1625 = vsel %vm461, %v1602, 0
  %1627 = vmatprep.subr.bf16.mxu0 0
  %1628 = vmatpush1.bf16.xpose.msra.mxu0 %v1616
  %1629 = vmatprep.subr.bf16.mxu0 0
  %1630 = vmatpush1.bf16.xpose.msra.mxu0 %v1619
  %1631 = vmatprep.subr.bf16.mxu0 0
  %1632 = vmatpush1.bf16.xpose.msra.mxu0 %v1622
  %1633 = vmatprep.subr.bf16.mxu0 0
  %1634 = vmatpush1.bf16.xpose.msra.mxu0 %v1625
  %1635 = vmatprep.subr.bf16.mxu0 0
  %1636 = vmatpush1.bf16.xpose.msra.mxu0 0
  %1637 = vmatprep.subr.bf16.mxu0 0
  %1638 = vmatpush1.bf16.xpose.msra.mxu0 0
  %1639 = vmatprep.subr.bf16.mxu0 0
  %1640 = vmatpush1.bf16.xpose.msra.mxu0 0
  %1641 = vmatprep.subr.bf16.mxu0 0
  %1642 = vmatpush1.bf16.xpose.msra.mxu0 0
  %1643 = vmatprep.subr.bf16.mxu0 0
  %1644 = vmatpush1.bf16.xpose.msra.mxu0 0
  %1645 = vmatprep.subr.bf16.mxu0 0
  %1646 = vmatpush1.bf16.xpose.msra.mxu0 0
  %1647 = vmatprep.subr.bf16.mxu0 0
  %1648 = vmatpush1.bf16.xpose.msra.mxu0 0
  %1649 = vmatprep.subr.bf16.mxu0 0
  %1650 = vmatpush1.bf16.xpose.msra.mxu0 0
  %1651 = vmatprep.subr.bf16.mxu0 0
  %1652 = vmatpush1.bf16.xpose.msra.mxu0 0
  %1653 = vmatprep.subr.bf16.mxu0 0
  %1654 = vmatpush1.bf16.xpose.msra.mxu0 0
  %1655 = vmatprep.subr.bf16.mxu0 0
  %1656 = vmatpush1.bf16.xpose.msra.mxu0 0
  %1657 = vmatprep.subr.bf16.mxu0 0
  %1658 = vmatpush1.bf16.xpose.msra.mxu0 0
  %1659 = vmatprep.mubr.bf16.mxu0 0
  %1660 = vmatmul.mubr.bf16.gmra.mrb[0].mxu0 %v1604
  %v1661 = vpop.f32.mrb[0].mxu0
  %v1662 = vadd.f32 0.0, %v1661
  %v1663 = vpop.f32.mrb[0].mxu0
  %v1664 = vpop.f32.mrb[0].mxu0
  %v1665 = vadd.f32 0.0, %v1664
  %v1666 = vpop.f32.mrb[0].mxu0
  %1667 = vmatprep.mubr.bf16.mxu0 0
  %1668 = vmatmul.mubr.bf16.gmra.mrb[0].mxu0 %v1607
  %v1669 = vpop.f32.mrb[0].mxu0
  %v1670 = vadd.f32 0.0, %v1669
  %v1671 = vpop.f32.mrb[0].mxu0
  %v1672 = vpop.f32.mrb[0].mxu0
  %v1673 = vadd.f32 0.0, %v1672
  %v1674 = vpop.f32.mrb[0].mxu0
  %1675 = vmatprep.mubr.bf16.mxu0 0
  %1676 = vmatmul.mubr.bf16.gmra.mrb[0].mxu0 %v1610
  %v1677 = vpop.f32.mrb[0].mxu0
  %v1678 = vadd.f32 0.0, %v1677
  %v1679 = vpop.f32.mrb[0].mxu0
  %v1680 = vpop.f32.mrb[0].mxu0
  %v1681 = vadd.f32 0.0, %v1680
  %v1682 = vpop.f32.mrb[0].mxu0
  %1683 = vmatprep.mubr.bf16.mxu0 0
  %1684 = vmatmul.mubr.bf16.gmra.mrb[0].mxu0 %v1613
  %v1685 = vpop.f32.mrb[0].mxu0
  %v1686 = vadd.f32 0.0, %v1685
  %v1687 = vpop.f32.mrb[0].mxu0
  %v1688 = vpop.f32.mrb[0].mxu0
  %v1689 = vadd.f32 0.0, %v1688
  %v1690 = vpop.f32.mrb[0].mxu0
  %1691 = vdwg.mxu0
  %1692 = vrot.lane.b32.xlu0 %v445, 112
  %v1693 = vpop.permute.xlu0 %1692
  %1694 = vrot.lane.b32.xlu0 %v446, 112
  %v1695 = vpop.permute.xlu0 %1694
  %1696 = vrot.lane.b32.xlu0 %v447, 112
  %v1697 = vpop.permute.xlu0 %1696
  %1698 = vrot.lane.b32.xlu0 %v448, 112
  %v1699 = vpop.permute.xlu0 %1698
  %1700 = vrot.lane.b32.xlu0 %v445, 80
  %v1701 = vpop.permute.xlu0 %1700
  %1702 = vrot.lane.b32.xlu0 %v446, 80
  %v1703 = vpop.permute.xlu0 %1702
  %1704 = vrot.lane.b32.xlu0 %v447, 80
  %v1705 = vpop.permute.xlu0 %1704
  %1706 = vrot.lane.b32.xlu0 %v448, 80
  %v1707 = vpop.permute.xlu0 %1706
  %v1709 = vsel %vm461, %v1693, 0
  %v1712 = vsel %vm461, %v1695, 0
  %v1715 = vsel %vm461, %v1697, 0
  %v1718 = vsel %vm461, %v1699, 0
  %v1721 = vsel %vm461, %v1701, 0
  %v1724 = vsel %vm461, %v1703, 0
  %v1727 = vsel %vm461, %v1705, 0
  %v1730 = vsel %vm461, %v1707, 0
  %1732 = vmatprep.subr.bf16.mxu0 0
  %1733 = vmatpush1.bf16.xpose.msra.mxu0 %v1721
  %1734 = vmatprep.subr.bf16.mxu0 0
  %1735 = vmatpush1.bf16.xpose.msra.mxu0 %v1724
  %1736 = vmatprep.subr.bf16.mxu0 0
  %1737 = vmatpush1.bf16.xpose.msra.mxu0 %v1727
  %1738 = vmatprep.subr.bf16.mxu0 0
  %1739 = vmatpush1.bf16.xpose.msra.mxu0 %v1730
  %1740 = vmatprep.subr.bf16.mxu0 0
  %1741 = vmatpush1.bf16.xpose.msra.mxu0 0
  %1742 = vmatprep.subr.bf16.mxu0 0
  %1743 = vmatpush1.bf16.xpose.msra.mxu0 0
  %1744 = vmatprep.subr.bf16.mxu0 0
  %1745 = vmatpush1.bf16.xpose.msra.mxu0 0
  %1746 = vmatprep.subr.bf16.mxu0 0
  %1747 = vmatpush1.bf16.xpose.msra.mxu0 0
  %1748 = vmatprep.subr.bf16.mxu0 0
  %1749 = vmatpush1.bf16.xpose.msra.mxu0 0
  %1750 = vmatprep.subr.bf16.mxu0 0
  %1751 = vmatpush1.bf16.xpose.msra.mxu0 0
  %1752 = vmatprep.subr.bf16.mxu0 0
  %1753 = vmatpush1.bf16.xpose.msra.mxu0 0
  %1754 = vmatprep.subr.bf16.mxu0 0
  %1755 = vmatpush1.bf16.xpose.msra.mxu0 0
  %1756 = vmatprep.subr.bf16.mxu0 0
  %1757 = vmatpush1.bf16.xpose.msra.mxu0 0
  %1758 = vmatprep.subr.bf16.mxu0 0
  %1759 = vmatpush1.bf16.xpose.msra.mxu0 0
  %1760 = vmatprep.subr.bf16.mxu0 0
  %1761 = vmatpush1.bf16.xpose.msra.mxu0 0
  %1762 = vmatprep.subr.bf16.mxu0 0
  %1763 = vmatpush1.bf16.xpose.msra.mxu0 0
  %1764 = vmatprep.mubr.bf16.mxu0 0
  %1765 = vmatmul.mubr.bf16.gmra.mrb[0].mxu0 %v1709
  %v1766 = vpop.f32.mrb[0].mxu0
  %v1767 = vadd.f32 0.0, %v1766
  %v1768 = vpop.f32.mrb[0].mxu0
  %v1769 = vpop.f32.mrb[0].mxu0
  %v1770 = vadd.f32 0.0, %v1769
  %v1771 = vpop.f32.mrb[0].mxu0
  %1772 = vmatprep.mubr.bf16.mxu0 0
  %1773 = vmatmul.mubr.bf16.gmra.mrb[0].mxu0 %v1712
  %v1774 = vpop.f32.mrb[0].mxu0
  %v1775 = vadd.f32 0.0, %v1774
  %v1776 = vpop.f32.mrb[0].mxu0
  %v1777 = vpop.f32.mrb[0].mxu0
  %v1778 = vadd.f32 0.0, %v1777
  %v1779 = vpop.f32.mrb[0].mxu0
  %1780 = vmatprep.mubr.bf16.mxu0 0
  %1781 = vmatmul.mubr.bf16.gmra.mrb[0].mxu0 %v1715
  %v1782 = vpop.f32.mrb[0].mxu0
  %v1783 = vadd.f32 0.0, %v1782
  %v1784 = vpop.f32.mrb[0].mxu0
  %v1785 = vpop.f32.mrb[0].mxu0
  %v1786 = vadd.f32 0.0, %v1785
  %v1787 = vpop.f32.mrb[0].mxu0
  %1788 = vmatprep.mubr.bf16.mxu0 0
  %1789 = vmatmul.mubr.bf16.gmra.mrb[0].mxu0 %v1718
  %v1790 = vpop.f32.mrb[0].mxu0
  %v1791 = vadd.f32 0.0, %v1790
  %v1792 = vpop.f32.mrb[0].mxu0
  %v1793 = vpop.f32.mrb[0].mxu0
  %v1794 = vadd.f32 0.0, %v1793
  %v1795 = vpop.f32.mrb[0].mxu0
  %1796 = vdwg.mxu0
  %v1797 = vsel %vm652, %v1662, -inf
  %1798 = vmax.xlane.f32.xlu0 %v1797
  %v1799 = vpop.xlane.xlu0 %1798
  %v1800 = vsel %vm652, %v1665, -inf
  %1801 = vmax.xlane.f32.xlu0 %v1800
  %v1802 = vpop.xlane.xlu0 %1801
  %v1803 = vsel %vm652, %v1670, -inf
  %1804 = vmax.xlane.f32.xlu0 %v1803
  %v1805 = vpop.xlane.xlu0 %1804
  %v1806 = vsel %vm652, %v1673, -inf
  %1807 = vmax.xlane.f32.xlu0 %v1806
  %v1808 = vpop.xlane.xlu0 %1807
  %v1809 = vsel %vm652, %v1678, -inf
  %1810 = vmax.xlane.f32.xlu0 %v1809
  %v1811 = vpop.xlane.xlu0 %1810
  %v1812 = vsel %vm652, %v1681, -inf
  %1813 = vmax.xlane.f32.xlu0 %v1812
  %v1814 = vpop.xlane.xlu0 %1813
  %v1815 = vsel %vm652, %v1686, -inf
  %1816 = vmax.xlane.f32.xlu0 %v1815
  %v1817 = vpop.xlane.xlu0 %1816
  %v1818 = vsel %vm652, %v1689, -inf
  %1819 = vmax.xlane.f32.xlu0 %v1818
  %v1820 = vpop.xlane.xlu0 %1819
  %v1821 = vsel %vm652, %v1767, -inf
  %1822 = vmax.xlane.f32.xlu0 %v1821
  %v1823 = vpop.xlane.xlu0 %1822
  %v1824 = vsel %vm652, %v1770, -inf
  %1825 = vmax.xlane.f32.xlu0 %v1824
  %v1826 = vpop.xlane.xlu0 %1825
  %v1827 = vsel %vm652, %v1775, -inf
  %1828 = vmax.xlane.f32.xlu0 %v1827
  %v1829 = vpop.xlane.xlu0 %1828
  %v1830 = vsel %vm652, %v1778, -inf
  %1831 = vmax.xlane.f32.xlu0 %v1830
  %v1832 = vpop.xlane.xlu0 %1831
  %v1833 = vsel %vm652, %v1783, -inf
  %1834 = vmax.xlane.f32.xlu0 %v1833
  %v1835 = vpop.xlane.xlu0 %1834
  %v1836 = vsel %vm652, %v1786, -inf
  %1837 = vmax.xlane.f32.xlu0 %v1836
  %v1838 = vpop.xlane.xlu0 %1837
  %v1839 = vsel %vm652, %v1791, -inf
  %1840 = vmax.xlane.f32.xlu0 %v1839
  %v1841 = vpop.xlane.xlu0 %1840
  %v1842 = vsel %vm652, %v1794, -inf
  %1843 = vmax.xlane.f32.xlu0 %v1842
  %v1844 = vpop.xlane.xlu0 %1843
  %v1845 = vsub.f32 %v1662, %v1799
  %v1846 = vsub.f32 %v1665, %v1802
  %v1847 = vsub.f32 %v1670, %v1805
  %v1848 = vsub.f32 %v1673, %v1808
  %v1849 = vsub.f32 %v1678, %v1811
  %v1850 = vsub.f32 %v1681, %v1814
  %v1851 = vsub.f32 %v1686, %v1817
  %v1852 = vsub.f32 %v1689, %v1820
  %v1853 = vsub.f32 %v1767, %v1823
  %v1854 = vsub.f32 %v1770, %v1826
  %v1855 = vsub.f32 %v1775, %v1829
  %v1856 = vsub.f32 %v1778, %v1832
  %v1857 = vsub.f32 %v1783, %v1835
  %v1858 = vsub.f32 %v1786, %v1838
  %v1859 = vsub.f32 %v1791, %v1841
  %v1860 = vsub.f32 %v1794, %v1844
  %v1861 = vmul.f32 %v1845, 1.442695
  %v1862 = vpow.pop %v1861
  %v1863 = vmul.f32 %v1846, 1.442695
  %v1864 = vpow.pop %v1863
  %v1865 = vmul.f32 %v1847, 1.442695
  %v1866 = vpow.pop %v1865
  %v1867 = vmul.f32 %v1848, 1.442695
  %v1868 = vpow.pop %v1867
  %v1869 = vmul.f32 %v1849, 1.442695
  %v1870 = vpow.pop %v1869
  %v1871 = vmul.f32 %v1850, 1.442695
  %v1872 = vpow.pop %v1871
  %v1873 = vmul.f32 %v1851, 1.442695
  %v1874 = vpow.pop %v1873
  %v1875 = vmul.f32 %v1852, 1.442695
  %v1876 = vpow.pop %v1875
  %v1877 = vmul.f32 %v1853, 1.442695
  %v1878 = vpow.pop %v1877
  %v1879 = vmul.f32 %v1854, 1.442695
  %v1880 = vpow.pop %v1879
  %v1881 = vmul.f32 %v1855, 1.442695
  %v1882 = vpow.pop %v1881
  %v1883 = vmul.f32 %v1856, 1.442695
  %v1884 = vpow.pop %v1883
  %v1885 = vmul.f32 %v1857, 1.442695
  %v1886 = vpow.pop %v1885
  %v1887 = vmul.f32 %v1858, 1.442695
  %v1888 = vpow.pop %v1887
  %v1889 = vmul.f32 %v1859, 1.442695
  %v1890 = vpow.pop %v1889
  %v1891 = vmul.f32 %v1860, 1.442695
  %v1892 = vpow.pop %v1891
  %v1893 = vsel %vm652, %v1862, 0.0
  %1894 = vadd.xlane.f32.xlu0 %v1893
  %v1895 = vpop.xlane.xlu0 %1894
  %v1896 = vsel %vm652, %v1864, 0.0
  %1897 = vadd.xlane.f32.xlu0 %v1896
  %v1898 = vpop.xlane.xlu0 %1897
  %v1899 = vsel %vm652, %v1866, 0.0
  %1900 = vadd.xlane.f32.xlu0 %v1899
  %v1901 = vpop.xlane.xlu0 %1900
  %v1902 = vsel %vm652, %v1868, 0.0
  %1903 = vadd.xlane.f32.xlu0 %v1902
  %v1904 = vpop.xlane.xlu0 %1903
  %v1905 = vsel %vm652, %v1870, 0.0
  %1906 = vadd.xlane.f32.xlu0 %v1905
  %v1907 = vpop.xlane.xlu0 %1906
  %v1908 = vsel %vm652, %v1872, 0.0
  %1909 = vadd.xlane.f32.xlu0 %v1908
  %v1910 = vpop.xlane.xlu0 %1909
  %v1911 = vsel %vm652, %v1874, 0.0
  %1912 = vadd.xlane.f32.xlu0 %v1911
  %v1913 = vpop.xlane.xlu0 %1912
  %v1914 = vsel %vm652, %v1876, 0.0
  %1915 = vadd.xlane.f32.xlu0 %v1914
  %v1916 = vpop.xlane.xlu0 %1915
  %v1917 = vsel %vm652, %v1878, 0.0
  %1918 = vadd.xlane.f32.xlu0 %v1917
  %v1919 = vpop.xlane.xlu0 %1918
  %v1920 = vsel %vm652, %v1880, 0.0
  %1921 = vadd.xlane.f32.xlu0 %v1920
  %v1922 = vpop.xlane.xlu0 %1921
  %v1923 = vsel %vm652, %v1882, 0.0
  %1924 = vadd.xlane.f32.xlu0 %v1923
  %v1925 = vpop.xlane.xlu0 %1924
  %v1926 = vsel %vm652, %v1884, 0.0
  %1927 = vadd.xlane.f32.xlu0 %v1926
  %v1928 = vpop.xlane.xlu0 %1927
  %v1929 = vsel %vm652, %v1886, 0.0
  %1930 = vadd.xlane.f32.xlu0 %v1929
  %v1931 = vpop.xlane.xlu0 %1930
  %v1932 = vsel %vm652, %v1888, 0.0
  %1933 = vadd.xlane.f32.xlu0 %v1932
  %v1934 = vpop.xlane.xlu0 %1933
  %v1935 = vsel %vm652, %v1890, 0.0
  %1936 = vadd.xlane.f32.xlu0 %v1935
  %v1937 = vpop.xlane.xlu0 %1936
  %v1938 = vsel %vm652, %v1892, 0.0
  %1939 = vadd.xlane.f32.xlu0 %v1938
  %v1940 = vpop.xlane.xlu0 %1939
  %v1941 = vpack.c.bf16 %v1864, %v1862
  %v1942 = vpack.c.bf16 %v1868, %v1866
  %v1943 = vpack.c.bf16 %v1872, %v1870
  %v1944 = vpack.c.bf16 %v1876, %v1874
  %v1945 = vpack.c.bf16 %v1880, %v1878
  %v1946 = vpack.c.bf16 %v1884, %v1882
  %v1947 = vpack.c.bf16 %v1888, %v1886
  %v1948 = vpack.c.bf16 %v1892, %v1890
  %1949 = vrot.lane.b32.xlu0 %v441, 48
  %v1950 = vpop.permute.xlu0 %1949
  %1951 = vrot.lane.b32.xlu0 %v442, 48
  %v1952 = vpop.permute.xlu0 %1951
  %1953 = vrot.lane.b32.xlu0 %v443, 48
  %v1954 = vpop.permute.xlu0 %1953
  %1955 = vrot.lane.b32.xlu0 %v444, 48
  %v1956 = vpop.permute.xlu0 %1955
  %v1962 = vsel %vm652, %v1941, 0
  %v1965 = vsel %vm652, %v1942, 0
  %v1968 = vsel %vm652, %v1943, 0
  %v1971 = vsel %vm652, %v1944, 0
  %1973 = vmatprep.subr.bf16.mxu0 0
  %1974 = vmatpush1.bf16.msra.mxu0 %v1950
  %1975 = vmatprep.subr.bf16.mxu0 0
  %1976 = vmatpush1.bf16.msra.mxu0 %v1952
  %1977 = vmatprep.subr.bf16.mxu0 0
  %1978 = vmatpush1.bf16.msra.mxu0 %v1954
  %1979 = vmatprep.subr.bf16.mxu0 0
  %1980 = vmatpush1.bf16.msra.mxu0 %v1956
  %1981 = vmatprep.subr.bf16.mxu0 0
  %1982 = vmatpush1.bf16.msra.mxu0 0
  %1983 = vmatprep.subr.bf16.mxu0 0
  %1984 = vmatpush1.bf16.msra.mxu0 0
  %1985 = vmatprep.subr.bf16.mxu0 0
  %1986 = vmatpush1.bf16.msra.mxu0 0
  %1987 = vmatprep.subr.bf16.mxu0 0
  %1988 = vmatpush1.bf16.msra.mxu0 0
  %1989 = vmatprep.subr.bf16.mxu0 0
  %1990 = vmatpush1.bf16.msra.mxu0 0
  %1991 = vmatprep.subr.bf16.mxu0 0
  %1992 = vmatpush1.bf16.msra.mxu0 0
  %1993 = vmatprep.subr.bf16.mxu0 0
  %1994 = vmatpush1.bf16.msra.mxu0 0
  %1995 = vmatprep.subr.bf16.mxu0 0
  %1996 = vmatpush1.bf16.msra.mxu0 0
  %1997 = vmatprep.subr.bf16.mxu0 0
  %1998 = vmatpush1.bf16.msra.mxu0 0
  %1999 = vmatprep.subr.bf16.mxu0 0
  %2000 = vmatpush1.bf16.msra.mxu0 0
  %2001 = vmatprep.subr.bf16.mxu0 0
  %2002 = vmatpush1.bf16.msra.mxu0 0
  %2003 = vmatprep.subr.bf16.mxu0 0
  %2004 = vmatpush1.bf16.msra.mxu0 0
  %2005 = vmatprep.mubr.bf16.mxu0 0
  %2006 = vmatmul.mubr.bf16.gmra.mrb[0].mxu0 %v1962
  %v2007 = vpop.f32.mrb[0].mxu0
  %v2008 = vadd.f32 0.0, %v2007
  %v2009 = vpop.f32.mrb[0].mxu0
  %v2010 = vpop.f32.mrb[0].mxu0
  %v2011 = vadd.f32 0.0, %v2010
  %v2012 = vpop.f32.mrb[0].mxu0
  %2013 = vmatprep.mubr.bf16.mxu0 0
  %2014 = vmatmul.mubr.bf16.gmra.mrb[0].mxu0 %v1965
  %v2015 = vpop.f32.mrb[0].mxu0
  %v2016 = vadd.f32 0.0, %v2015
  %v2017 = vpop.f32.mrb[0].mxu0
  %v2018 = vpop.f32.mrb[0].mxu0
  %v2019 = vadd.f32 0.0, %v2018
  %v2020 = vpop.f32.mrb[0].mxu0
  %2021 = vmatprep.mubr.bf16.mxu0 0
  %2022 = vmatmul.mubr.bf16.gmra.mrb[0].mxu0 %v1968
  %v2023 = vpop.f32.mrb[0].mxu0
  %v2024 = vadd.f32 0.0, %v2023
  %v2025 = vpop.f32.mrb[0].mxu0
  %v2026 = vpop.f32.mrb[0].mxu0
  %v2027 = vadd.f32 0.0, %v2026
  %v2028 = vpop.f32.mrb[0].mxu0
  %2029 = vmatprep.mubr.bf16.mxu0 0
  %2030 = vmatmul.mubr.bf16.gmra.mrb[0].mxu0 %v1971
  %v2031 = vpop.f32.mrb[0].mxu0
  %v2032 = vadd.f32 0.0, %v2031
  %v2033 = vpop.f32.mrb[0].mxu0
  %v2034 = vpop.f32.mrb[0].mxu0
  %v2035 = vadd.f32 0.0, %v2034
  %v2036 = vpop.f32.mrb[0].mxu0
  %2037 = vdwg.mxu0
  %2038 = vrot.lane.b32.xlu0 %v445, 48
  %v2039 = vpop.permute.xlu0 %2038
  %2040 = vrot.lane.b32.xlu0 %v446, 48
  %v2041 = vpop.permute.xlu0 %2040
  %2042 = vrot.lane.b32.xlu0 %v447, 48
  %v2043 = vpop.permute.xlu0 %2042
  %2044 = vrot.lane.b32.xlu0 %v448, 48
  %v2045 = vpop.permute.xlu0 %2044
  %v2051 = vsel %vm652, %v1945, 0
  %v2054 = vsel %vm652, %v1946, 0
  %v2057 = vsel %vm652, %v1947, 0
  %v2060 = vsel %vm652, %v1948, 0
  %2062 = vmatprep.subr.bf16.mxu0 0
  %2063 = vmatpush1.bf16.msra.mxu0 %v2039
  %2064 = vmatprep.subr.bf16.mxu0 0
  %2065 = vmatpush1.bf16.msra.mxu0 %v2041
  %2066 = vmatprep.subr.bf16.mxu0 0
  %2067 = vmatpush1.bf16.msra.mxu0 %v2043
  %2068 = vmatprep.subr.bf16.mxu0 0
  %2069 = vmatpush1.bf16.msra.mxu0 %v2045
  %2070 = vmatprep.subr.bf16.mxu0 0
  %2071 = vmatpush1.bf16.msra.mxu0 0
  %2072 = vmatprep.subr.bf16.mxu0 0
  %2073 = vmatpush1.bf16.msra.mxu0 0
  %2074 = vmatprep.subr.bf16.mxu0 0
  %2075 = vmatpush1.bf16.msra.mxu0 0
  %2076 = vmatprep.subr.bf16.mxu0 0
  %2077 = vmatpush1.bf16.msra.mxu0 0
  %2078 = vmatprep.subr.bf16.mxu0 0
  %2079 = vmatpush1.bf16.msra.mxu0 0
  %2080 = vmatprep.subr.bf16.mxu0 0
  %2081 = vmatpush1.bf16.msra.mxu0 0
  %2082 = vmatprep.subr.bf16.mxu0 0
  %2083 = vmatpush1.bf16.msra.mxu0 0
  %2084 = vmatprep.subr.bf16.mxu0 0
  %2085 = vmatpush1.bf16.msra.mxu0 0
  %2086 = vmatprep.subr.bf16.mxu0 0
  %2087 = vmatpush1.bf16.msra.mxu0 0
  %2088 = vmatprep.subr.bf16.mxu0 0
  %2089 = vmatpush1.bf16.msra.mxu0 0
  %2090 = vmatprep.subr.bf16.mxu0 0
  %2091 = vmatpush1.bf16.msra.mxu0 0
  %2092 = vmatprep.subr.bf16.mxu0 0
  %2093 = vmatpush1.bf16.msra.mxu0 0
  %2094 = vmatprep.mubr.bf16.mxu0 0
  %2095 = vmatmul.mubr.bf16.gmra.mrb[0].mxu0 %v2051
  %v2096 = vpop.f32.mrb[0].mxu0
  %v2097 = vadd.f32 0.0, %v2096
  %v2098 = vpop.f32.mrb[0].mxu0
  %v2099 = vpop.f32.mrb[0].mxu0
  %v2100 = vadd.f32 0.0, %v2099
  %v2101 = vpop.f32.mrb[0].mxu0
  %2102 = vmatprep.mubr.bf16.mxu0 0
  %2103 = vmatmul.mubr.bf16.gmra.mrb[0].mxu0 %v2054
  %v2104 = vpop.f32.mrb[0].mxu0
  %v2105 = vadd.f32 0.0, %v2104
  %v2106 = vpop.f32.mrb[0].mxu0
  %v2107 = vpop.f32.mrb[0].mxu0
  %v2108 = vadd.f32 0.0, %v2107
  %v2109 = vpop.f32.mrb[0].mxu0
  %2110 = vmatprep.mubr.bf16.mxu0 0
  %2111 = vmatmul.mubr.bf16.gmra.mrb[0].mxu0 %v2057
  %v2112 = vpop.f32.mrb[0].mxu0
  %v2113 = vadd.f32 0.0, %v2112
  %v2114 = vpop.f32.mrb[0].mxu0
  %v2115 = vpop.f32.mrb[0].mxu0
  %v2116 = vadd.f32 0.0, %v2115
  %v2117 = vpop.f32.mrb[0].mxu0
  %2118 = vmatprep.mubr.bf16.mxu0 0
  %2119 = vmatmul.mubr.bf16.gmra.mrb[0].mxu0 %v2060
  %v2120 = vpop.f32.mrb[0].mxu0
  %v2121 = vadd.f32 0.0, %v2120
  %v2122 = vpop.f32.mrb[0].mxu0
  %v2123 = vpop.f32.mrb[0].mxu0
  %v2124 = vadd.f32 0.0, %v2123
  %v2125 = vpop.f32.mrb[0].mxu0
  %2126 = vdwg.mxu0
  %v2127 = vrcp.pop %v1895
  %v2128 = vrcp.pop %v1898
  %v2129 = vrcp.pop %v1901
  %v2130 = vrcp.pop %v1904
  %v2131 = vrcp.pop %v1907
  %v2132 = vrcp.pop %v1910
  %v2133 = vrcp.pop %v1913
  %v2134 = vrcp.pop %v1916
  %v2135 = vrcp.pop %v1919
  %v2136 = vrcp.pop %v1922
  %v2137 = vrcp.pop %v1925
  %v2138 = vrcp.pop %v1928
  %v2139 = vrcp.pop %v1931
  %v2140 = vrcp.pop %v1934
  %v2141 = vrcp.pop %v1937
  %v2142 = vrcp.pop %v1940
  %v2143 = vmul.f32 %v2008, %v2127
  %v2144 = vmul.f32 %v2011, %v2128
  %v2145 = vmul.f32 %v2016, %v2129
  %v2146 = vmul.f32 %v2019, %v2130
  %v2147 = vmul.f32 %v2024, %v2131
  %v2148 = vmul.f32 %v2027, %v2132
  %v2149 = vmul.f32 %v2032, %v2133
  %v2150 = vmul.f32 %v2035, %v2134
  %v2151 = vmul.f32 %v2097, %v2135
  %v2152 = vmul.f32 %v2100, %v2136
  %v2153 = vmul.f32 %v2105, %v2137
  %v2154 = vmul.f32 %v2108, %v2138
  %v2155 = vmul.f32 %v2113, %v2139
  %v2156 = vmul.f32 %v2116, %v2140
  %v2157 = vmul.f32 %v2121, %v2141
  %v2158 = vmul.f32 %v2124, %v2142
  %2159 = vrot.lane.b32.xlu0 %v441, 104
  %v2160 = vpop.permute.xlu0 %2159
  %2161 = vrot.lane.b32.xlu0 %v442, 104
  %v2162 = vpop.permute.xlu0 %2161
  %2163 = vrot.lane.b32.xlu0 %v443, 104
  %v2164 = vpop.permute.xlu0 %2163
  %2165 = vrot.lane.b32.xlu0 %v444, 104
  %v2166 = vpop.permute.xlu0 %2165
  %2167 = vrot.lane.b32.xlu0 %v441, 72
  %v2168 = vpop.permute.xlu0 %2167
  %2169 = vrot.lane.b32.xlu0 %v442, 72
  %v2170 = vpop.permute.xlu0 %2169
  %2171 = vrot.lane.b32.xlu0 %v443, 72
  %v2172 = vpop.permute.xlu0 %2171
  %2173 = vrot.lane.b32.xlu0 %v444, 72
  %v2174 = vpop.permute.xlu0 %2173
  %v2176 = vsel %vm461, %v2160, 0
  %v2179 = vsel %vm461, %v2162, 0
  %v2182 = vsel %vm461, %v2164, 0
  %v2185 = vsel %vm461, %v2166, 0
  %v2188 = vsel %vm461, %v2168, 0
  %v2191 = vsel %vm461, %v2170, 0
  %v2194 = vsel %vm461, %v2172, 0
  %v2197 = vsel %vm461, %v2174, 0
  %2199 = vmatprep.subr.bf16.mxu0 0
  %2200 = vmatpush1.bf16.xpose.msra.mxu0 %v2188
  %2201 = vmatprep.subr.bf16.mxu0 0
  %2202 = vmatpush1.bf16.xpose.msra.mxu0 %v2191
  %2203 = vmatprep.subr.bf16.mxu0 0
  %2204 = vmatpush1.bf16.xpose.msra.mxu0 %v2194
  %2205 = vmatprep.subr.bf16.mxu0 0
  %2206 = vmatpush1.bf16.xpose.msra.mxu0 %v2197
  %2207 = vmatprep.subr.bf16.mxu0 0
  %2208 = vmatpush1.bf16.xpose.msra.mxu0 0
  %2209 = vmatprep.subr.bf16.mxu0 0
  %2210 = vmatpush1.bf16.xpose.msra.mxu0 0
  %2211 = vmatprep.subr.bf16.mxu0 0
  %2212 = vmatpush1.bf16.xpose.msra.mxu0 0
  %2213 = vmatprep.subr.bf16.mxu0 0
  %2214 = vmatpush1.bf16.xpose.msra.mxu0 0
  %2215 = vmatprep.subr.bf16.mxu0 0
  %2216 = vmatpush1.bf16.xpose.msra.mxu0 0
  %2217 = vmatprep.subr.bf16.mxu0 0
  %2218 = vmatpush1.bf16.xpose.msra.mxu0 0
  %2219 = vmatprep.subr.bf16.mxu0 0
  %2220 = vmatpush1.bf16.xpose.msra.mxu0 0
  %2221 = vmatprep.subr.bf16.mxu0 0
  %2222 = vmatpush1.bf16.xpose.msra.mxu0 0
  %2223 = vmatprep.subr.bf16.mxu0 0
  %2224 = vmatpush1.bf16.xpose.msra.mxu0 0
  %2225 = vmatprep.subr.bf16.mxu0 0
  %2226 = vmatpush1.bf16.xpose.msra.mxu0 0
  %2227 = vmatprep.subr.bf16.mxu0 0
  %2228 = vmatpush1.bf16.xpose.msra.mxu0 0
  %2229 = vmatprep.subr.bf16.mxu0 0
  %2230 = vmatpush1.bf16.xpose.msra.mxu0 0
  %2231 = vmatprep.mubr.bf16.mxu0 0
  %2232 = vmatmul.mubr.bf16.gmra.mrb[0].mxu0 %v2176
  %v2233 = vpop.f32.mrb[0].mxu0
  %v2234 = vadd.f32 0.0, %v2233
  %v2235 = vpop.f32.mrb[0].mxu0
  %v2236 = vpop.f32.mrb[0].mxu0
  %v2237 = vadd.f32 0.0, %v2236
  %v2238 = vpop.f32.mrb[0].mxu0
  %2239 = vmatprep.mubr.bf16.mxu0 0
  %2240 = vmatmul.mubr.bf16.gmra.mrb[0].mxu0 %v2179
  %v2241 = vpop.f32.mrb[0].mxu0
  %v2242 = vadd.f32 0.0, %v2241
  %v2243 = vpop.f32.mrb[0].mxu0
  %v2244 = vpop.f32.mrb[0].mxu0
  %v2245 = vadd.f32 0.0, %v2244
  %v2246 = vpop.f32.mrb[0].mxu0
  %2247 = vmatprep.mubr.bf16.mxu0 0
  %2248 = vmatmul.mubr.bf16.gmra.mrb[0].mxu0 %v2182
  %v2249 = vpop.f32.mrb[0].mxu0
  %v2250 = vadd.f32 0.0, %v2249
  %v2251 = vpop.f32.mrb[0].mxu0
  %v2252 = vpop.f32.mrb[0].mxu0
  %v2253 = vadd.f32 0.0, %v2252
  %v2254 = vpop.f32.mrb[0].mxu0
  %2255 = vmatprep.mubr.bf16.mxu0 0
  %2256 = vmatmul.mubr.bf16.gmra.mrb[0].mxu0 %v2185
  %v2257 = vpop.f32.mrb[0].mxu0
  %v2258 = vadd.f32 0.0, %v2257
  %v2259 = vpop.f32.mrb[0].mxu0
  %v2260 = vpop.f32.mrb[0].mxu0
  %v2261 = vadd.f32 0.0, %v2260
  %v2262 = vpop.f32.mrb[0].mxu0
  %2263 = vdwg.mxu0
  %2264 = vrot.lane.b32.xlu0 %v445, 104
  %v2265 = vpop.permute.xlu0 %2264
  %2266 = vrot.lane.b32.xlu0 %v446, 104
  %v2267 = vpop.permute.xlu0 %2266
  %2268 = vrot.lane.b32.xlu0 %v447, 104
  %v2269 = vpop.permute.xlu0 %2268
  %2270 = vrot.lane.b32.xlu0 %v448, 104
  %v2271 = vpop.permute.xlu0 %2270
  %2272 = vrot.lane.b32.xlu0 %v445, 72
  %v2273 = vpop.permute.xlu0 %2272
  %2274 = vrot.lane.b32.xlu0 %v446, 72
  %v2275 = vpop.permute.xlu0 %2274
  %2276 = vrot.lane.b32.xlu0 %v447, 72
  %v2277 = vpop.permute.xlu0 %2276
  %2278 = vrot.lane.b32.xlu0 %v448, 72
  %v2279 = vpop.permute.xlu0 %2278
  %v2281 = vsel %vm461, %v2265, 0
  %v2284 = vsel %vm461, %v2267, 0
  %v2287 = vsel %vm461, %v2269, 0
  %v2290 = vsel %vm461, %v2271, 0
  %v2293 = vsel %vm461, %v2273, 0
  %v2296 = vsel %vm461, %v2275, 0
  %v2299 = vsel %vm461, %v2277, 0
  %v2302 = vsel %vm461, %v2279, 0
  %2304 = vmatprep.subr.bf16.mxu0 0
  %2305 = vmatpush1.bf16.xpose.msra.mxu0 %v2293
  %2306 = vmatprep.subr.bf16.mxu0 0
  %2307 = vmatpush1.bf16.xpose.msra.mxu0 %v2296
  %2308 = vmatprep.subr.bf16.mxu0 0
  %2309 = vmatpush1.bf16.xpose.msra.mxu0 %v2299
  %2310 = vmatprep.subr.bf16.mxu0 0
  %2311 = vmatpush1.bf16.xpose.msra.mxu0 %v2302
  %2312 = vmatprep.subr.bf16.mxu0 0
  %2313 = vmatpush1.bf16.xpose.msra.mxu0 0
  %2314 = vmatprep.subr.bf16.mxu0 0
  %2315 = vmatpush1.bf16.xpose.msra.mxu0 0
  %2316 = vmatprep.subr.bf16.mxu0 0
  %2317 = vmatpush1.bf16.xpose.msra.mxu0 0
  %2318 = vmatprep.subr.bf16.mxu0 0
  %2319 = vmatpush1.bf16.xpose.msra.mxu0 0
  %2320 = vmatprep.subr.bf16.mxu0 0
  %2321 = vmatpush1.bf16.xpose.msra.mxu0 0
  %2322 = vmatprep.subr.bf16.mxu0 0
  %2323 = vmatpush1.bf16.xpose.msra.mxu0 0
  %2324 = vmatprep.subr.bf16.mxu0 0
  %2325 = vmatpush1.bf16.xpose.msra.mxu0 0
  %2326 = vmatprep.subr.bf16.mxu0 0
  %2327 = vmatpush1.bf16.xpose.msra.mxu0 0
  %2328 = vmatprep.subr.bf16.mxu0 0
  %2329 = vmatpush1.bf16.xpose.msra.mxu0 0
  %2330 = vmatprep.subr.bf16.mxu0 0
  %2331 = vmatpush1.bf16.xpose.msra.mxu0 0
  %2332 = vmatprep.subr.bf16.mxu0 0
  %2333 = vmatpush1.bf16.xpose.msra.mxu0 0
  %2334 = vmatprep.subr.bf16.mxu0 0
  %2335 = vmatpush1.bf16.xpose.msra.mxu0 0
  %2336 = vmatprep.mubr.bf16.mxu0 0
  %2337 = vmatmul.mubr.bf16.gmra.mrb[0].mxu0 %v2281
  %v2338 = vpop.f32.mrb[0].mxu0
  %v2339 = vadd.f32 0.0, %v2338
  %v2340 = vpop.f32.mrb[0].mxu0
  %v2341 = vpop.f32.mrb[0].mxu0
  %v2342 = vadd.f32 0.0, %v2341
  %v2343 = vpop.f32.mrb[0].mxu0
  %2344 = vmatprep.mubr.bf16.mxu0 0
  %2345 = vmatmul.mubr.bf16.gmra.mrb[0].mxu0 %v2284
  %v2346 = vpop.f32.mrb[0].mxu0
  %v2347 = vadd.f32 0.0, %v2346
  %v2348 = vpop.f32.mrb[0].mxu0
  %v2349 = vpop.f32.mrb[0].mxu0
  %v2350 = vadd.f32 0.0, %v2349
  %v2351 = vpop.f32.mrb[0].mxu0
  %2352 = vmatprep.mubr.bf16.mxu0 0
  %2353 = vmatmul.mubr.bf16.gmra.mrb[0].mxu0 %v2287
  %v2354 = vpop.f32.mrb[0].mxu0
  %v2355 = vadd.f32 0.0, %v2354
  %v2356 = vpop.f32.mrb[0].mxu0
  %v2357 = vpop.f32.mrb[0].mxu0
  %v2358 = vadd.f32 0.0, %v2357
  %v2359 = vpop.f32.mrb[0].mxu0
  %2360 = vmatprep.mubr.bf16.mxu0 0
  %2361 = vmatmul.mubr.bf16.gmra.mrb[0].mxu0 %v2290
  %v2362 = vpop.f32.mrb[0].mxu0
  %v2363 = vadd.f32 0.0, %v2362
  %v2364 = vpop.f32.mrb[0].mxu0
  %v2365 = vpop.f32.mrb[0].mxu0
  %v2366 = vadd.f32 0.0, %v2365
  %v2367 = vpop.f32.mrb[0].mxu0
  %2368 = vdwg.mxu0
  %v2369 = vsel %vm652, %v2234, -inf
  %2370 = vmax.xlane.f32.xlu0 %v2369
  %v2371 = vpop.xlane.xlu0 %2370
  %v2372 = vsel %vm652, %v2237, -inf
  %2373 = vmax.xlane.f32.xlu0 %v2372
  %v2374 = vpop.xlane.xlu0 %2373
  %v2375 = vsel %vm652, %v2242, -inf
  %2376 = vmax.xlane.f32.xlu0 %v2375
  %v2377 = vpop.xlane.xlu0 %2376
  %v2378 = vsel %vm652, %v2245, -inf
  %2379 = vmax.xlane.f32.xlu0 %v2378
  %v2380 = vpop.xlane.xlu0 %2379
  %v2381 = vsel %vm652, %v2250, -inf
  %2382 = vmax.xlane.f32.xlu0 %v2381
  %v2383 = vpop.xlane.xlu0 %2382
  %v2384 = vsel %vm652, %v2253, -inf
  %2385 = vmax.xlane.f32.xlu0 %v2384
  %v2386 = vpop.xlane.xlu0 %2385
  %v2387 = vsel %vm652, %v2258, -inf
  %2388 = vmax.xlane.f32.xlu0 %v2387
  %v2389 = vpop.xlane.xlu0 %2388
  %v2390 = vsel %vm652, %v2261, -inf
  %2391 = vmax.xlane.f32.xlu0 %v2390
  %v2392 = vpop.xlane.xlu0 %2391
  %v2393 = vsel %vm652, %v2339, -inf
  %2394 = vmax.xlane.f32.xlu0 %v2393
  %v2395 = vpop.xlane.xlu0 %2394
  %v2396 = vsel %vm652, %v2342, -inf
  %2397 = vmax.xlane.f32.xlu0 %v2396
  %v2398 = vpop.xlane.xlu0 %2397
  %v2399 = vsel %vm652, %v2347, -inf
  %2400 = vmax.xlane.f32.xlu0 %v2399
  %v2401 = vpop.xlane.xlu0 %2400
  %v2402 = vsel %vm652, %v2350, -inf
  %2403 = vmax.xlane.f32.xlu0 %v2402
  %v2404 = vpop.xlane.xlu0 %2403
  %v2405 = vsel %vm652, %v2355, -inf
  %2406 = vmax.xlane.f32.xlu0 %v2405
  %v2407 = vpop.xlane.xlu0 %2406
  %v2408 = vsel %vm652, %v2358, -inf
  %2409 = vmax.xlane.f32.xlu0 %v2408
  %v2410 = vpop.xlane.xlu0 %2409
  %v2411 = vsel %vm652, %v2363, -inf
  %2412 = vmax.xlane.f32.xlu0 %v2411
  %v2413 = vpop.xlane.xlu0 %2412
  %v2414 = vsel %vm652, %v2366, -inf
  %2415 = vmax.xlane.f32.xlu0 %v2414
  %v2416 = vpop.xlane.xlu0 %2415
  %v2417 = vsub.f32 %v2234, %v2371
  %v2418 = vsub.f32 %v2237, %v2374
  %v2419 = vsub.f32 %v2242, %v2377
  %v2420 = vsub.f32 %v2245, %v2380
  %v2421 = vsub.f32 %v2250, %v2383
  %v2422 = vsub.f32 %v2253, %v2386
  %v2423 = vsub.f32 %v2258, %v2389
  %v2424 = vsub.f32 %v2261, %v2392
  %v2425 = vsub.f32 %v2339, %v2395
  %v2426 = vsub.f32 %v2342, %v2398
  %v2427 = vsub.f32 %v2347, %v2401
  %v2428 = vsub.f32 %v2350, %v2404
  %v2429 = vsub.f32 %v2355, %v2407
  %v2430 = vsub.f32 %v2358, %v2410
  %v2431 = vsub.f32 %v2363, %v2413
  %v2432 = vsub.f32 %v2366, %v2416
  %v2433 = vmul.f32 %v2417, 1.442695
  %v2434 = vpow.pop %v2433
  %v2435 = vmul.f32 %v2418, 1.442695
  %v2436 = vpow.pop %v2435
  %v2437 = vmul.f32 %v2419, 1.442695
  %v2438 = vpow.pop %v2437
  %v2439 = vmul.f32 %v2420, 1.442695
  %v2440 = vpow.pop %v2439
  %v2441 = vmul.f32 %v2421, 1.442695
  %v2442 = vpow.pop %v2441
  %v2443 = vmul.f32 %v2422, 1.442695
  %v2444 = vpow.pop %v2443
  %v2445 = vmul.f32 %v2423, 1.442695
  %v2446 = vpow.pop %v2445
  %v2447 = vmul.f32 %v2424, 1.442695
  %v2448 = vpow.pop %v2447
  %v2449 = vmul.f32 %v2425, 1.442695
  %v2450 = vpow.pop %v2449
  %v2451 = vmul.f32 %v2426, 1.442695
  %v2452 = vpow.pop %v2451
  %v2453 = vmul.f32 %v2427, 1.442695
  %v2454 = vpow.pop %v2453
  %v2455 = vmul.f32 %v2428, 1.442695
  %v2456 = vpow.pop %v2455
  %v2457 = vmul.f32 %v2429, 1.442695
  %v2458 = vpow.pop %v2457
  %v2459 = vmul.f32 %v2430, 1.442695
  %v2460 = vpow.pop %v2459
  %v2461 = vmul.f32 %v2431, 1.442695
  %v2462 = vpow.pop %v2461
  %v2463 = vmul.f32 %v2432, 1.442695
  %v2464 = vpow.pop %v2463
  %v2465 = vsel %vm652, %v2434, 0.0
  %2466 = vadd.xlane.f32.xlu0 %v2465
  %v2467 = vpop.xlane.xlu0 %2466
  %v2468 = vsel %vm652, %v2436, 0.0
  %2469 = vadd.xlane.f32.xlu0 %v2468
  %v2470 = vpop.xlane.xlu0 %2469
  %v2471 = vsel %vm652, %v2438, 0.0
  %2472 = vadd.xlane.f32.xlu0 %v2471
  %v2473 = vpop.xlane.xlu0 %2472
  %v2474 = vsel %vm652, %v2440, 0.0
  %2475 = vadd.xlane.f32.xlu0 %v2474
  %v2476 = vpop.xlane.xlu0 %2475
  %v2477 = vsel %vm652, %v2442, 0.0
  %2478 = vadd.xlane.f32.xlu0 %v2477
  %v2479 = vpop.xlane.xlu0 %2478
  %v2480 = vsel %vm652, %v2444, 0.0
  %2481 = vadd.xlane.f32.xlu0 %v2480
  %v2482 = vpop.xlane.xlu0 %2481
  %v2483 = vsel %vm652, %v2446, 0.0
  %2484 = vadd.xlane.f32.xlu0 %v2483
  %v2485 = vpop.xlane.xlu0 %2484
  %v2486 = vsel %vm652, %v2448, 0.0
  %2487 = vadd.xlane.f32.xlu0 %v2486
  %v2488 = vpop.xlane.xlu0 %2487
  %v2489 = vsel %vm652, %v2450, 0.0
  %2490 = vadd.xlane.f32.xlu0 %v2489
  %v2491 = vpop.xlane.xlu0 %2490
  %v2492 = vsel %vm652, %v2452, 0.0
  %2493 = vadd.xlane.f32.xlu0 %v2492
  %v2494 = vpop.xlane.xlu0 %2493
  %v2495 = vsel %vm652, %v2454, 0.0
  %2496 = vadd.xlane.f32.xlu0 %v2495
  %v2497 = vpop.xlane.xlu0 %2496
  %v2498 = vsel %vm652, %v2456, 0.0
  %2499 = vadd.xlane.f32.xlu0 %v2498
  %v2500 = vpop.xlane.xlu0 %2499
  %v2501 = vsel %vm652, %v2458, 0.0
  %2502 = vadd.xlane.f32.xlu0 %v2501
  %v2503 = vpop.xlane.xlu0 %2502
  %v2504 = vsel %vm652, %v2460, 0.0
  %2505 = vadd.xlane.f32.xlu0 %v2504
  %v2506 = vpop.xlane.xlu0 %2505
  %v2507 = vsel %vm652, %v2462, 0.0
  %2508 = vadd.xlane.f32.xlu0 %v2507
  %v2509 = vpop.xlane.xlu0 %2508
  %v2510 = vsel %vm652, %v2464, 0.0
  %2511 = vadd.xlane.f32.xlu0 %v2510
  %v2512 = vpop.xlane.xlu0 %2511
  %v2513 = vpack.c.bf16 %v2436, %v2434
  %v2514 = vpack.c.bf16 %v2440, %v2438
  %v2515 = vpack.c.bf16 %v2444, %v2442
  %v2516 = vpack.c.bf16 %v2448, %v2446
  %v2517 = vpack.c.bf16 %v2452, %v2450
  %v2518 = vpack.c.bf16 %v2456, %v2454
  %v2519 = vpack.c.bf16 %v2460, %v2458
  %v2520 = vpack.c.bf16 %v2464, %v2462
  %2521 = vrot.lane.b32.xlu0 %v441, 40
  %v2522 = vpop.permute.xlu0 %2521
  %2523 = vrot.lane.b32.xlu0 %v442, 40
  %v2524 = vpop.permute.xlu0 %2523
  %2525 = vrot.lane.b32.xlu0 %v443, 40
  %v2526 = vpop.permute.xlu0 %2525
  %2527 = vrot.lane.b32.xlu0 %v444, 40
  %v2528 = vpop.permute.xlu0 %2527
  %v2534 = vsel %vm652, %v2513, 0
  %v2537 = vsel %vm652, %v2514, 0
  %v2540 = vsel %vm652, %v2515, 0
  %v2543 = vsel %vm652, %v2516, 0
  %2545 = vmatprep.subr.bf16.mxu0 0
  %2546 = vmatpush1.bf16.msra.mxu0 %v2522
  %2547 = vmatprep.subr.bf16.mxu0 0
  %2548 = vmatpush1.bf16.msra.mxu0 %v2524
  %2549 = vmatprep.subr.bf16.mxu0 0
  %2550 = vmatpush1.bf16.msra.mxu0 %v2526
  %2551 = vmatprep.subr.bf16.mxu0 0
  %2552 = vmatpush1.bf16.msra.mxu0 %v2528
  %2553 = vmatprep.subr.bf16.mxu0 0
  %2554 = vmatpush1.bf16.msra.mxu0 0
  %2555 = vmatprep.subr.bf16.mxu0 0
  %2556 = vmatpush1.bf16.msra.mxu0 0
  %2557 = vmatprep.subr.bf16.mxu0 0
  %2558 = vmatpush1.bf16.msra.mxu0 0
  %2559 = vmatprep.subr.bf16.mxu0 0
  %2560 = vmatpush1.bf16.msra.mxu0 0
  %2561 = vmatprep.subr.bf16.mxu0 0
  %2562 = vmatpush1.bf16.msra.mxu0 0
  %2563 = vmatprep.subr.bf16.mxu0 0
  %2564 = vmatpush1.bf16.msra.mxu0 0
  %2565 = vmatprep.subr.bf16.mxu0 0
  %2566 = vmatpush1.bf16.msra.mxu0 0
  %2567 = vmatprep.subr.bf16.mxu0 0
  %2568 = vmatpush1.bf16.msra.mxu0 0
  %2569 = vmatprep.subr.bf16.mxu0 0
  %2570 = vmatpush1.bf16.msra.mxu0 0
  %2571 = vmatprep.subr.bf16.mxu0 0
  %2572 = vmatpush1.bf16.msra.mxu0 0
  %2573 = vmatprep.subr.bf16.mxu0 0
  %2574 = vmatpush1.bf16.msra.mxu0 0
  %2575 = vmatprep.subr.bf16.mxu0 0
  %2576 = vmatpush1.bf16.msra.mxu0 0
  %2577 = vmatprep.mubr.bf16.mxu0 0
  %2578 = vmatmul.mubr.bf16.gmra.mrb[0].mxu0 %v2534
  %v2579 = vpop.f32.mrb[0].mxu0
  %v2580 = vadd.f32 0.0, %v2579
  %v2581 = vpop.f32.mrb[0].mxu0
  %v2582 = vpop.f32.mrb[0].mxu0
  %v2583 = vadd.f32 0.0, %v2582
  %v2584 = vpop.f32.mrb[0].mxu0
  %2585 = vmatprep.mubr.bf16.mxu0 0
  %2586 = vmatmul.mubr.bf16.gmra.mrb[0].mxu0 %v2537
  %v2587 = vpop.f32.mrb[0].mxu0
  %v2588 = vadd.f32 0.0, %v2587
  %v2589 = vpop.f32.mrb[0].mxu0
  %v2590 = vpop.f32.mrb[0].mxu0
  %v2591 = vadd.f32 0.0, %v2590
  %v2592 = vpop.f32.mrb[0].mxu0
  %2593 = vmatprep.mubr.bf16.mxu0 0
  %2594 = vmatmul.mubr.bf16.gmra.mrb[0].mxu0 %v2540
  %v2595 = vpop.f32.mrb[0].mxu0
  %v2596 = vadd.f32 0.0, %v2595
  %v2597 = vpop.f32.mrb[0].mxu0
  %v2598 = vpop.f32.mrb[0].mxu0
  %v2599 = vadd.f32 0.0, %v2598
  %v2600 = vpop.f32.mrb[0].mxu0
  %2601 = vmatprep.mubr.bf16.mxu0 0
  %2602 = vmatmul.mubr.bf16.gmra.mrb[0].mxu0 %v2543
  %v2603 = vpop.f32.mrb[0].mxu0
  %v2604 = vadd.f32 0.0, %v2603
  %v2605 = vpop.f32.mrb[0].mxu0
  %v2606 = vpop.f32.mrb[0].mxu0
  %v2607 = vadd.f32 0.0, %v2606
  %v2608 = vpop.f32.mrb[0].mxu0
  %2609 = vdwg.mxu0
  %2610 = vrot.lane.b32.xlu0 %v445, 40
  %v2611 = vpop.permute.xlu0 %2610
  %2612 = vrot.lane.b32.xlu0 %v446, 40
  %v2613 = vpop.permute.xlu0 %2612
  %2614 = vrot.lane.b32.xlu0 %v447, 40
  %v2615 = vpop.permute.xlu0 %2614
  %2616 = vrot.lane.b32.xlu0 %v448, 40
  %v2617 = vpop.permute.xlu0 %2616
  %v2623 = vsel %vm652, %v2517, 0
  %v2626 = vsel %vm652, %v2518, 0
  %v2629 = vsel %vm652, %v2519, 0
  %v2632 = vsel %vm652, %v2520, 0
  %2634 = vmatprep.subr.bf16.mxu0 0
  %2635 = vmatpush1.bf16.msra.mxu0 %v2611
  %2636 = vmatprep.subr.bf16.mxu0 0
  %2637 = vmatpush1.bf16.msra.mxu0 %v2613
  %2638 = vmatprep.subr.bf16.mxu0 0
  %2639 = vmatpush1.bf16.msra.mxu0 %v2615
  %2640 = vmatprep.subr.bf16.mxu0 0
  %2641 = vmatpush1.bf16.msra.mxu0 %v2617
  %2642 = vmatprep.subr.bf16.mxu0 0
  %2643 = vmatpush1.bf16.msra.mxu0 0
  %2644 = vmatprep.subr.bf16.mxu0 0
  %2645 = vmatpush1.bf16.msra.mxu0 0
  %2646 = vmatprep.subr.bf16.mxu0 0
  %2647 = vmatpush1.bf16.msra.mxu0 0
  %2648 = vmatprep.subr.bf16.mxu0 0
  %2649 = vmatpush1.bf16.msra.mxu0 0
  %2650 = vmatprep.subr.bf16.mxu0 0
  %2651 = vmatpush1.bf16.msra.mxu0 0
  %2652 = vmatprep.subr.bf16.mxu0 0
  %2653 = vmatpush1.bf16.msra.mxu0 0
  %2654 = vmatprep.subr.bf16.mxu0 0
  %2655 = vmatpush1.bf16.msra.mxu0 0
  %2656 = vmatprep.subr.bf16.mxu0 0
  %2657 = vmatpush1.bf16.msra.mxu0 0
  %2658 = vmatprep.subr.bf16.mxu0 0
  %2659 = vmatpush1.bf16.msra.mxu0 0
  %2660 = vmatprep.subr.bf16.mxu0 0
  %2661 = vmatpush1.bf16.msra.mxu0 0
  %2662 = vmatprep.subr.bf16.mxu0 0
  %2663 = vmatpush1.bf16.msra.mxu0 0
  %2664 = vmatprep.subr.bf16.mxu0 0
  %2665 = vmatpush1.bf16.msra.mxu0 0
  %2666 = vmatprep.mubr.bf16.mxu0 0
  %2667 = vmatmul.mubr.bf16.gmra.mrb[0].mxu0 %v2623
  %v2668 = vpop.f32.mrb[0].mxu0
  %v2669 = vadd.f32 0.0, %v2668
  %v2670 = vpop.f32.mrb[0].mxu0
  %v2671 = vpop.f32.mrb[0].mxu0
  %v2672 = vadd.f32 0.0, %v2671
  %v2673 = vpop.f32.mrb[0].mxu0
  %2674 = vmatprep.mubr.bf16.mxu0 0
  %2675 = vmatmul.mubr.bf16.gmra.mrb[0].mxu0 %v2626
  %v2676 = vpop.f32.mrb[0].mxu0
  %v2677 = vadd.f32 0.0, %v2676
  %v2678 = vpop.f32.mrb[0].mxu0
  %v2679 = vpop.f32.mrb[0].mxu0
  %v2680 = vadd.f32 0.0, %v2679
  %v2681 = vpop.f32.mrb[0].mxu0
  %2682 = vmatprep.mubr.bf16.mxu0 0
  %2683 = vmatmul.mubr.bf16.gmra.mrb[0].mxu0 %v2629
  %v2684 = vpop.f32.mrb[0].mxu0
  %v2685 = vadd.f32 0.0, %v2684
  %v2686 = vpop.f32.mrb[0].mxu0
  %v2687 = vpop.f32.mrb[0].mxu0
  %v2688 = vadd.f32 0.0, %v2687
  %v2689 = vpop.f32.mrb[0].mxu0
  %2690 = vmatprep.mubr.bf16.mxu0 0
  %2691 = vmatmul.mubr.bf16.gmra.mrb[0].mxu0 %v2632
  %v2692 = vpop.f32.mrb[0].mxu0
  %v2693 = vadd.f32 0.0, %v2692
  %v2694 = vpop.f32.mrb[0].mxu0
  %v2695 = vpop.f32.mrb[0].mxu0
  %v2696 = vadd.f32 0.0, %v2695
  %v2697 = vpop.f32.mrb[0].mxu0
  %2698 = vdwg.mxu0
  %v2699 = vrcp.pop %v2467
  %v2700 = vrcp.pop %v2470
  %v2701 = vrcp.pop %v2473
  %v2702 = vrcp.pop %v2476
  %v2703 = vrcp.pop %v2479
  %v2704 = vrcp.pop %v2482
  %v2705 = vrcp.pop %v2485
  %v2706 = vrcp.pop %v2488
  %v2707 = vrcp.pop %v2491
  %v2708 = vrcp.pop %v2494
  %v2709 = vrcp.pop %v2497
  %v2710 = vrcp.pop %v2500
  %v2711 = vrcp.pop %v2503
  %v2712 = vrcp.pop %v2506
  %v2713 = vrcp.pop %v2509
  %v2714 = vrcp.pop %v2512
  %v2715 = vmul.f32 %v2580, %v2699
  %v2716 = vmul.f32 %v2583, %v2700
  %v2717 = vmul.f32 %v2588, %v2701
  %v2718 = vmul.f32 %v2591, %v2702
  %v2719 = vmul.f32 %v2596, %v2703
  %v2720 = vmul.f32 %v2599, %v2704
  %v2721 = vmul.f32 %v2604, %v2705
  %v2722 = vmul.f32 %v2607, %v2706
  %v2723 = vmul.f32 %v2669, %v2707
  %v2724 = vmul.f32 %v2672, %v2708
  %v2725 = vmul.f32 %v2677, %v2709
  %v2726 = vmul.f32 %v2680, %v2710
  %v2727 = vmul.f32 %v2685, %v2711
  %v2728 = vmul.f32 %v2688, %v2712
  %v2729 = vmul.f32 %v2693, %v2713
  %v2730 = vmul.f32 %v2696, %v2714
  %2747 = vrot.lane.b32.xlu0 %v1571, 8
  %v2748 = vpop.permute.xlu0 %2747
  %2749 = vrot.lane.b32.xlu0 %v1572, 8
  %v2750 = vpop.permute.xlu0 %2749
  %2751 = vrot.lane.b32.xlu0 %v1573, 8
  %v2752 = vpop.permute.xlu0 %2751
  %2753 = vrot.lane.b32.xlu0 %v1574, 8
  %v2754 = vpop.permute.xlu0 %2753
  %2755 = vrot.lane.b32.xlu0 %v1575, 8
  %v2756 = vpop.permute.xlu0 %2755
  %2757 = vrot.lane.b32.xlu0 %v1576, 8
  %v2758 = vpop.permute.xlu0 %2757
  %2759 = vrot.lane.b32.xlu0 %v1577, 8
  %v2760 = vpop.permute.xlu0 %2759
  %2761 = vrot.lane.b32.xlu0 %v1578, 8
  %v2762 = vpop.permute.xlu0 %2761
  %2763 = vrot.lane.b32.xlu0 %v1579, 8
  %v2764 = vpop.permute.xlu0 %2763
  %2765 = vrot.lane.b32.xlu0 %v1580, 8
  %v2766 = vpop.permute.xlu0 %2765
  %2767 = vrot.lane.b32.xlu0 %v1581, 8
  %v2768 = vpop.permute.xlu0 %2767
  %2769 = vrot.lane.b32.xlu0 %v1582, 8
  %v2770 = vpop.permute.xlu0 %2769
  %2771 = vrot.lane.b32.xlu0 %v1583, 8
  %v2772 = vpop.permute.xlu0 %2771
  %2773 = vrot.lane.b32.xlu0 %v1584, 8
  %v2774 = vpop.permute.xlu0 %2773
  %2775 = vrot.lane.b32.xlu0 %v1585, 8
  %v2776 = vpop.permute.xlu0 %2775
  %2777 = vrot.lane.b32.xlu0 %v1586, 8
  %v2778 = vpop.permute.xlu0 %2777
  %2811 = vrot.lane.b32.xlu0 %v2143, 16
  %v2812 = vpop.permute.xlu0 %2811
  %2813 = vrot.lane.b32.xlu0 %v2144, 16
  %v2814 = vpop.permute.xlu0 %2813
  %2815 = vrot.lane.b32.xlu0 %v2145, 16
  %v2816 = vpop.permute.xlu0 %2815
  %2817 = vrot.lane.b32.xlu0 %v2146, 16
  %v2818 = vpop.permute.xlu0 %2817
  %2819 = vrot.lane.b32.xlu0 %v2147, 16
  %v2820 = vpop.permute.xlu0 %2819
  %2821 = vrot.lane.b32.xlu0 %v2148, 16
  %v2822 = vpop.permute.xlu0 %2821
  %2823 = vrot.lane.b32.xlu0 %v2149, 16
  %v2824 = vpop.permute.xlu0 %2823
  %2825 = vrot.lane.b32.xlu0 %v2150, 16
  %v2826 = vpop.permute.xlu0 %2825
  %2827 = vrot.lane.b32.xlu0 %v2151, 16
  %v2828 = vpop.permute.xlu0 %2827
  %2829 = vrot.lane.b32.xlu0 %v2152, 16
  %v2830 = vpop.permute.xlu0 %2829
  %2831 = vrot.lane.b32.xlu0 %v2153, 16
  %v2832 = vpop.permute.xlu0 %2831
  %2833 = vrot.lane.b32.xlu0 %v2154, 16
  %v2834 = vpop.permute.xlu0 %2833
  %2835 = vrot.lane.b32.xlu0 %v2155, 16
  %v2836 = vpop.permute.xlu0 %2835
  %2837 = vrot.lane.b32.xlu0 %v2156, 16
  %v2838 = vpop.permute.xlu0 %2837
  %2839 = vrot.lane.b32.xlu0 %v2157, 16
  %v2840 = vpop.permute.xlu0 %2839
  %2841 = vrot.lane.b32.xlu0 %v2158, 16
  %v2842 = vpop.permute.xlu0 %2841
  %2875 = vrot.lane.b32.xlu0 %v2715, 24
  %v2876 = vpop.permute.xlu0 %2875
  %2877 = vrot.lane.b32.xlu0 %v2716, 24
  %v2878 = vpop.permute.xlu0 %2877
  %2879 = vrot.lane.b32.xlu0 %v2717, 24
  %v2880 = vpop.permute.xlu0 %2879
  %2881 = vrot.lane.b32.xlu0 %v2718, 24
  %v2882 = vpop.permute.xlu0 %2881
  %2883 = vrot.lane.b32.xlu0 %v2719, 24
  %v2884 = vpop.permute.xlu0 %2883
  %2885 = vrot.lane.b32.xlu0 %v2720, 24
  %v2886 = vpop.permute.xlu0 %2885
  %2887 = vrot.lane.b32.xlu0 %v2721, 24
  %v2888 = vpop.permute.xlu0 %2887
  %2889 = vrot.lane.b32.xlu0 %v2722, 24
  %v2890 = vpop.permute.xlu0 %2889
  %2891 = vrot.lane.b32.xlu0 %v2723, 24
  %v2892 = vpop.permute.xlu0 %2891
  %2893 = vrot.lane.b32.xlu0 %v2724, 24
  %v2894 = vpop.permute.xlu0 %2893
  %2895 = vrot.lane.b32.xlu0 %v2725, 24
  %v2896 = vpop.permute.xlu0 %2895
  %2897 = vrot.lane.b32.xlu0 %v2726, 24
  %v2898 = vpop.permute.xlu0 %2897
  %2899 = vrot.lane.b32.xlu0 %v2727, 24
  %v2900 = vpop.permute.xlu0 %2899
  %2901 = vrot.lane.b32.xlu0 %v2728, 24
  %v2902 = vpop.permute.xlu0 %2901
  %2903 = vrot.lane.b32.xlu0 %v2729, 24
  %v2904 = vpop.permute.xlu0 %2903
  %2905 = vrot.lane.b32.xlu0 %v2730, 24
  %v2906 = vpop.permute.xlu0 %2905
  %v2923 = vsel %vm461, %v999, %v2748
  %v2924 = vsel %vm461, %v1000, %v2750
  %v2925 = vsel %vm461, %v1001, %v2752
  %v2926 = vsel %vm461, %v1002, %v2754
  %v2927 = vsel %vm461, %v1003, %v2756
  %v2928 = vsel %vm461, %v1004, %v2758
  %v2929 = vsel %vm461, %v1005, %v2760
  %v2930 = vsel %vm461, %v1006, %v2762
  %v2931 = vsel %vm461, %v1007, %v2764
  %v2932 = vsel %vm461, %v1008, %v2766
  %v2933 = vsel %vm461, %v1009, %v2768
  %v2934 = vsel %vm461, %v1010, %v2770
  %v2935 = vsel %vm461, %v1011, %v2772
  %v2936 = vsel %vm461, %v1012, %v2774
  %v2937 = vsel %vm461, %v1013, %v2776
  %v2938 = vsel %vm461, %v1014, %v2778
  %vm2939 = vcmask 130048
  %v2940 = vsel %vm2939, %v2923, %v2812
  %v2941 = vsel %vm2939, %v2924, %v2814
  %v2942 = vsel %vm2939, %v2925, %v2816
  %v2943 = vsel %vm2939, %v2926, %v2818
  %v2944 = vsel %vm2939, %v2927, %v2820
  %v2945 = vsel %vm2939, %v2928, %v2822
  %v2946 = vsel %vm2939, %v2929, %v2824
  %v2947 = vsel %vm2939, %v2930, %v2826
  %v2948 = vsel %vm2939, %v2931, %v2828
  %v2949 = vsel %vm2939, %v2932, %v2830
  %v2950 = vsel %vm2939, %v2933, %v2832
  %v2951 = vsel %vm2939, %v2934, %v2834
  %v2952 = vsel %vm2939, %v2935, %v2836
  %v2953 = vsel %vm2939, %v2936, %v2838
  %v2954 = vsel %vm2939, %v2937, %v2840
  %v2955 = vsel %vm2939, %v2938, %v2842
  %vm2956 = vcmask 195584
  %v2957 = vsel %vm2956, %v2940, %v2876
  %v2958 = vsel %vm2956, %v2941, %v2878
  %v2959 = vsel %vm2956, %v2942, %v2880
  %v2960 = vsel %vm2956, %v2943, %v2882
  %v2961 = vsel %vm2956, %v2944, %v2884
  %v2962 = vsel %vm2956, %v2945, %v2886
  %v2963 = vsel %vm2956, %v2946, %v2888
  %v2964 = vsel %vm2956, %v2947, %v2890
  %v2965 = vsel %vm2956, %v2948, %v2892
  %v2966 = vsel %vm2956, %v2949, %v2894
  %v2967 = vsel %vm2956, %v2950, %v2896
  %v2968 = vsel %vm2956, %v2951, %v2898
  %v2969 = vsel %vm2956, %v2952, %v2900
  %v2970 = vsel %vm2956, %v2953, %v2902
  %v2971 = vsel %vm2956, %v2954, %v2904
  %v2972 = vsel %vm2956, %v2955, %v2906
  %v2973 = vpack.c.bf16 %v2958, %v2957
  %v2974 = vpack.c.bf16 %v2960, %v2959
  %v2975 = vpack.c.bf16 %v2962, %v2961
  %v2976 = vpack.c.bf16 %v2964, %v2963
  %v2977 = vpack.c.bf16 %v2966, %v2965
  %v2978 = vpack.c.bf16 %v2968, %v2967
  %v2979 = vpack.c.bf16 %v2970, %v2969
  %v2980 = vpack.c.bf16 %v2972, %v2971
  %v2981 = vld [vmem:[%s2] sm:$0xf]
  %v2982 = vld [vmem:[%s2 + $0x4] sm:$0xf]
  %v2983 = vld [vmem:[%s2 + $0x8] sm:$0xf]
  %v2984 = vld [vmem:[%s2 + $0xc] sm:$0xf]
  %v2985 = vld [vmem:[%s4 + $0x2] sm:$0x1]
  %v2986 = vlaneseq
  %v2987 = vshrl.u32 %v2986, 7
  %v2988 = vsub.s32 0, %v2987
  %v2989 = vrot.slane %v2985, %v2988
  %v2994 = vunpack.c.l.b16 %v2981
  %v2995 = vunpack.c.l.b16 %v2982
  %v2996 = vunpack.c.l.b16 %v2983
  %v2997 = vunpack.c.l.b16 %v2984
  %v2998 = vpack.c.b16 %v2995, %v2994
  %v2999 = vpack.c.b16 %v2997, %v2996
  %v3003 = vsel %vm39, %v2973, 0
  %v3006 = vsel %vm39, %v2974, 0
  %v3009 = vsel %vm39, %v2975, 0
  %v3012 = vsel %vm39, %v2976, 0
  %v3015 = vsel %vm39, %v2977, 0
  %v3018 = vsel %vm39, %v2978, 0
  %v3021 = vsel %vm39, %v2979, 0
  %v3024 = vsel %vm39, %v2980, 0
  %3026 = vmatprep.subr.bf16.mxu0 0
  %3027 = vmatpush1.bf16.msra.mxu0 %v2998
  %3028 = vmatprep.subr.bf16.mxu0 0
  %3029 = vmatpush1.bf16.msra.mxu0 %v2999
  %3030 = vmatprep.subr.bf16.mxu0 0
  %3031 = vmatpush1.bf16.msra.mxu0 0
  %3032 = vmatprep.subr.bf16.mxu0 0
  %3033 = vmatpush1.bf16.msra.mxu0 0
  %3034 = vmatprep.subr.bf16.mxu0 0
  %3035 = vmatpush1.bf16.msra.mxu0 0
  %3036 = vmatprep.subr.bf16.mxu0 0
  %3037 = vmatpush1.bf16.msra.mxu0 0
  %3038 = vmatprep.subr.bf16.mxu0 0
  %3039 = vmatpush1.bf16.msra.mxu0 0
  %3040 = vmatprep.subr.bf16.mxu0 0
  %3041 = vmatpush1.bf16.msra.mxu0 0
  %3042 = vmatprep.subr.bf16.mxu0 0
  %3043 = vmatpush1.bf16.msra.mxu0 0
  %3044 = vmatprep.subr.bf16.mxu0 0
  %3045 = vmatpush1.bf16.msra.mxu0 0
  %3046 = vmatprep.subr.bf16.mxu0 0
  %3047 = vmatpush1.bf16.msra.mxu0 0
  %3048 = vmatprep.subr.bf16.mxu0 0
  %3049 = vmatpush1.bf16.msra.mxu0 0
  %3050 = vmatprep.subr.bf16.mxu0 0
  %3051 = vmatpush1.bf16.msra.mxu0 0
  %3052 = vmatprep.subr.bf16.mxu0 0
  %3053 = vmatpush1.bf16.msra.mxu0 0
  %3054 = vmatprep.subr.bf16.mxu0 0
  %3055 = vmatpush1.bf16.msra.mxu0 0
  %3056 = vmatprep.subr.bf16.mxu0 0
  %3057 = vmatpush1.bf16.msra.mxu0 0
  %3058 = vmatprep.mubr.bf16.mxu0 0
  %3059 = vmatmul.mubr.bf16.gmra.mrb[0].mxu0 %v3003
  %v3060 = vpop.f32.mrb[0].mxu0
  %v3061 = vadd.f32 %v2989, %v3060
  %v3062 = vpop.f32.mrb[0].mxu0
  %v3063 = vpop.f32.mrb[0].mxu0
  %v3064 = vadd.f32 %v2989, %v3063
  %v3065 = vpop.f32.mrb[0].mxu0
  %3066 = vmatprep.mubr.bf16.mxu0 0
  %3067 = vmatmul.mubr.bf16.gmra.mrb[0].mxu0 %v3006
  %v3068 = vpop.f32.mrb[0].mxu0
  %v3069 = vadd.f32 %v2989, %v3068
  %v3070 = vpop.f32.mrb[0].mxu0
  %v3071 = vpop.f32.mrb[0].mxu0
  %v3072 = vadd.f32 %v2989, %v3071
  %v3073 = vpop.f32.mrb[0].mxu0
  %3074 = vmatprep.mubr.bf16.mxu0 0
  %3075 = vmatmul.mubr.bf16.gmra.mrb[0].mxu0 %v3009
  %v3076 = vpop.f32.mrb[0].mxu0
  %v3077 = vadd.f32 %v2989, %v3076
  %v3078 = vpop.f32.mrb[0].mxu0
  %v3079 = vpop.f32.mrb[0].mxu0
  %v3080 = vadd.f32 %v2989, %v3079
  %v3081 = vpop.f32.mrb[0].mxu0
  %3082 = vmatprep.mubr.bf16.mxu0 0
  %3083 = vmatmul.mubr.bf16.gmra.mrb[0].mxu0 %v3012
  %v3084 = vpop.f32.mrb[0].mxu0
  %v3085 = vadd.f32 %v2989, %v3084
  %v3086 = vpop.f32.mrb[0].mxu0
  %v3087 = vpop.f32.mrb[0].mxu0
  %v3088 = vadd.f32 %v2989, %v3087
  %v3089 = vpop.f32.mrb[0].mxu0
  %3090 = vmatprep.mubr.bf16.mxu0 0
  %3091 = vmatmul.mubr.bf16.gmra.mrb[0].mxu0 %v3015
  %v3092 = vpop.f32.mrb[0].mxu0
  %v3093 = vadd.f32 %v2989, %v3092
  %v3094 = vpop.f32.mrb[0].mxu0
  %v3095 = vpop.f32.mrb[0].mxu0
  %v3096 = vadd.f32 %v2989, %v3095
  %v3097 = vpop.f32.mrb[0].mxu0
  %3098 = vmatprep.mubr.bf16.mxu0 0
  %3099 = vmatmul.mubr.bf16.gmra.mrb[0].mxu0 %v3018
  %v3100 = vpop.f32.mrb[0].mxu0
  %v3101 = vadd.f32 %v2989, %v3100
  %v3102 = vpop.f32.mrb[0].mxu0
  %v3103 = vpop.f32.mrb[0].mxu0
  %v3104 = vadd.f32 %v2989, %v3103
  %v3105 = vpop.f32.mrb[0].mxu0
  %3106 = vmatprep.mubr.bf16.mxu0 0
  %3107 = vmatmul.mubr.bf16.gmra.mrb[0].mxu0 %v3021
  %v3108 = vpop.f32.mrb[0].mxu0
  %v3109 = vadd.f32 %v2989, %v3108
  %v3110 = vpop.f32.mrb[0].mxu0
  %v3111 = vpop.f32.mrb[0].mxu0
  %v3112 = vadd.f32 %v2989, %v3111
  %v3113 = vpop.f32.mrb[0].mxu0
  %3114 = vmatprep.mubr.bf16.mxu0 0
  %3115 = vmatmul.mubr.bf16.gmra.mrb[0].mxu0 %v3024
  %v3116 = vpop.f32.mrb[0].mxu0
  %v3117 = vadd.f32 %v2989, %v3116
  %v3118 = vpop.f32.mrb[0].mxu0
  %v3119 = vpop.f32.mrb[0].mxu0
  %v3120 = vadd.f32 %v2989, %v3119
  %v3121 = vpop.f32.mrb[0].mxu0
  %3122 = vdwg.mxu0
  %v3123 = vadd.f32 %v3061, %v21
  %v3124 = vadd.f32 %v3064, %v22
  %v3125 = vadd.f32 %v3069, %v23
  %v3126 = vadd.f32 %v3072, %v24
  %v3127 = vadd.f32 %v3077, %v25
  %v3128 = vadd.f32 %v3080, %v26
  %v3129 = vadd.f32 %v3085, %v27
  %v3130 = vadd.f32 %v3088, %v28
  %v3131 = vadd.f32 %v3093, %v29
  %v3132 = vadd.f32 %v3096, %v30
  %v3133 = vadd.f32 %v3101, %v31
  %v3134 = vadd.f32 %v3104, %v32
  %v3135 = vadd.f32 %v3109, %v33
  %v3136 = vadd.f32 %v3112, %v34
  %v3137 = vadd.f32 %v3117, %v35
  %v3138 = vadd.f32 %v3120, %v36
  %v3139 = vld [vmem:[%s4 + $0x3] sm:$0x1]
  %v3140 = vld [vmem:[%s4 + $0x4] sm:$0x1]
  %v3141 = vsel %vm39, %v3123, 0.0
  %3142 = vadd.xlane.f32.xlu0 %v3141
  %v3143 = vpop.xlane.xlu0 %3142
  %v3144 = vsel %vm39, %v3124, 0.0
  %3145 = vadd.xlane.f32.xlu0 %v3144
  %v3146 = vpop.xlane.xlu0 %3145
  %v3147 = vsel %vm39, %v3125, 0.0
  %3148 = vadd.xlane.f32.xlu0 %v3147
  %v3149 = vpop.xlane.xlu0 %3148
  %v3150 = vsel %vm39, %v3126, 0.0
  %3151 = vadd.xlane.f32.xlu0 %v3150
  %v3152 = vpop.xlane.xlu0 %3151
  %v3153 = vsel %vm39, %v3127, 0.0
  %3154 = vadd.xlane.f32.xlu0 %v3153
  %v3155 = vpop.xlane.xlu0 %3154
  %v3156 = vsel %vm39, %v3128, 0.0
  %3157 = vadd.xlane.f32.xlu0 %v3156
  %v3158 = vpop.xlane.xlu0 %3157
  %v3159 = vsel %vm39, %v3129, 0.0
  %3160 = vadd.xlane.f32.xlu0 %v3159
  %v3161 = vpop.xlane.xlu0 %3160
  %v3162 = vsel %vm39, %v3130, 0.0
  %3163 = vadd.xlane.f32.xlu0 %v3162
  %v3164 = vpop.xlane.xlu0 %3163
  %v3165 = vsel %vm39, %v3131, 0.0
  %3166 = vadd.xlane.f32.xlu0 %v3165
  %v3167 = vpop.xlane.xlu0 %3166
  %v3168 = vsel %vm39, %v3132, 0.0
  %3169 = vadd.xlane.f32.xlu0 %v3168
  %v3170 = vpop.xlane.xlu0 %3169
  %v3171 = vsel %vm39, %v3133, 0.0
  %3172 = vadd.xlane.f32.xlu0 %v3171
  %v3173 = vpop.xlane.xlu0 %3172
  %v3174 = vsel %vm39, %v3134, 0.0
  %3175 = vadd.xlane.f32.xlu0 %v3174
  %v3176 = vpop.xlane.xlu0 %3175
  %v3177 = vsel %vm39, %v3135, 0.0
  %3178 = vadd.xlane.f32.xlu0 %v3177
  %v3179 = vpop.xlane.xlu0 %3178
  %v3180 = vsel %vm39, %v3136, 0.0
  %3181 = vadd.xlane.f32.xlu0 %v3180
  %v3182 = vpop.xlane.xlu0 %3181
  %v3183 = vsel %vm39, %v3137, 0.0
  %3184 = vadd.xlane.f32.xlu0 %v3183
  %v3185 = vpop.xlane.xlu0 %3184
  %v3186 = vsel %vm39, %v3138, 0.0
  %3187 = vadd.xlane.f32.xlu0 %v3186
  %v3188 = vpop.xlane.xlu0 %3187
  %v3189 = vmul.f32 %v3143, %v88
  %v3190 = vmul.f32 %v3146, %v88
  %v3191 = vmul.f32 %v3149, %v88
  %v3192 = vmul.f32 %v3152, %v88
  %v3193 = vmul.f32 %v3155, %v88
  %v3194 = vmul.f32 %v3158, %v88
  %v3195 = vmul.f32 %v3161, %v88
  %v3196 = vmul.f32 %v3164, %v88
  %v3197 = vmul.f32 %v3167, %v88
  %v3198 = vmul.f32 %v3170, %v88
  %v3199 = vmul.f32 %v3173, %v88
  %v3200 = vmul.f32 %v3176, %v88
  %v3201 = vmul.f32 %v3179, %v88
  %v3202 = vmul.f32 %v3182, %v88
  %v3203 = vmul.f32 %v3185, %v88
  %v3204 = vmul.f32 %v3188, %v88
  %v3205 = vsub.f32 %v3123, %v3189
  %v3206 = vsub.f32 %v3124, %v3190
  %v3207 = vsub.f32 %v3125, %v3191
  %v3208 = vsub.f32 %v3126, %v3192
  %v3209 = vsub.f32 %v3127, %v3193
  %v3210 = vsub.f32 %v3128, %v3194
  %v3211 = vsub.f32 %v3129, %v3195
  %v3212 = vsub.f32 %v3130, %v3196
  %v3213 = vsub.f32 %v3131, %v3197
  %v3214 = vsub.f32 %v3132, %v3198
  %v3215 = vsub.f32 %v3133, %v3199
  %v3216 = vsub.f32 %v3134, %v3200
  %v3217 = vsub.f32 %v3135, %v3201
  %v3218 = vsub.f32 %v3136, %v3202
  %v3219 = vsub.f32 %v3137, %v3203
  %v3220 = vsub.f32 %v3138, %v3204
  %v3221 = vmul.f32 %v3205, %v3205
  %v3222 = vmul.f32 %v3206, %v3206
  %v3223 = vmul.f32 %v3207, %v3207
  %v3224 = vmul.f32 %v3208, %v3208
  %v3225 = vmul.f32 %v3209, %v3209
  %v3226 = vmul.f32 %v3210, %v3210
  %v3227 = vmul.f32 %v3211, %v3211
  %v3228 = vmul.f32 %v3212, %v3212
  %v3229 = vmul.f32 %v3213, %v3213
  %v3230 = vmul.f32 %v3214, %v3214
  %v3231 = vmul.f32 %v3215, %v3215
  %v3232 = vmul.f32 %v3216, %v3216
  %v3233 = vmul.f32 %v3217, %v3217
  %v3234 = vmul.f32 %v3218, %v3218
  %v3235 = vmul.f32 %v3219, %v3219
  %v3236 = vmul.f32 %v3220, %v3220
  %v3237 = vsel %vm39, %v3221, 0.0
  %3238 = vadd.xlane.f32.xlu0 %v3237
  %v3239 = vpop.xlane.xlu0 %3238
  %v3240 = vsel %vm39, %v3222, 0.0
  %3241 = vadd.xlane.f32.xlu0 %v3240
  %v3242 = vpop.xlane.xlu0 %3241
  %v3243 = vsel %vm39, %v3223, 0.0
  %3244 = vadd.xlane.f32.xlu0 %v3243
  %v3245 = vpop.xlane.xlu0 %3244
  %v3246 = vsel %vm39, %v3224, 0.0
  %3247 = vadd.xlane.f32.xlu0 %v3246
  %v3248 = vpop.xlane.xlu0 %3247
  %v3249 = vsel %vm39, %v3225, 0.0
  %3250 = vadd.xlane.f32.xlu0 %v3249
  %v3251 = vpop.xlane.xlu0 %3250
  %v3252 = vsel %vm39, %v3226, 0.0
  %3253 = vadd.xlane.f32.xlu0 %v3252
  %v3254 = vpop.xlane.xlu0 %3253
  %v3255 = vsel %vm39, %v3227, 0.0
  %3256 = vadd.xlane.f32.xlu0 %v3255
  %v3257 = vpop.xlane.xlu0 %3256
  %v3258 = vsel %vm39, %v3228, 0.0
  %3259 = vadd.xlane.f32.xlu0 %v3258
  %v3260 = vpop.xlane.xlu0 %3259
  %v3261 = vsel %vm39, %v3229, 0.0
  %3262 = vadd.xlane.f32.xlu0 %v3261
  %v3263 = vpop.xlane.xlu0 %3262
  %v3264 = vsel %vm39, %v3230, 0.0
  %3265 = vadd.xlane.f32.xlu0 %v3264
  %v3266 = vpop.xlane.xlu0 %3265
  %v3267 = vsel %vm39, %v3231, 0.0
  %3268 = vadd.xlane.f32.xlu0 %v3267
  %v3269 = vpop.xlane.xlu0 %3268
  %v3270 = vsel %vm39, %v3232, 0.0
  %3271 = vadd.xlane.f32.xlu0 %v3270
  %v3272 = vpop.xlane.xlu0 %3271
  %v3273 = vsel %vm39, %v3233, 0.0
  %3274 = vadd.xlane.f32.xlu0 %v3273
  %v3275 = vpop.xlane.xlu0 %3274
  %v3276 = vsel %vm39, %v3234, 0.0
  %3277 = vadd.xlane.f32.xlu0 %v3276
  %v3278 = vpop.xlane.xlu0 %3277
  %v3279 = vsel %vm39, %v3235, 0.0
  %3280 = vadd.xlane.f32.xlu0 %v3279
  %v3281 = vpop.xlane.xlu0 %3280
  %v3282 = vsel %vm39, %v3236, 0.0
  %3283 = vadd.xlane.f32.xlu0 %v3282
  %v3284 = vpop.xlane.xlu0 %3283
  %v3285 = vmul.f32 %v3239, %v88
  %v3286 = vmul.f32 %v3242, %v88
  %v3287 = vmul.f32 %v3245, %v88
  %v3288 = vmul.f32 %v3248, %v88
  %v3289 = vmul.f32 %v3251, %v88
  %v3290 = vmul.f32 %v3254, %v88
  %v3291 = vmul.f32 %v3257, %v88
  %v3292 = vmul.f32 %v3260, %v88
  %v3293 = vmul.f32 %v3263, %v88
  %v3294 = vmul.f32 %v3266, %v88
  %v3295 = vmul.f32 %v3269, %v88
  %v3296 = vmul.f32 %v3272, %v88
  %v3297 = vmul.f32 %v3275, %v88
  %v3298 = vmul.f32 %v3278, %v88
  %v3299 = vmul.f32 %v3281, %v88
  %v3300 = vmul.f32 %v3284, %v88
  %v3301 = vadd.f32 %v3285, 1e-05
  %v3302 = vadd.f32 %v3286, 1e-05
  %v3303 = vadd.f32 %v3287, 1e-05
  %v3304 = vadd.f32 %v3288, 1e-05
  %v3305 = vadd.f32 %v3289, 1e-05
  %v3306 = vadd.f32 %v3290, 1e-05
  %v3307 = vadd.f32 %v3291, 1e-05
  %v3308 = vadd.f32 %v3292, 1e-05
  %v3309 = vadd.f32 %v3293, 1e-05
  %v3310 = vadd.f32 %v3294, 1e-05
  %v3311 = vadd.f32 %v3295, 1e-05
  %v3312 = vadd.f32 %v3296, 1e-05
  %v3313 = vadd.f32 %v3297, 1e-05
  %v3314 = vadd.f32 %v3298, 1e-05
  %v3315 = vadd.f32 %v3299, 1e-05
  %v3316 = vadd.f32 %v3300, 1e-05
  %v3317 = vrsqrt.pop %v3301
  %v3318 = vrsqrt.pop %v3302
  %v3319 = vrsqrt.pop %v3303
  %v3320 = vrsqrt.pop %v3304
  %v3321 = vrsqrt.pop %v3305
  %v3322 = vrsqrt.pop %v3306
  %v3323 = vrsqrt.pop %v3307
  %v3324 = vrsqrt.pop %v3308
  %v3325 = vrsqrt.pop %v3309
  %v3326 = vrsqrt.pop %v3310
  %v3327 = vrsqrt.pop %v3311
  %v3328 = vrsqrt.pop %v3312
  %v3329 = vrsqrt.pop %v3313
  %v3330 = vrsqrt.pop %v3314
  %v3331 = vrsqrt.pop %v3315
  %v3332 = vrsqrt.pop %v3316
  %v3333 = vmul.f32 %v3205, %v3317
  %v3334 = vmul.f32 %v3206, %v3318
  %v3335 = vmul.f32 %v3207, %v3319
  %v3336 = vmul.f32 %v3208, %v3320
  %v3337 = vmul.f32 %v3209, %v3321
  %v3338 = vmul.f32 %v3210, %v3322
  %v3339 = vmul.f32 %v3211, %v3323
  %v3340 = vmul.f32 %v3212, %v3324
  %v3341 = vmul.f32 %v3213, %v3325
  %v3342 = vmul.f32 %v3214, %v3326
  %v3343 = vmul.f32 %v3215, %v3327
  %v3344 = vmul.f32 %v3216, %v3328
  %v3345 = vmul.f32 %v3217, %v3329
  %v3346 = vmul.f32 %v3218, %v3330
  %v3347 = vmul.f32 %v3219, %v3331
  %v3348 = vmul.f32 %v3220, %v3332
  %v3349 = vlaneseq
  %v3350 = vshrl.u32 %v3349, 7
  %v3351 = vsub.s32 0, %v3350
  %v3352 = vrot.slane %v3139, %v3351
  %v3353 = vmul.f32 %v3333, %v3352
  %v3354 = vmul.f32 %v3334, %v3352
  %v3355 = vmul.f32 %v3335, %v3352
  %v3356 = vmul.f32 %v3336, %v3352
  %v3357 = vmul.f32 %v3337, %v3352
  %v3358 = vmul.f32 %v3338, %v3352
  %v3359 = vmul.f32 %v3339, %v3352
  %v3360 = vmul.f32 %v3340, %v3352
  %v3361 = vmul.f32 %v3341, %v3352
  %v3362 = vmul.f32 %v3342, %v3352
  %v3363 = vmul.f32 %v3343, %v3352
  %v3364 = vmul.f32 %v3344, %v3352
  %v3365 = vmul.f32 %v3345, %v3352
  %v3366 = vmul.f32 %v3346, %v3352
  %v3367 = vmul.f32 %v3347, %v3352
  %v3368 = vmul.f32 %v3348, %v3352
  %v3369 = vlaneseq
  %v3370 = vshrl.u32 %v3369, 7
  %v3371 = vsub.s32 0, %v3370
  %v3372 = vrot.slane %v3140, %v3371
  %v3373 = vadd.f32 %v3353, %v3372
  %v3374 = vadd.f32 %v3354, %v3372
  %v3375 = vadd.f32 %v3355, %v3372
  %v3376 = vadd.f32 %v3356, %v3372
  %v3377 = vadd.f32 %v3357, %v3372
  %v3378 = vadd.f32 %v3358, %v3372
  %v3379 = vadd.f32 %v3359, %v3372
  %v3380 = vadd.f32 %v3360, %v3372
  %v3381 = vadd.f32 %v3361, %v3372
  %v3382 = vadd.f32 %v3362, %v3372
  %v3383 = vadd.f32 %v3363, %v3372
  %v3384 = vadd.f32 %v3364, %v3372
  %v3385 = vadd.f32 %v3365, %v3372
  %v3386 = vadd.f32 %v3366, %v3372
  %v3387 = vadd.f32 %v3367, %v3372
  %v3388 = vadd.f32 %v3368, %v3372
  %v3389 = vpack.c.bf16 %v3374, %v3373
  %v3390 = vpack.c.bf16 %v3376, %v3375
  %v3391 = vpack.c.bf16 %v3378, %v3377
  %v3392 = vpack.c.bf16 %v3380, %v3379
  %v3393 = vpack.c.bf16 %v3382, %v3381
  %v3394 = vpack.c.bf16 %v3384, %v3383
  %v3395 = vpack.c.bf16 %v3386, %v3385
  %v3396 = vpack.c.bf16 %v3388, %v3387
  %s3397 = scalar_lea.vmem %s2, 16
  %v3398 = vld [vmem:[%s3397] sm:$0xf]
  %v3399 = vld [vmem:[%s3397 + $0x4] sm:$0xf]
  %v3400 = vld [vmem:[%s3397 + $0x8] sm:$0xf]
  %v3401 = vld [vmem:[%s3397 + $0xc] sm:$0xf]
  %v3402 = vld [vmem:[%s4 + $0x5] sm:$0x1]
  %v3403 = vlaneseq
  %v3404 = vshrl.u32 %v3403, 7
  %v3405 = vsub.s32 0, %v3404
  %v3406 = vrot.slane %v3402, %v3405
  %v3411 = vunpack.c.l.b16 %v3398
  %v3412 = vunpack.c.l.b16 %v3399
  %v3413 = vunpack.c.l.b16 %v3400
  %v3414 = vunpack.c.l.b16 %v3401
  %v3415 = vpack.c.b16 %v3412, %v3411
  %v3416 = vpack.c.b16 %v3414, %v3413
  %v3420 = vsel %vm39, %v3389, 0
  %v3423 = vsel %vm39, %v3390, 0
  %v3426 = vsel %vm39, %v3391, 0
  %v3429 = vsel %vm39, %v3392, 0
  %v3432 = vsel %vm39, %v3393, 0
  %v3435 = vsel %vm39, %v3394, 0
  %v3438 = vsel %vm39, %v3395, 0
  %v3441 = vsel %vm39, %v3396, 0
  %3443 = vmatprep.subr.bf16.mxu0 0
  %3444 = vmatpush1.bf16.msra.mxu0 %v3415
  %3445 = vmatprep.subr.bf16.mxu0 0
  %3446 = vmatpush1.bf16.msra.mxu0 %v3416
  %3447 = vmatprep.subr.bf16.mxu0 0
  %3448 = vmatpush1.bf16.msra.mxu0 0
  %3449 = vmatprep.subr.bf16.mxu0 0
  %3450 = vmatpush1.bf16.msra.mxu0 0
  %3451 = vmatprep.subr.bf16.mxu0 0
  %3452 = vmatpush1.bf16.msra.mxu0 0
  %3453 = vmatprep.subr.bf16.mxu0 0
  %3454 = vmatpush1.bf16.msra.mxu0 0
  %3455 = vmatprep.subr.bf16.mxu0 0
  %3456 = vmatpush1.bf16.msra.mxu0 0
  %3457 = vmatprep.subr.bf16.mxu0 0
  %3458 = vmatpush1.bf16.msra.mxu0 0
  %3459 = vmatprep.subr.bf16.mxu0 0
  %3460 = vmatpush1.bf16.msra.mxu0 0
  %3461 = vmatprep.subr.bf16.mxu0 0
  %3462 = vmatpush1.bf16.msra.mxu0 0
  %3463 = vmatprep.subr.bf16.mxu0 0
  %3464 = vmatpush1.bf16.msra.mxu0 0
  %3465 = vmatprep.subr.bf16.mxu0 0
  %3466 = vmatpush1.bf16.msra.mxu0 0
  %3467 = vmatprep.subr.bf16.mxu0 0
  %3468 = vmatpush1.bf16.msra.mxu0 0
  %3469 = vmatprep.subr.bf16.mxu0 0
  %3470 = vmatpush1.bf16.msra.mxu0 0
  %3471 = vmatprep.subr.bf16.mxu0 0
  %3472 = vmatpush1.bf16.msra.mxu0 0
  %3473 = vmatprep.subr.bf16.mxu0 0
  %3474 = vmatpush1.bf16.msra.mxu0 0
  %3475 = vmatprep.mubr.bf16.mxu0 0
  %3476 = vmatmul.mubr.bf16.gmra.mrb[0].mxu0 %v3420
  %v3477 = vpop.f32.mrb[0].mxu0
  %v3478 = vadd.f32 %v3406, %v3477
  %v3479 = vpop.f32.mrb[0].mxu0
  %v3480 = vpop.f32.mrb[0].mxu0
  %v3481 = vadd.f32 %v3406, %v3480
  %v3482 = vpop.f32.mrb[0].mxu0
  %3483 = vmatprep.mubr.bf16.mxu0 0
  %3484 = vmatmul.mubr.bf16.gmra.mrb[0].mxu0 %v3423
  %v3485 = vpop.f32.mrb[0].mxu0
  %v3486 = vadd.f32 %v3406, %v3485
  %v3487 = vpop.f32.mrb[0].mxu0
  %v3488 = vpop.f32.mrb[0].mxu0
  %v3489 = vadd.f32 %v3406, %v3488
  %v3490 = vpop.f32.mrb[0].mxu0
  %3491 = vmatprep.mubr.bf16.mxu0 0
  %3492 = vmatmul.mubr.bf16.gmra.mrb[0].mxu0 %v3426
  %v3493 = vpop.f32.mrb[0].mxu0
  %v3494 = vadd.f32 %v3406, %v3493
  %v3495 = vpop.f32.mrb[0].mxu0
  %v3496 = vpop.f32.mrb[0].mxu0
  %v3497 = vadd.f32 %v3406, %v3496
  %v3498 = vpop.f32.mrb[0].mxu0
  %3499 = vmatprep.mubr.bf16.mxu0 0
  %3500 = vmatmul.mubr.bf16.gmra.mrb[0].mxu0 %v3429
  %v3501 = vpop.f32.mrb[0].mxu0
  %v3502 = vadd.f32 %v3406, %v3501
  %v3503 = vpop.f32.mrb[0].mxu0
  %v3504 = vpop.f32.mrb[0].mxu0
  %v3505 = vadd.f32 %v3406, %v3504
  %v3506 = vpop.f32.mrb[0].mxu0
  %3507 = vmatprep.mubr.bf16.mxu0 0
  %3508 = vmatmul.mubr.bf16.gmra.mrb[0].mxu0 %v3432
  %v3509 = vpop.f32.mrb[0].mxu0
  %v3510 = vadd.f32 %v3406, %v3509
  %v3511 = vpop.f32.mrb[0].mxu0
  %v3512 = vpop.f32.mrb[0].mxu0
  %v3513 = vadd.f32 %v3406, %v3512
  %v3514 = vpop.f32.mrb[0].mxu0
  %3515 = vmatprep.mubr.bf16.mxu0 0
  %3516 = vmatmul.mubr.bf16.gmra.mrb[0].mxu0 %v3435
  %v3517 = vpop.f32.mrb[0].mxu0
  %v3518 = vadd.f32 %v3406, %v3517
  %v3519 = vpop.f32.mrb[0].mxu0
  %v3520 = vpop.f32.mrb[0].mxu0
  %v3521 = vadd.f32 %v3406, %v3520
  %v3522 = vpop.f32.mrb[0].mxu0
  %3523 = vmatprep.mubr.bf16.mxu0 0
  %3524 = vmatmul.mubr.bf16.gmra.mrb[0].mxu0 %v3438
  %v3525 = vpop.f32.mrb[0].mxu0
  %v3526 = vadd.f32 %v3406, %v3525
  %v3527 = vpop.f32.mrb[0].mxu0
  %v3528 = vpop.f32.mrb[0].mxu0
  %v3529 = vadd.f32 %v3406, %v3528
  %v3530 = vpop.f32.mrb[0].mxu0
  %3531 = vmatprep.mubr.bf16.mxu0 0
  %3532 = vmatmul.mubr.bf16.gmra.mrb[0].mxu0 %v3441
  %v3533 = vpop.f32.mrb[0].mxu0
  %v3534 = vadd.f32 %v3406, %v3533
  %v3535 = vpop.f32.mrb[0].mxu0
  %v3536 = vpop.f32.mrb[0].mxu0
  %v3537 = vadd.f32 %v3406, %v3536
  %v3538 = vpop.f32.mrb[0].mxu0
  %3539 = vdwg.mxu0
  %v3540 = vmul.f32 %v3478, 0.5
  %v3541 = vmul.f32 %v3481, 0.5
  %v3542 = vmul.f32 %v3486, 0.5
  %v3543 = vmul.f32 %v3489, 0.5
  %v3544 = vmul.f32 %v3494, 0.5
  %v3545 = vmul.f32 %v3497, 0.5
  %v3546 = vmul.f32 %v3502, 0.5
  %v3547 = vmul.f32 %v3505, 0.5
  %v3548 = vmul.f32 %v3510, 0.5
  %v3549 = vmul.f32 %v3513, 0.5
  %v3550 = vmul.f32 %v3518, 0.5
  %v3551 = vmul.f32 %v3521, 0.5
  %v3552 = vmul.f32 %v3526, 0.5
  %v3553 = vmul.f32 %v3529, 0.5
  %v3554 = vmul.f32 %v3534, 0.5
  %v3555 = vmul.f32 %v3537, 0.5
  %v3556 = vmul.f32 %v3478, 0.044715
  %v3557 = vmul.f32 %v3481, 0.044715
  %v3558 = vmul.f32 %v3486, 0.044715
  %v3559 = vmul.f32 %v3489, 0.044715
  %v3560 = vmul.f32 %v3494, 0.044715
  %v3561 = vmul.f32 %v3497, 0.044715
  %v3562 = vmul.f32 %v3502, 0.044715
  %v3563 = vmul.f32 %v3505, 0.044715
  %v3564 = vmul.f32 %v3510, 0.044715
  %v3565 = vmul.f32 %v3513, 0.044715
  %v3566 = vmul.f32 %v3518, 0.044715
  %v3567 = vmul.f32 %v3521, 0.044715
  %v3568 = vmul.f32 %v3526, 0.044715
  %v3569 = vmul.f32 %v3529, 0.044715
  %v3570 = vmul.f32 %v3534, 0.044715
  %v3571 = vmul.f32 %v3537, 0.044715
  %v3572 = vmul.f32 %v3556, %v3478
  %v3573 = vmul.f32 %v3557, %v3481
  %v3574 = vmul.f32 %v3558, %v3486
  %v3575 = vmul.f32 %v3559, %v3489
  %v3576 = vmul.f32 %v3560, %v3494
  %v3577 = vmul.f32 %v3561, %v3497
  %v3578 = vmul.f32 %v3562, %v3502
  %v3579 = vmul.f32 %v3563, %v3505
  %v3580 = vmul.f32 %v3564, %v3510
  %v3581 = vmul.f32 %v3565, %v3513
  %v3582 = vmul.f32 %v3566, %v3518
  %v3583 = vmul.f32 %v3567, %v3521
  %v3584 = vmul.f32 %v3568, %v3526
  %v3585 = vmul.f32 %v3569, %v3529
  %v3586 = vmul.f32 %v3570, %v3534
  %v3587 = vmul.f32 %v3571, %v3537
  %v3588 = vmul.f32 %v3572, %v3478
  %v3589 = vmul.f32 %v3573, %v3481
  %v3590 = vmul.f32 %v3574, %v3486
  %v3591 = vmul.f32 %v3575, %v3489
  %v3592 = vmul.f32 %v3576, %v3494
  %v3593 = vmul.f32 %v3577, %v3497
  %v3594 = vmul.f32 %v3578, %v3502
  %v3595 = vmul.f32 %v3579, %v3505
  %v3596 = vmul.f32 %v3580, %v3510
  %v3597 = vmul.f32 %v3581, %v3513
  %v3598 = vmul.f32 %v3582, %v3518
  %v3599 = vmul.f32 %v3583, %v3521
  %v3600 = vmul.f32 %v3584, %v3526
  %v3601 = vmul.f32 %v3585, %v3529
  %v3602 = vmul.f32 %v3586, %v3534
  %v3603 = vmul.f32 %v3587, %v3537
  %v3604 = vadd.f32 %v3478, %v3588
  %v3605 = vadd.f32 %v3481, %v3589
  %v3606 = vadd.f32 %v3486, %v3590
  %v3607 = vadd.f32 %v3489, %v3591
  %v3608 = vadd.f32 %v3494, %v3592
  %v3609 = vadd.f32 %v3497, %v3593
  %v3610 = vadd.f32 %v3502, %v3594
  %v3611 = vadd.f32 %v3505, %v3595
  %v3612 = vadd.f32 %v3510, %v3596
  %v3613 = vadd.f32 %v3513, %v3597
  %v3614 = vadd.f32 %v3518, %v3598
  %v3615 = vadd.f32 %v3521, %v3599
  %v3616 = vadd.f32 %v3526, %v3600
  %v3617 = vadd.f32 %v3529, %v3601
  %v3618 = vadd.f32 %v3534, %v3602
  %v3619 = vadd.f32 %v3537, %v3603
  %v3620 = vmul.f32 %v3604, 0.7978846
  %v3621 = vmul.f32 %v3605, 0.7978846
  %v3622 = vmul.f32 %v3606, 0.7978846
  %v3623 = vmul.f32 %v3607, 0.7978846
  %v3624 = vmul.f32 %v3608, 0.7978846
  %v3625 = vmul.f32 %v3609, 0.7978846
  %v3626 = vmul.f32 %v3610, 0.7978846
  %v3627 = vmul.f32 %v3611, 0.7978846
  %v3628 = vmul.f32 %v3612, 0.7978846
  %v3629 = vmul.f32 %v3613, 0.7978846
  %v3630 = vmul.f32 %v3614, 0.7978846
  %v3631 = vmul.f32 %v3615, 0.7978846
  %v3632 = vmul.f32 %v3616, 0.7978846
  %v3633 = vmul.f32 %v3617, 0.7978846
  %v3634 = vmul.f32 %v3618, 0.7978846
  %v3635 = vmul.f32 %v3619, 0.7978846
  %v3636 = vtanh.pop %v3620
  %v3637 = vtanh.pop %v3621
  %v3638 = vtanh.pop %v3622
  %v3639 = vtanh.pop %v3623
  %v3640 = vtanh.pop %v3624
  %v3641 = vtanh.pop %v3625
  %v3642 = vtanh.pop %v3626
  %v3643 = vtanh.pop %v3627
  %v3644 = vtanh.pop %v3628
  %v3645 = vtanh.pop %v3629
  %v3646 = vtanh.pop %v3630
  %v3647 = vtanh.pop %v3631
  %v3648 = vtanh.pop %v3632
  %v3649 = vtanh.pop %v3633
  %v3650 = vtanh.pop %v3634
  %v3651 = vtanh.pop %v3635
  %v3652 = vadd.f32 %v3636, 1.0
  %v3653 = vadd.f32 %v3637, 1.0
  %v3654 = vadd.f32 %v3638, 1.0
  %v3655 = vadd.f32 %v3639, 1.0
  %v3656 = vadd.f32 %v3640, 1.0
  %v3657 = vadd.f32 %v3641, 1.0
  %v3658 = vadd.f32 %v3642, 1.0
  %v3659 = vadd.f32 %v3643, 1.0
  %v3660 = vadd.f32 %v3644, 1.0
  %v3661 = vadd.f32 %v3645, 1.0
  %v3662 = vadd.f32 %v3646, 1.0
  %v3663 = vadd.f32 %v3647, 1.0
  %v3664 = vadd.f32 %v3648, 1.0
  %v3665 = vadd.f32 %v3649, 1.0
  %v3666 = vadd.f32 %v3650, 1.0
  %v3667 = vadd.f32 %v3651, 1.0
  %v3668 = vmul.f32 %v3540, %v3652
  %v3669 = vmul.f32 %v3541, %v3653
  %v3670 = vmul.f32 %v3542, %v3654
  %v3671 = vmul.f32 %v3543, %v3655
  %v3672 = vmul.f32 %v3544, %v3656
  %v3673 = vmul.f32 %v3545, %v3657
  %v3674 = vmul.f32 %v3546, %v3658
  %v3675 = vmul.f32 %v3547, %v3659
  %v3676 = vmul.f32 %v3548, %v3660
  %v3677 = vmul.f32 %v3549, %v3661
  %v3678 = vmul.f32 %v3550, %v3662
  %v3679 = vmul.f32 %v3551, %v3663
  %v3680 = vmul.f32 %v3552, %v3664
  %v3681 = vmul.f32 %v3553, %v3665
  %v3682 = vmul.f32 %v3554, %v3666
  %v3683 = vmul.f32 %v3555, %v3667
  %v3684 = vpack.c.bf16 %v3669, %v3668
  %v3685 = vpack.c.bf16 %v3671, %v3670
  %v3686 = vpack.c.bf16 %v3673, %v3672
  %v3687 = vpack.c.bf16 %v3675, %v3674
  %v3688 = vpack.c.bf16 %v3677, %v3676
  %v3689 = vpack.c.bf16 %v3679, %v3678
  %v3690 = vpack.c.bf16 %v3681, %v3680
  %v3691 = vpack.c.bf16 %v3683, %v3682
  %s3692 = scalar_lea.vmem %s2, 32
  %v3693 = vld [vmem:[%s3692] sm:$0xf]
  %v3694 = vld [vmem:[%s3692 + $0x4] sm:$0xf]
  %v3695 = vld [vmem:[%s3692 + $0x8] sm:$0xf]
  %v3696 = vld [vmem:[%s3692 + $0xc] sm:$0xf]
  %v3697 = vld [vmem:[%s4 + $0x6] sm:$0x1]
  %v3698 = vlaneseq
  %v3699 = vshrl.u32 %v3698, 7
  %v3700 = vsub.s32 0, %v3699
  %v3701 = vrot.slane %v3697, %v3700
  %v3706 = vunpack.c.l.b16 %v3693
  %v3707 = vunpack.c.l.b16 %v3694
  %v3708 = vunpack.c.l.b16 %v3695
  %v3709 = vunpack.c.l.b16 %v3696
  %v3710 = vpack.c.b16 %v3707, %v3706
  %v3711 = vpack.c.b16 %v3709, %v3708
  %v3715 = vsel %vm39, %v3684, 0
  %v3718 = vsel %vm39, %v3685, 0
  %v3721 = vsel %vm39, %v3686, 0
  %v3724 = vsel %vm39, %v3687, 0
  %v3727 = vsel %vm39, %v3688, 0
  %v3730 = vsel %vm39, %v3689, 0
  %v3733 = vsel %vm39, %v3690, 0
  %v3736 = vsel %vm39, %v3691, 0
  %3738 = vmatprep.subr.bf16.mxu0 0
  %3739 = vmatpush1.bf16.msra.mxu0 %v3710
  %3740 = vmatprep.subr.bf16.mxu0 0
  %3741 = vmatpush1.bf16.msra.mxu0 %v3711
  %3742 = vmatprep.subr.bf16.mxu0 0
  %3743 = vmatpush1.bf16.msra.mxu0 0
  %3744 = vmatprep.subr.bf16.mxu0 0
  %3745 = vmatpush1.bf16.msra.mxu0 0
  %3746 = vmatprep.subr.bf16.mxu0 0
  %3747 = vmatpush1.bf16.msra.mxu0 0
  %3748 = vmatprep.subr.bf16.mxu0 0
  %3749 = vmatpush1.bf16.msra.mxu0 0
  %3750 = vmatprep.subr.bf16.mxu0 0
  %3751 = vmatpush1.bf16.msra.mxu0 0
  %3752 = vmatprep.subr.bf16.mxu0 0
  %3753 = vmatpush1.bf16.msra.mxu0 0
  %3754 = vmatprep.subr.bf16.mxu0 0
  %3755 = vmatpush1.bf16.msra.mxu0 0
  %3756 = vmatprep.subr.bf16.mxu0 0
  %3757 = vmatpush1.bf16.msra.mxu0 0
  %3758 = vmatprep.subr.bf16.mxu0 0
  %3759 = vmatpush1.bf16.msra.mxu0 0
  %3760 = vmatprep.subr.bf16.mxu0 0
  %3761 = vmatpush1.bf16.msra.mxu0 0
  %3762 = vmatprep.subr.bf16.mxu0 0
  %3763 = vmatpush1.bf16.msra.mxu0 0
  %3764 = vmatprep.subr.bf16.mxu0 0
  %3765 = vmatpush1.bf16.msra.mxu0 0
  %3766 = vmatprep.subr.bf16.mxu0 0
  %3767 = vmatpush1.bf16.msra.mxu0 0
  %3768 = vmatprep.subr.bf16.mxu0 0
  %3769 = vmatpush1.bf16.msra.mxu0 0
  %3770 = vmatprep.mubr.bf16.mxu0 0
  %3771 = vmatmul.mubr.bf16.gmra.mrb[0].mxu0 %v3715
  %v3772 = vpop.f32.mrb[0].mxu0
  %v3773 = vadd.f32 %v3701, %v3772
  %v3774 = vpop.f32.mrb[0].mxu0
  %v3775 = vpop.f32.mrb[0].mxu0
  %v3776 = vadd.f32 %v3701, %v3775
  %v3777 = vpop.f32.mrb[0].mxu0
  %3778 = vmatprep.mubr.bf16.mxu0 0
  %3779 = vmatmul.mubr.bf16.gmra.mrb[0].mxu0 %v3718
  %v3780 = vpop.f32.mrb[0].mxu0
  %v3781 = vadd.f32 %v3701, %v3780
  %v3782 = vpop.f32.mrb[0].mxu0
  %v3783 = vpop.f32.mrb[0].mxu0
  %v3784 = vadd.f32 %v3701, %v3783
  %v3785 = vpop.f32.mrb[0].mxu0
  %3786 = vmatprep.mubr.bf16.mxu0 0
  %3787 = vmatmul.mubr.bf16.gmra.mrb[0].mxu0 %v3721
  %v3788 = vpop.f32.mrb[0].mxu0
  %v3789 = vadd.f32 %v3701, %v3788
  %v3790 = vpop.f32.mrb[0].mxu0
  %v3791 = vpop.f32.mrb[0].mxu0
  %v3792 = vadd.f32 %v3701, %v3791
  %v3793 = vpop.f32.mrb[0].mxu0
  %3794 = vmatprep.mubr.bf16.mxu0 0
  %3795 = vmatmul.mubr.bf16.gmra.mrb[0].mxu0 %v3724
  %v3796 = vpop.f32.mrb[0].mxu0
  %v3797 = vadd.f32 %v3701, %v3796
  %v3798 = vpop.f32.mrb[0].mxu0
  %v3799 = vpop.f32.mrb[0].mxu0
  %v3800 = vadd.f32 %v3701, %v3799
  %v3801 = vpop.f32.mrb[0].mxu0
  %3802 = vmatprep.mubr.bf16.mxu0 0
  %3803 = vmatmul.mubr.bf16.gmra.mrb[0].mxu0 %v3727
  %v3804 = vpop.f32.mrb[0].mxu0
  %v3805 = vadd.f32 %v3701, %v3804
  %v3806 = vpop.f32.mrb[0].mxu0
  %v3807 = vpop.f32.mrb[0].mxu0
  %v3808 = vadd.f32 %v3701, %v3807
  %v3809 = vpop.f32.mrb[0].mxu0
  %3810 = vmatprep.mubr.bf16.mxu0 0
  %3811 = vmatmul.mubr.bf16.gmra.mrb[0].mxu0 %v3730
  %v3812 = vpop.f32.mrb[0].mxu0
  %v3813 = vadd.f32 %v3701, %v3812
  %v3814 = vpop.f32.mrb[0].mxu0
  %v3815 = vpop.f32.mrb[0].mxu0
  %v3816 = vadd.f32 %v3701, %v3815
  %v3817 = vpop.f32.mrb[0].mxu0
  %3818 = vmatprep.mubr.bf16.mxu0 0
  %3819 = vmatmul.mubr.bf16.gmra.mrb[0].mxu0 %v3733
  %v3820 = vpop.f32.mrb[0].mxu0
  %v3821 = vadd.f32 %v3701, %v3820
  %v3822 = vpop.f32.mrb[0].mxu0
  %v3823 = vpop.f32.mrb[0].mxu0
  %v3824 = vadd.f32 %v3701, %v3823
  %v3825 = vpop.f32.mrb[0].mxu0
  %3826 = vmatprep.mubr.bf16.mxu0 0
  %3827 = vmatmul.mubr.bf16.gmra.mrb[0].mxu0 %v3736
  %v3828 = vpop.f32.mrb[0].mxu0
  %v3829 = vadd.f32 %v3701, %v3828
  %v3830 = vpop.f32.mrb[0].mxu0
  %v3831 = vpop.f32.mrb[0].mxu0
  %v3832 = vadd.f32 %v3701, %v3831
  %v3833 = vpop.f32.mrb[0].mxu0
  %3834 = vdwg.mxu0
  %v3835 = vadd.f32 %v3773, %v3123
  %v3836 = vadd.f32 %v3776, %v3124
  %v3837 = vadd.f32 %v3781, %v3125
  %v3838 = vadd.f32 %v3784, %v3126
  %v3839 = vadd.f32 %v3789, %v3127
  %v3840 = vadd.f32 %v3792, %v3128
  %v3841 = vadd.f32 %v3797, %v3129
  %v3842 = vadd.f32 %v3800, %v3130
  %v3843 = vadd.f32 %v3805, %v3131
  %v3844 = vadd.f32 %v3808, %v3132
  %v3845 = vadd.f32 %v3813, %v3133
  %v3846 = vadd.f32 %v3816, %v3134
  %v3847 = vadd.f32 %v3821, %v3135
  %v3848 = vadd.f32 %v3824, %v3136
  %v3849 = vadd.f32 %v3829, %v3137
  %v3850 = vadd.f32 %v3832, %v3138
  %3851 = vst.msk [vmem:[%s5] sm:$0xff] %vm39, %v3835
  %3852 = vst.msk [vmem:[%s5 + $0x8] sm:$0xff] %vm39, %v3836
  %3853 = vst.msk [vmem:[%s5 + $0x10] sm:$0xff] %vm39, %v3837
  %3854 = vst.msk [vmem:[%s5 + $0x18] sm:$0xff] %vm39, %v3838
  %3855 = vst.msk [vmem:[%s5 + $0x20] sm:$0xff] %vm39, %v3839
  %3856 = vst.msk [vmem:[%s5 + $0x28] sm:$0xff] %vm39, %v3840
  %3857 = vst.msk [vmem:[%s5 + $0x30] sm:$0xff] %vm39, %v3841
  %3858 = vst.msk [vmem:[%s5 + $0x38] sm:$0xff] %vm39, %v3842
  %3859 = vst.msk [vmem:[%s5 + $0x40] sm:$0xff] %vm39, %v3843
  %3860 = vst.msk [vmem:[%s5 + $0x48] sm:$0xff] %vm39, %v3844
  %3861 = vst.msk [vmem:[%s5 + $0x50] sm:$0xff] %vm39, %v3845
  %3862 = vst.msk [vmem:[%s5 + $0x58] sm:$0xff] %vm39, %v3846
  %3863 = vst.msk [vmem:[%s5 + $0x60] sm:$0xff] %vm39, %v3847
  %3864 = vst.msk [vmem:[%s5 + $0x68] sm:$0xff] %vm39, %v3848
  %3865 = vst.msk [vmem:[%s5 + $0x70] sm:$0xff] %vm39, %v3849
  %3866 = vst.msk [vmem:[%s5 + $0x78] sm:$0xff] %vm39, %v3850
  // Predicated region
  $region22: #{tpu_custom_call.1} parent=0 // pred_check
    _
  $region23: #{tpu_custom_call.1} parent=0 // pred_check_branch
    %3868 = sbr.rel (0) target = $region25
  $region24: #{tpu_custom_call.1} parent=0 // pred_region
    _
  $region25: #{tpu_custom_call.1} parent=0 // pred_fallthru
    _
  // Predicated region
  $region26: #{tpu_custom_call.1} parent=0 // pred_check
    _
  $region27: #{tpu_custom_call.1} parent=0 // pred_check_branch
    %3870 = sbr.rel (0) target = $region29
  $region28: #{tpu_custom_call.1} parent=0 // pred_region
    _
  $region29: #{tpu_custom_call.1} parent=0 // pred_fallthru
    _

</llo_original>
